<compile_context>
chip_gen: v7x
topology: tpu7x:2x2x1
jax: 0.10.0
libtpu: 0.0.40
codegen_flags: <defaults>
</compile_context>

<pallas_src>
import jax
import jax.numpy as jnp
from jax import lax
from jax.experimental import pallas as pl
from jax.experimental.pallas import tpu as pltpu

EPS = 1e-5


# --------------------------- host-side weight prep --------------------------- #

def _toeplitz(w_hwio, w_pad, stride, w_out):
    """Conv weight (kh,kw,ci,co) -> block-Toeplitz matmul weight.

    Acts on a row-flattened padded input row-window: K index = ky*w_pad*ci + c*ci + ci_,
    N index = x*co + co_.  T[(ky,c,ci),(x,co)] = w[ky, c - stride*x, ci, co] (else 0).
    """
    kh, kw, ci, co = w_hwio.shape
    t = jnp.zeros((kh, w_pad, ci, w_out, co), w_hwio.dtype)
    for x in range(w_out):
        t = t.at[:, stride * x: stride * x + kw, :, x, :].set(w_hwio)
    return t.reshape(kh * w_pad * ci, w_out * co)


# --------------------------------- kernel ------------------------------------ #

def _make_block_kernel(B, H, W, Ci, Co):
    Wp = W + 2                    # padded width
    Ho, Wo = H // 2, W // 2
    Hp2 = Ho // 2                 # two output rows per matmul row in the transform
    lw1 = Wp * Ci                 # flattened padded row width (conv1 input)
    lw2 = Wp * Co                 # flattened padded row width (conv2 / transform input)
    n_bn = float(B * H * W)       # elements per channel for the batch statistics

    def kernel(x_ref, t_ref, w1_ref, b1_ref, w2_ref, b2_ref, w3_ref, b3_ref,
               wtm_ref, btm_ref, g_ref, be_ref, gsum_ref, gtile_ref,
               out_ref, xp_ref, hp_ref, l_ref):
        gsum = gsum_ref[...]      # (W*Co, Co)  one-hot: reduce (x,co) lanes -> co
        gtile = gtile_ref[...]    # (Co, W*Co)  one-hot: tile co -> (x,co) lanes
        gamma, beta = g_ref[...], be_ref[...]

        def zero_border(ref, cpad):
            # border-only zeroing; the interior is always fully overwritten.
            lw = ref.shape[-1]
            zrow = jnp.zeros((B, lw), ref.dtype)
            ref[:, 0, :] = zrow
            ref[:, H + 1, :] = zrow
            zcol = jnp.zeros((B, H + 2, cpad), ref.dtype)
            ref[:, :, 0:cpad] = zcol
            ref[:, :, lw - cpad:lw] = zcol

        def conv3x3_relu(src_ref, lw, wT_ref, bias_ref):
            # im2row: 3 wide row-window copies, then one MXU matmul (lane-dense N=W*Co).
            for ky in range(3):
                l_ref[:, :, ky * lw:(ky + 1) * lw] = src_ref[:, ky:ky + H, :]
            patches = l_ref[:, :, 0:3 * lw].reshape(B * H, 3 * lw)
            y = jnp.dot(patches, wT_ref[...],
                        preferred_element_type=jnp.float32) + bias_ref[...]
            return jnp.maximum(y, 0.0)                       # (B*H, W*Co) f32

        def batchnorm(h):
            # one-pass fused stats: sum & sum-of-squares, per-channel via one-hot dots.
            s1 = jnp.sum(h, axis=0, keepdims=True)           # (1, W*Co)
            s2 = jnp.sum(h * h, axis=0, keepdims=True)
            s1c = jnp.dot(s1, gsum, preferred_element_type=jnp.float32)   # (1, Co)
            s2c = jnp.dot(s2, gsum, preferred_element_type=jnp.float32)
            mean = s1c / n_bn
            var = jnp.maximum(s2c / n_bn - mean * mean, 0.0)
            scale_c = gamma * lax.rsqrt(var + EPS)
            shift_c = beta - mean * scale_c
            scale = jnp.dot(scale_c, gtile, preferred_element_type=jnp.float32)
            shift = jnp.dot(shift_c, gtile, preferred_element_type=jnp.float32)
            return h * scale + shift

        zero_border(xp_ref, Ci)
        zero_border(hp_ref, Co)

        # time embedding: relu(t @ W + b), tiled across the (x, co) lanes
        temb = jnp.maximum(
            jnp.dot(t_ref[...], wtm_ref[...],
                    preferred_element_type=jnp.float32) + btm_ref[...], 0.0)
        temb_t = jnp.dot(temb, gtile, preferred_element_type=jnp.float32)  # (B, W*Co)

        # ---- conv1 -> ReLU -> BN -> + time_emb ------------------------------
        xp_ref[:, 1:H + 1, Ci:Ci + W * Ci] = x_ref[...]
        h = batchnorm(conv3x3_relu(xp_ref, lw1, w1_ref, b1_ref))
        h = h.reshape(B, H, W * Co) + temb_t[:, None, :]

        # ---- conv2 -> ReLU -> BN ---------------------------------------------
        hp_ref[:, 1:H + 1, Co:Co + W * Co] = h.astype(hp_ref.dtype)
        h = batchnorm(conv3x3_relu(hp_ref, lw2, w2_ref, b2_ref))

        # ---- transform: Conv2d(Co, Co, k=4, s=2, p=1) as ONE matmul ----------
        # Two output rows are packed per matmul row (N = 2*Wo*Co = 128 lanes) so the
        # final store is a single 128-lane-dense write.
        hp_ref[:, 1:H + 1, Co:Co + W * Co] = h.reshape(B, H, W * Co).astype(hp_ref.dtype)
        for prow in range(Hp2):
            for ky in range(6):
                l_ref[:, prow, ky * lw2:(ky + 1) * lw2] = hp_ref[:, 4 * prow + ky, :]
        patches = l_ref[:, 0:Hp2, 0:6 * lw2].reshape(B * Hp2, 6 * lw2)
        y = jnp.dot(patches, w3_ref[...],
                    preferred_element_type=jnp.float32) + b3_ref[...]
        out_ref[...] = y.reshape(B, Hp2, 2 * Wo * Co)

    return kernel


# -------------------------------- wrapper ------------------------------------ #

def block_forward(x_nchw, t, p):
    """Block.forward(x, t), up=False.  x_nchw: (B, in_ch, H, W), t: (B, T)."""
    B, Ci, H, W = x_nchw.shape
    Co = p['w1'].shape[-1]
    assert H % 4 == 0 and W % 2 == 0, "toy kernel packs two output rows per store row"
    Ho, Wo = H // 2, W // 2
    Wp = W + 2

    # NCHW -> NHWC -> row-flattened (B, H, W*Ci), bf16 (matmul input precision).
    x_flat = (jnp.transpose(x_nchw, (0, 2, 3, 1))
              .reshape(B, H, W * Ci).astype(jnp.bfloat16))

    # Block-Toeplitz conv weights (built once per call; constant w.r.t. activations).
    w1t = _toeplitz(p['w1'], Wp, 1, W).astype(jnp.bfloat16)       # (3*Wp*Ci, W*Co)
    w2t = _toeplitz(p['w2'], Wp, 1, W).astype(jnp.bfloat16)       # (3*Wp*Co, W*Co)
    t3 = _toeplitz(p['wt'], Wp, 2, Wo)                            # (4*Wp*Co, Wo*Co)
    k3, n3 = t3.shape
    w3t = jnp.zeros((6 * Wp * Co, 2 * n3), t3.dtype)              # two output rows / matmul row
    w3t = w3t.at[0:k3, 0:n3].set(t3)
    w3t = w3t.at[2 * Wp * Co:2 * Wp * Co + k3, n3:2 * n3].set(t3)
    w3t = w3t.astype(jnp.bfloat16)

    b1t = jnp.tile(p['b1'].astype(jnp.float32), W).reshape(1, W * Co)
    b2t = jnp.tile(p['b2'].astype(jnp.float32), W).reshape(1, W * Co)
    b3t = jnp.tile(p['bt'].astype(jnp.float32), 2 * Wo).reshape(1, 2 * Wo * Co)
    eye = jnp.eye(Co, dtype=jnp.float32)
    gtile = jnp.tile(eye, (1, W))         # (Co, W*Co)
    gsum = jnp.tile(eye, (W, 1))          # (W*Co, Co)

    kernel = _make_block_kernel(B, H, W, Ci, Co)
    out = pl.pallas_call(
        kernel,
        out_shape=jax.ShapeDtypeStruct((B, Ho // 2, 2 * Wo * Co), jnp.float32),
        scratch_shapes=[
            pltpu.VMEM((B, H + 2, Wp * Ci), jnp.bfloat16),   # padded x   (row-flattened)
            pltpu.VMEM((B, H + 2, Wp * Co), jnp.bfloat16),   # padded h1/h2
            pltpu.VMEM((B, H, 6 * Wp * Co), jnp.bfloat16),   # im2row slab (reused by all 3 matmuls)
        ],
        compiler_params=pltpu.CompilerParams(vmem_limit_bytes=32 * 1024 * 1024),
    )(x_flat, t.astype(jnp.float32),
      w1t, b1t, w2t, b2t, w3t, b3t,
      p['w_time'].astype(jnp.float32),
      p['b_time'].reshape(1, Co).astype(jnp.float32),
      p['gamma'].reshape(1, Co).astype(jnp.float32),
      p['beta'].reshape(1, Co).astype(jnp.float32),
      gsum, gtile)

    y = out.reshape(B, Ho // 2, 2, Wo, Co).reshape(B, Ho, Wo, Co)
    return jnp.transpose(y, (0, 3, 1, 2))                        # NHWC -> NCHW


# ------------------------------ pure-JAX reference --------------------------- #

def ref_forward(x_nchw, t, p, matmul_dtype=jnp.float32):
    """Module semantics; matmul_dtype lets us match the kernel's bf16 MXU inputs."""
    x = jnp.transpose(x_nchw, (0, 2, 3, 1)).astype(jnp.float32)

    def conv(h, w, b, stride, pad):
        return lax.conv_general_dilated(
            h.astype(matmul_dtype), w.astype(matmul_dtype),
            (stride, stride), [(pad, pad), (pad, pad)],
            dimension_numbers=('NHWC', 'HWIO', 'NHWC'),
            preferred_element_type=jnp.float32) + b.reshape(1, 1, 1, -1)

    def bn(h):
        mean = jnp.mean(h, axis=(0, 1, 2), keepdims=True)
        var = jnp.mean(jnp.square(h - mean), axis=(0, 1, 2), keepdims=True)
        return (p['gamma'].reshape(1, 1, 1, -1) * (h - mean) * lax.rsqrt(var + EPS)
                + p['beta'].reshape(1, 1, 1, -1))

    h = bn(jax.nn.relu(conv(x, p['w1'], p['b1'], 1, 1)))
    temb = jax.nn.relu(t @ p['w_time'] + p['b_time'])
    h = h + temb[:, None, None, :]
    h = bn(jax.nn.relu(conv(h, p['w2'], p['b2'], 1, 1)))
    y = conv(h, p['wt'], p['bt'], 2, 1)
    return jnp.transpose(y, (0, 3, 1, 2))


# ----------------------------------- params ---------------------------------- #

def init_params(key, in_ch, out_ch, time_emb_dim):
    ks = jax.random.split(key, 8)
    s = 0.1
    return dict(
        w1=jax.random.normal(ks[0], (3, 3, in_ch, out_ch), jnp.float32) * s,
        b1=jax.random.normal(ks[1], (out_ch,), jnp.float32) * s,
        w2=jax.random.normal(ks[2], (3, 3, out_ch, out_ch), jnp.float32) * s,
        b2=jax.random.normal(ks[3], (out_ch,), jnp.float32) * s,
        wt=jax.random.normal(ks[4], (4, 4, out_ch, out_ch), jnp.float32) * s,
        bt=jax.random.normal(ks[5], (out_ch,), jnp.float32) * s,
        w_time=jax.random.normal(ks[6], (time_emb_dim, out_ch), jnp.float32) * s,
        b_time=jax.random.normal(ks[7], (out_ch,), jnp.float32) * s,
        gamma=jnp.ones((out_ch,), jnp.float32),   # PyTorch BatchNorm2d default init
        beta=jnp.zeros((out_ch,), jnp.float32),
    )


if __name__ == "__main__":
    key = jax.random.PRNGKey(0)
    k_x, k_t, k_p = jax.random.split(key, 3)

    B, in_ch, out_ch, T, H = 2, 4, 8, 32, 16
    x = jax.random.normal(k_x, (B, in_ch, H, H), jnp.float32)   # NCHW, like PyTorch
    t = jax.random.normal(k_t, (B, T), jnp.float32)
    params = init_params(k_p, in_ch, out_ch, T)

    y = jax.block_until_ready(jax.jit(block_forward)(x, t, params))

    y_ref_bf16 = ref_forward(x, t, params, jnp.bfloat16)   # matches kernel MXU precision
    y_ref_f32 = ref_forward(x, t, params, jnp.float32)

    assert y.shape == (B, out_ch, H // 2, H // 2), y.shape
    if not jnp.allclose(y, y_ref_bf16, atol=3e-2, rtol=3e-2):
        raise AssertionError(
            "Pallas output does not match bf16-precision JAX reference; max |diff| = "
            f"{float(jnp.max(jnp.abs(y - y_ref_bf16)))}")
    if not jnp.allclose(y, y_ref_f32, atol=2e-1, rtol=2e-1):
        raise AssertionError(
            "Pallas output does not match f32 JAX reference; max |diff| = "
            f"{float(jnp.max(jnp.abs(y - y_ref_f32)))}")
    print("KERNEL_OK")
</pallas_src>

<mosaic_0001>
module attributes {stable_mosaic.version = 11 : i64} {
  func.func @kernel(%arg0: memref<2x16x64xbf16, #tpu.memory_space<vmem>>, %arg1: memref<2x32xf32, #tpu.memory_space<vmem>>, %arg2: memref<216x128xbf16, #tpu.memory_space<vmem>>, %arg3: memref<1x128xf32, #tpu.memory_space<vmem>>, %arg4: memref<432x128xbf16, #tpu.memory_space<vmem>>, %arg5: memref<1x128xf32, #tpu.memory_space<vmem>>, %arg6: memref<864x128xbf16, #tpu.memory_space<vmem>>, %arg7: memref<1x128xf32, #tpu.memory_space<vmem>>, %arg8: memref<32x8xf32, #tpu.memory_space<vmem>>, %arg9: memref<1x8xf32, #tpu.memory_space<vmem>>, %arg10: memref<1x8xf32, #tpu.memory_space<vmem>>, %arg11: memref<1x8xf32, #tpu.memory_space<vmem>>, %arg12: memref<128x8xf32, #tpu.memory_space<vmem>>, %arg13: memref<8x128xf32, #tpu.memory_space<vmem>>, %arg14: memref<2x4x128xf32, #tpu.memory_space<vmem>>, %arg15: memref<2x18x72xbf16, #tpu.memory_space<vmem>>, %arg16: memref<2x18x144xbf16, #tpu.memory_space<vmem>>, %arg17: memref<2x16x864xbf16, #tpu.memory_space<vmem>>) attributes {dimension_semantics = [], scalar_prefetch = 0 : i64, scratch_operands = 3 : i64, tpu.core_type = #tpu.core_type<tc>} {
    %c0 = arith.constant 0 : index
    %c0_0 = arith.constant 0 : index
    %0 = vector.load %arg12[%c0, %c0_0] : memref<128x8xf32, #tpu.memory_space<vmem>>, vector<128x8xf32>
    %c0_1 = arith.constant 0 : index
    %c0_2 = arith.constant 0 : index
    %1 = vector.load %arg13[%c0_1, %c0_2] : memref<8x128xf32, #tpu.memory_space<vmem>>, vector<8x128xf32>
    %c0_3 = arith.constant 0 : index
    %c0_4 = arith.constant 0 : index
    %2 = vector.load %arg10[%c0_3, %c0_4] : memref<1x8xf32, #tpu.memory_space<vmem>>, vector<1x8xf32>
    %c0_5 = arith.constant 0 : index
    %c0_6 = arith.constant 0 : index
    %3 = vector.load %arg11[%c0_5, %c0_6] : memref<1x8xf32, #tpu.memory_space<vmem>>, vector<1x8xf32>
    %cst = arith.constant 0.000000e+00 : bf16
    %4 = vector.broadcast %cst : bf16 to vector<2x72xbf16>
    %c0_7 = arith.constant 0 : index
    %c0_8 = arith.constant 0 : index
    %c0_9 = arith.constant 0 : index
    %5 = vector.load %arg15[%c0_7, %c0_8, %c0_9] : memref<2x18x72xbf16, #tpu.memory_space<vmem>>, vector<2x1x72xbf16>
    %6 = vector.shape_cast %5 : vector<2x1x72xbf16> to vector<2x72xbf16>
    %7 = vector.shape_cast %4 : vector<2x72xbf16> to vector<2x1x72xbf16>
    tpu.vector_store %arg15[%c0_7, %c0_8, %c0_9], %7 {strides = array<i32>} : memref<2x18x72xbf16, #tpu.memory_space<vmem>>, vector<2x1x72xbf16>,
    %c0_10 = arith.constant 0 : index
    %c17 = arith.constant 17 : index
    %c0_11 = arith.constant 0 : index
    %8 = vector.load %arg15[%c0_10, %c17, %c0_11] : memref<2x18x72xbf16, #tpu.memory_space<vmem>>, vector<2x1x72xbf16>
    %9 = vector.shape_cast %8 : vector<2x1x72xbf16> to vector<2x72xbf16>
    %10 = vector.shape_cast %4 : vector<2x72xbf16> to vector<2x1x72xbf16>
    tpu.vector_store %arg15[%c0_10, %c17, %c0_11], %10 {strides = array<i32>} : memref<2x18x72xbf16, #tpu.memory_space<vmem>>, vector<2x1x72xbf16>,
    %cst_12 = arith.constant 0.000000e+00 : bf16
    %11 = vector.broadcast %cst_12 : bf16 to vector<2x18x4xbf16>
    %c0_13 = arith.constant 0 : index
    %c0_14 = arith.constant 0 : index
    %c0_15 = arith.constant 0 : index
    %12 = vector.load %arg15[%c0_13, %c0_14, %c0_15] : memref<2x18x72xbf16, #tpu.memory_space<vmem>>, vector<2x18x4xbf16>
    tpu.vector_store %arg15[%c0_13, %c0_14, %c0_15], %11 {strides = array<i32>} : memref<2x18x72xbf16, #tpu.memory_space<vmem>>, vector<2x18x4xbf16>,
    %c0_16 = arith.constant 0 : index
    %c0_17 = arith.constant 0 : index
    %c68 = arith.constant 68 : index
    %13 = vector.load %arg15[%c0_16, %c0_17, %c68] : memref<2x18x72xbf16, #tpu.memory_space<vmem>>, vector<2x18x4xbf16>
    tpu.vector_store %arg15[%c0_16, %c0_17, %c68], %11 {strides = array<i32>} : memref<2x18x72xbf16, #tpu.memory_space<vmem>>, vector<2x18x4xbf16>,
    %cst_18 = arith.constant 0.000000e+00 : bf16
    %14 = vector.broadcast %cst_18 : bf16 to vector<2x144xbf16>
    %c0_19 = arith.constant 0 : index
    %c0_20 = arith.constant 0 : index
    %c0_21 = arith.constant 0 : index
    %15 = vector.load %arg16[%c0_19, %c0_20, %c0_21] : memref<2x18x144xbf16, #tpu.memory_space<vmem>>, vector<2x1x144xbf16>
    %16 = vector.shape_cast %15 : vector<2x1x144xbf16> to vector<2x144xbf16>
    %17 = vector.shape_cast %14 : vector<2x144xbf16> to vector<2x1x144xbf16>
    tpu.vector_store %arg16[%c0_19, %c0_20, %c0_21], %17 {strides = array<i32>} : memref<2x18x144xbf16, #tpu.memory_space<vmem>>, vector<2x1x144xbf16>,
    %c0_22 = arith.constant 0 : index
    %c17_23 = arith.constant 17 : index
    %c0_24 = arith.constant 0 : index
    %18 = vector.load %arg16[%c0_22, %c17_23, %c0_24] : memref<2x18x144xbf16, #tpu.memory_space<vmem>>, vector<2x1x144xbf16>
    %19 = vector.shape_cast %18 : vector<2x1x144xbf16> to vector<2x144xbf16>
    %20 = vector.shape_cast %14 : vector<2x144xbf16> to vector<2x1x144xbf16>
    tpu.vector_store %arg16[%c0_22, %c17_23, %c0_24], %20 {strides = array<i32>} : memref<2x18x144xbf16, #tpu.memory_space<vmem>>, vector<2x1x144xbf16>,
    %cst_25 = arith.constant 0.000000e+00 : bf16
    %21 = vector.broadcast %cst_25 : bf16 to vector<2x18x8xbf16>
    %c0_26 = arith.constant 0 : index
    %c0_27 = arith.constant 0 : index
    %c0_28 = arith.constant 0 : index
    %22 = vector.load %arg16[%c0_26, %c0_27, %c0_28] : memref<2x18x144xbf16, #tpu.memory_space<vmem>>, vector<2x18x8xbf16>
    tpu.vector_store %arg16[%c0_26, %c0_27, %c0_28], %21 {strides = array<i32>} : memref<2x18x144xbf16, #tpu.memory_space<vmem>>, vector<2x18x8xbf16>,
    %c0_29 = arith.constant 0 : index
    %c0_30 = arith.constant 0 : index
    %c136 = arith.constant 136 : index
    %23 = vector.load %arg16[%c0_29, %c0_30, %c136] : memref<2x18x144xbf16, #tpu.memory_space<vmem>>, vector<2x18x8xbf16>
    tpu.vector_store %arg16[%c0_29, %c0_30, %c136], %21 {strides = array<i32>} : memref<2x18x144xbf16, #tpu.memory_space<vmem>>, vector<2x18x8xbf16>,
    %c0_31 = arith.constant 0 : index
    %c0_32 = arith.constant 0 : index
    %24 = vector.load %arg1[%c0_31, %c0_32] : memref<2x32xf32, #tpu.memory_space<vmem>>, vector<2x32xf32>
    %c0_33 = arith.constant 0 : index
    %c0_34 = arith.constant 0 : index
    %25 = vector.load %arg8[%c0_33, %c0_34] : memref<32x8xf32, #tpu.memory_space<vmem>>, vector<32x8xf32>
    %cst_35 = arith.constant dense<0.000000e+00> : vector<2x8xf32>
    %26 = tpu.matmul %24, %25, %cst_35 {dimension_numbers = #tpu.dot_dimension_numbers<[1], [0], [0], [1], [0, 0, 1, 1], [], []>} : vector<2x32xf32>, vector<32x8xf32>, vector<2x8xf32> -> vector<2x8xf32>
    %c0_36 = arith.constant 0 : index
    %c0_37 = arith.constant 0 : index
    %27 = vector.load %arg9[%c0_36, %c0_37] : memref<1x8xf32, #tpu.memory_space<vmem>>, vector<1x8xf32>
    %28 = vector.broadcast %27 : vector<1x8xf32> to vector<2x8xf32>
    %29 = arith.addf %26, %28 : vector<2x8xf32>
    %cst_38 = arith.constant 0.000000e+00 : f32
    %30 = vector.broadcast %cst_38 : f32 to vector<2x8xf32>
    %31 = arith.maximumf %29, %30 : vector<2x8xf32>
    %cst_39 = arith.constant dense<0.000000e+00> : vector<2x128xf32>
    %32 = tpu.matmul %31, %1, %cst_39 {dimension_numbers = #tpu.dot_dimension_numbers<[1], [0], [0], [1], [0, 0, 1, 1], [], []>} : vector<2x8xf32>, vector<8x128xf32>, vector<2x128xf32> -> vector<2x128xf32>
    %c0_40 = arith.constant 0 : index
    %c0_41 = arith.constant 0 : index
    %c0_42 = arith.constant 0 : index
    %33 = vector.load %arg0[%c0_40, %c0_41, %c0_42] : memref<2x16x64xbf16, #tpu.memory_space<vmem>>, vector<2x16x64xbf16>
    %c0_43 = arith.constant 0 : index
    %c1 = arith.constant 1 : index
    %c4 = arith.constant 4 : index
    %34 = vector.load %arg15[%c0_43, %c1, %c4] : memref<2x18x72xbf16, #tpu.memory_space<vmem>>, vector<2x16x64xbf16>
    tpu.vector_store %arg15[%c0_43, %c1, %c4], %33 {strides = array<i32>} : memref<2x18x72xbf16, #tpu.memory_space<vmem>>, vector<2x16x64xbf16>,
    %c0_44 = arith.constant 0 : index
    %c0_45 = arith.constant 0 : index
    %c0_46 = arith.constant 0 : index
    %35 = vector.load %arg15[%c0_44, %c0_45, %c0_46] : memref<2x18x72xbf16, #tpu.memory_space<vmem>>, vector<2x16x72xbf16>
    %c0_47 = arith.constant 0 : index
    %c0_48 = arith.constant 0 : index
    %c0_49 = arith.constant 0 : index
    %36 = vector.load %arg17[%c0_47, %c0_48, %c0_49] : memref<2x16x864xbf16, #tpu.memory_space<vmem>>, vector<2x16x72xbf16>
    tpu.vector_store %arg17[%c0_47, %c0_48, %c0_49], %35 {strides = array<i32>} : memref<2x16x864xbf16, #tpu.memory_space<vmem>>, vector<2x16x72xbf16>,
    %c0_50 = arith.constant 0 : index
    %c1_51 = arith.constant 1 : index
    %c0_52 = arith.constant 0 : index
    %37 = vector.load %arg15[%c0_50, %c1_51, %c0_52] : memref<2x18x72xbf16, #tpu.memory_space<vmem>>, vector<2x16x72xbf16>
    %c0_53 = arith.constant 0 : index
    %c0_54 = arith.constant 0 : index
    %c72 = arith.constant 72 : index
    %38 = vector.load %arg17[%c0_53, %c0_54, %c72] : memref<2x16x864xbf16, #tpu.memory_space<vmem>>, vector<2x16x72xbf16>
    tpu.vector_store %arg17[%c0_53, %c0_54, %c72], %37 {strides = array<i32>} : memref<2x16x864xbf16, #tpu.memory_space<vmem>>, vector<2x16x72xbf16>,
    %c0_55 = arith.constant 0 : index
    %c2 = arith.constant 2 : index
    %c0_56 = arith.constant 0 : index
    %39 = vector.load %arg15[%c0_55, %c2, %c0_56] : memref<2x18x72xbf16, #tpu.memory_space<vmem>>, vector<2x16x72xbf16>
    %c0_57 = arith.constant 0 : index
    %c0_58 = arith.constant 0 : index
    %c144 = arith.constant 144 : index
    %40 = vector.load %arg17[%c0_57, %c0_58, %c144] : memref<2x16x864xbf16, #tpu.memory_space<vmem>>, vector<2x16x72xbf16>
    tpu.vector_store %arg17[%c0_57, %c0_58, %c144], %39 {strides = array<i32>} : memref<2x16x864xbf16, #tpu.memory_space<vmem>>, vector<2x16x72xbf16>,
    %c0_59 = arith.constant 0 : index
    %c0_60 = arith.constant 0 : index
    %c0_61 = arith.constant 0 : index
    %41 = vector.load %arg17[%c0_59, %c0_60, %c0_61] : memref<2x16x864xbf16, #tpu.memory_space<vmem>>, vector<2x16x216xbf16>
    %42 = vector.shape_cast %41 : vector<2x16x216xbf16> to vector<32x216xbf16>
    %c0_62 = arith.constant 0 : index
    %c0_63 = arith.constant 0 : index
    %43 = vector.load %arg2[%c0_62, %c0_63] : memref<216x128xbf16, #tpu.memory_space<vmem>>, vector<216x128xbf16>
    %cst_64 = arith.constant dense<0.000000e+00> : vector<32x128xf32>
    %44 = tpu.matmul %42, %43, %cst_64 {dimension_numbers = #tpu.dot_dimension_numbers<[1], [0], [0], [1], [0, 0, 1, 1], [], []>} : vector<32x216xbf16>, vector<216x128xbf16>, vector<32x128xf32> -> vector<32x128xf32>
    %c0_65 = arith.constant 0 : index
    %c0_66 = arith.constant 0 : index
    %45 = vector.load %arg3[%c0_65, %c0_66] : memref<1x128xf32, #tpu.memory_space<vmem>>, vector<1x128xf32>
    %46 = vector.broadcast %45 : vector<1x128xf32> to vector<32x128xf32>
    %47 = arith.addf %44, %46 : vector<32x128xf32>
    %cst_67 = arith.constant 0.000000e+00 : f32
    %48 = vector.broadcast %cst_67 : f32 to vector<32x128xf32>
    %49 = arith.maximumf %47, %48 : vector<32x128xf32>
    %cst_68 = arith.constant dense<0.000000e+00> : vector<128xf32>
    %50 = vector.multi_reduction <add>, %49, %cst_68 [0] : vector<32x128xf32> to vector<128xf32>
    %51 = vector.shape_cast %50 : vector<128xf32> to vector<1x128xf32>
    %52 = arith.mulf %49, %49 : vector<32x128xf32>
    %cst_69 = arith.constant dense<0.000000e+00> : vector<128xf32>
    %53 = vector.multi_reduction <add>, %52, %cst_69 [0] : vector<32x128xf32> to vector<128xf32>
    %54 = vector.shape_cast %53 : vector<128xf32> to vector<1x128xf32>
    %cst_70 = arith.constant dense<0.000000e+00> : vector<1x8xf32>
    %55 = tpu.matmul %51, %0, %cst_70 {dimension_numbers = #tpu.dot_dimension_numbers<[1], [0], [0], [1], [0, 0, 1, 1], [], []>} : vector<1x128xf32>, vector<128x8xf32>, vector<1x8xf32> -> vector<1x8xf32>
    %cst_71 = arith.constant dense<0.000000e+00> : vector<1x8xf32>
    %56 = tpu.matmul %54, %0, %cst_71 {dimension_numbers = #tpu.dot_dimension_numbers<[1], [0], [0], [1], [0, 0, 1, 1], [], []>} : vector<1x128xf32>, vector<128x8xf32>, vector<1x8xf32> -> vector<1x8xf32>
    %cst_72 = arith.constant 5.120000e+02 : f32
    %57 = vector.broadcast %cst_72 : f32 to vector<1x8xf32>
    %58 = arith.divf %55, %57 : vector<1x8xf32>
    %cst_73 = arith.constant 5.120000e+02 : f32
    %59 = vector.broadcast %cst_73 : f32 to vector<1x8xf32>
    %60 = arith.divf %56, %59 : vector<1x8xf32>
    %61 = arith.mulf %58, %58 : vector<1x8xf32>
    %62 = arith.subf %60, %61 : vector<1x8xf32>
    %cst_74 = arith.constant 0.000000e+00 : f32
    %63 = vector.broadcast %cst_74 : f32 to vector<1x8xf32>
    %64 = arith.maximumf %62, %63 : vector<1x8xf32>
    %cst_75 = arith.constant 9.99999974E-6 : f32
    %65 = vector.broadcast %cst_75 : f32 to vector<1x8xf32>
    %66 = arith.addf %64, %65 : vector<1x8xf32>
    %67 = math.rsqrt %66 : vector<1x8xf32>
    %68 = arith.mulf %2, %67 : vector<1x8xf32>
    %69 = arith.mulf %58, %68 : vector<1x8xf32>
    %70 = arith.subf %3, %69 : vector<1x8xf32>
    %cst_76 = arith.constant dense<0.000000e+00> : vector<1x128xf32>
    %71 = tpu.matmul %68, %1, %cst_76 {dimension_numbers = #tpu.dot_dimension_numbers<[1], [0], [0], [1], [0, 0, 1, 1], [], []>} : vector<1x8xf32>, vector<8x128xf32>, vector<1x128xf32> -> vector<1x128xf32>
    %cst_77 = arith.constant dense<0.000000e+00> : vector<1x128xf32>
    %72 = tpu.matmul %70, %1, %cst_77 {dimension_numbers = #tpu.dot_dimension_numbers<[1], [0], [0], [1], [0, 0, 1, 1], [], []>} : vector<1x8xf32>, vector<8x128xf32>, vector<1x128xf32> -> vector<1x128xf32>
    %73 = vector.broadcast %71 : vector<1x128xf32> to vector<32x128xf32>
    %74 = arith.mulf %49, %73 : vector<32x128xf32>
    %75 = vector.broadcast %72 : vector<1x128xf32> to vector<32x128xf32>
    %76 = arith.addf %74, %75 : vector<32x128xf32>
    %77 = vector.shape_cast %76 : vector<32x128xf32> to vector<2x16x128xf32>
    %78 = vector.shape_cast %32 : vector<2x128xf32> to vector<2x1x128xf32>
    %79 = vector.broadcast %78 : vector<2x1x128xf32> to vector<2x16x128xf32>
    %80 = arith.addf %77, %79 : vector<2x16x128xf32>
    %81 = arith.truncf %80 : vector<2x16x128xf32> to vector<2x16x128xbf16>
    %c0_78 = arith.constant 0 : index
    %c1_79 = arith.constant 1 : index
    %c8 = arith.constant 8 : index
    %82 = vector.load %arg16[%c0_78, %c1_79, %c8] : memref<2x18x144xbf16, #tpu.memory_space<vmem>>, vector<2x16x128xbf16>
    tpu.vector_store %arg16[%c0_78, %c1_79, %c8], %81 {strides = array<i32>} : memref<2x18x144xbf16, #tpu.memory_space<vmem>>, vector<2x16x128xbf16>,
    %c0_80 = arith.constant 0 : index
    %c0_81 = arith.constant 0 : index
    %c0_82 = arith.constant 0 : index
    %83 = vector.load %arg16[%c0_80, %c0_81, %c0_82] : memref<2x18x144xbf16, #tpu.memory_space<vmem>>, vector<2x16x144xbf16>
    %c0_83 = arith.constant 0 : index
    %c0_84 = arith.constant 0 : index
    %c0_85 = arith.constant 0 : index
    %84 = vector.load %arg17[%c0_83, %c0_84, %c0_85] : memref<2x16x864xbf16, #tpu.memory_space<vmem>>, vector<2x16x144xbf16>
    tpu.vector_store %arg17[%c0_83, %c0_84, %c0_85], %83 {strides = array<i32>} : memref<2x16x864xbf16, #tpu.memory_space<vmem>>, vector<2x16x144xbf16>,
    %c0_86 = arith.constant 0 : index
    %c1_87 = arith.constant 1 : index
    %c0_88 = arith.constant 0 : index
    %85 = vector.load %arg16[%c0_86, %c1_87, %c0_88] : memref<2x18x144xbf16, #tpu.memory_space<vmem>>, vector<2x16x144xbf16>
    %c0_89 = arith.constant 0 : index
    %c0_90 = arith.constant 0 : index
    %c144_91 = arith.constant 144 : index
    %86 = vector.load %arg17[%c0_89, %c0_90, %c144_91] : memref<2x16x864xbf16, #tpu.memory_space<vmem>>, vector<2x16x144xbf16>
    tpu.vector_store %arg17[%c0_89, %c0_90, %c144_91], %85 {strides = array<i32>} : memref<2x16x864xbf16, #tpu.memory_space<vmem>>, vector<2x16x144xbf16>,
    %c0_92 = arith.constant 0 : index
    %c2_93 = arith.constant 2 : index
    %c0_94 = arith.constant 0 : index
    %87 = vector.load %arg16[%c0_92, %c2_93, %c0_94] : memref<2x18x144xbf16, #tpu.memory_space<vmem>>, vector<2x16x144xbf16>
    %c0_95 = arith.constant 0 : index
    %c0_96 = arith.constant 0 : index
    %c288 = arith.constant 288 : index
    %88 = vector.load %arg17[%c0_95, %c0_96, %c288] : memref<2x16x864xbf16, #tpu.memory_space<vmem>>, vector<2x16x144xbf16>
    tpu.vector_store %arg17[%c0_95, %c0_96, %c288], %87 {strides = array<i32>} : memref<2x16x864xbf16, #tpu.memory_space<vmem>>, vector<2x16x144xbf16>,
    %c0_97 = arith.constant 0 : index
    %c0_98 = arith.constant 0 : index
    %c0_99 = arith.constant 0 : index
    %89 = vector.load %arg17[%c0_97, %c0_98, %c0_99] : memref<2x16x864xbf16, #tpu.memory_space<vmem>>, vector<2x16x432xbf16>
    %90 = vector.shape_cast %89 : vector<2x16x432xbf16> to vector<32x432xbf16>
    %c0_100 = arith.constant 0 : index
    %c0_101 = arith.constant 0 : index
    %91 = vector.load %arg4[%c0_100, %c0_101] : memref<432x128xbf16, #tpu.memory_space<vmem>>, vector<432x128xbf16>
    %cst_102 = arith.constant dense<0.000000e+00> : vector<32x128xf32>
    %92 = tpu.matmul %90, %91, %cst_102 {dimension_numbers = #tpu.dot_dimension_numbers<[1], [0], [0], [1], [0, 0, 1, 1], [], []>} : vector<32x432xbf16>, vector<432x128xbf16>, vector<32x128xf32> -> vector<32x128xf32>
    %c0_103 = arith.constant 0 : index
    %c0_104 = arith.constant 0 : index
    %93 = vector.load %arg5[%c0_103, %c0_104] : memref<1x128xf32, #tpu.memory_space<vmem>>, vector<1x128xf32>
    %94 = vector.broadcast %93 : vector<1x128xf32> to vector<32x128xf32>
    %95 = arith.addf %92, %94 : vector<32x128xf32>
    %cst_105 = arith.constant 0.000000e+00 : f32
    %96 = vector.broadcast %cst_105 : f32 to vector<32x128xf32>
    %97 = arith.maximumf %95, %96 : vector<32x128xf32>
    %cst_106 = arith.constant dense<0.000000e+00> : vector<128xf32>
    %98 = vector.multi_reduction <add>, %97, %cst_106 [0] : vector<32x128xf32> to vector<128xf32>
    %99 = vector.shape_cast %98 : vector<128xf32> to vector<1x128xf32>
    %100 = arith.mulf %97, %97 : vector<32x128xf32>
    %cst_107 = arith.constant dense<0.000000e+00> : vector<128xf32>
    %101 = vector.multi_reduction <add>, %100, %cst_107 [0] : vector<32x128xf32> to vector<128xf32>
    %102 = vector.shape_cast %101 : vector<128xf32> to vector<1x128xf32>
    %cst_108 = arith.constant dense<0.000000e+00> : vector<1x8xf32>
    %103 = tpu.matmul %99, %0, %cst_108 {dimension_numbers = #tpu.dot_dimension_numbers<[1], [0], [0], [1], [0, 0, 1, 1], [], []>} : vector<1x128xf32>, vector<128x8xf32>, vector<1x8xf32> -> vector<1x8xf32>
    %cst_109 = arith.constant dense<0.000000e+00> : vector<1x8xf32>
    %104 = tpu.matmul %102, %0, %cst_109 {dimension_numbers = #tpu.dot_dimension_numbers<[1], [0], [0], [1], [0, 0, 1, 1], [], []>} : vector<1x128xf32>, vector<128x8xf32>, vector<1x8xf32> -> vector<1x8xf32>
    %cst_110 = arith.constant 5.120000e+02 : f32
    %105 = vector.broadcast %cst_110 : f32 to vector<1x8xf32>
    %106 = arith.divf %103, %105 : vector<1x8xf32>
    %cst_111 = arith.constant 5.120000e+02 : f32
    %107 = vector.broadcast %cst_111 : f32 to vector<1x8xf32>
    %108 = arith.divf %104, %107 : vector<1x8xf32>
    %109 = arith.mulf %106, %106 : vector<1x8xf32>
    %110 = arith.subf %108, %109 : vector<1x8xf32>
    %cst_112 = arith.constant 0.000000e+00 : f32
    %111 = vector.broadcast %cst_112 : f32 to vector<1x8xf32>
    %112 = arith.maximumf %110, %111 : vector<1x8xf32>
    %cst_113 = arith.constant 9.99999974E-6 : f32
    %113 = vector.broadcast %cst_113 : f32 to vector<1x8xf32>
    %114 = arith.addf %112, %113 : vector<1x8xf32>
    %115 = math.rsqrt %114 : vector<1x8xf32>
    %116 = arith.mulf %2, %115 : vector<1x8xf32>
    %117 = arith.mulf %106, %116 : vector<1x8xf32>
    %118 = arith.subf %3, %117 : vector<1x8xf32>
    %cst_114 = arith.constant dense<0.000000e+00> : vector<1x128xf32>
    %119 = tpu.matmul %116, %1, %cst_114 {dimension_numbers = #tpu.dot_dimension_numbers<[1], [0], [0], [1], [0, 0, 1, 1], [], []>} : vector<1x8xf32>, vector<8x128xf32>, vector<1x128xf32> -> vector<1x128xf32>
    %cst_115 = arith.constant dense<0.000000e+00> : vector<1x128xf32>
    %120 = tpu.matmul %118, %1, %cst_115 {dimension_numbers = #tpu.dot_dimension_numbers<[1], [0], [0], [1], [0, 0, 1, 1], [], []>} : vector<1x8xf32>, vector<8x128xf32>, vector<1x128xf32> -> vector<1x128xf32>
    %121 = vector.broadcast %119 : vector<1x128xf32> to vector<32x128xf32>
    %122 = arith.mulf %97, %121 : vector<32x128xf32>
    %123 = vector.broadcast %120 : vector<1x128xf32> to vector<32x128xf32>
    %124 = arith.addf %122, %123 : vector<32x128xf32>
    %125 = vector.shape_cast %124 : vector<32x128xf32> to vector<2x16x128xf32>
    %126 = arith.truncf %125 : vector<2x16x128xf32> to vector<2x16x128xbf16>
    %c0_116 = arith.constant 0 : index
    %c1_117 = arith.constant 1 : index
    %c8_118 = arith.constant 8 : index
    %127 = vector.load %arg16[%c0_116, %c1_117, %c8_118] : memref<2x18x144xbf16, #tpu.memory_space<vmem>>, vector<2x16x128xbf16>
    tpu.vector_store %arg16[%c0_116, %c1_117, %c8_118], %126 {strides = array<i32>} : memref<2x18x144xbf16, #tpu.memory_space<vmem>>, vector<2x16x128xbf16>,
    %c0_119 = arith.constant 0 : index
    %c0_120 = arith.constant 0 : index
    %c0_121 = arith.constant 0 : index
    %128 = vector.load %arg16[%c0_119, %c0_120, %c0_121] : memref<2x18x144xbf16, #tpu.memory_space<vmem>>, vector<2x1x144xbf16>
    %129 = vector.shape_cast %128 : vector<2x1x144xbf16> to vector<2x144xbf16>
    %c0_122 = arith.constant 0 : index
    %c0_123 = arith.constant 0 : index
    %c0_124 = arith.constant 0 : index
    %130 = vector.load %arg17[%c0_122, %c0_123, %c0_124] : memref<2x16x864xbf16, #tpu.memory_space<vmem>>, vector<2x1x144xbf16>
    %131 = vector.shape_cast %130 : vector<2x1x144xbf16> to vector<2x144xbf16>
    %132 = vector.shape_cast %129 : vector<2x144xbf16> to vector<2x1x144xbf16>
    tpu.vector_store %arg17[%c0_122, %c0_123, %c0_124], %132 {strides = array<i32>} : memref<2x16x864xbf16, #tpu.memory_space<vmem>>, vector<2x1x144xbf16>,
    %c0_125 = arith.constant 0 : index
    %c1_126 = arith.constant 1 : index
    %c0_127 = arith.constant 0 : index
    %133 = vector.load %arg16[%c0_125, %c1_126, %c0_127] : memref<2x18x144xbf16, #tpu.memory_space<vmem>>, vector<2x1x144xbf16>
    %134 = vector.shape_cast %133 : vector<2x1x144xbf16> to vector<2x144xbf16>
    %c0_128 = arith.constant 0 : index
    %c0_129 = arith.constant 0 : index
    %c144_130 = arith.constant 144 : index
    %135 = vector.load %arg17[%c0_128, %c0_129, %c144_130] : memref<2x16x864xbf16, #tpu.memory_space<vmem>>, vector<2x1x144xbf16>
    %136 = vector.shape_cast %135 : vector<2x1x144xbf16> to vector<2x144xbf16>
    %137 = vector.shape_cast %134 : vector<2x144xbf16> to vector<2x1x144xbf16>
    tpu.vector_store %arg17[%c0_128, %c0_129, %c144_130], %137 {strides = array<i32>} : memref<2x16x864xbf16, #tpu.memory_space<vmem>>, vector<2x1x144xbf16>,
    %c0_131 = arith.constant 0 : index
    %c2_132 = arith.constant 2 : index
    %c0_133 = arith.constant 0 : index
    %138 = vector.load %arg16[%c0_131, %c2_132, %c0_133] : memref<2x18x144xbf16, #tpu.memory_space<vmem>>, vector<2x1x144xbf16>
    %139 = vector.shape_cast %138 : vector<2x1x144xbf16> to vector<2x144xbf16>
    %c0_134 = arith.constant 0 : index
    %c0_135 = arith.constant 0 : index
    %c288_136 = arith.constant 288 : index
    %140 = vector.load %arg17[%c0_134, %c0_135, %c288_136] : memref<2x16x864xbf16, #tpu.memory_space<vmem>>, vector<2x1x144xbf16>
    %141 = vector.shape_cast %140 : vector<2x1x144xbf16> to vector<2x144xbf16>
    %142 = vector.shape_cast %139 : vector<2x144xbf16> to vector<2x1x144xbf16>
    tpu.vector_store %arg17[%c0_134, %c0_135, %c288_136], %142 {strides = array<i32>} : memref<2x16x864xbf16, #tpu.memory_space<vmem>>, vector<2x1x144xbf16>,
    %c0_137 = arith.constant 0 : index
    %c3 = arith.constant 3 : index
    %c0_138 = arith.constant 0 : index
    %143 = vector.load %arg16[%c0_137, %c3, %c0_138] : memref<2x18x144xbf16, #tpu.memory_space<vmem>>, vector<2x1x144xbf16>
    %144 = vector.shape_cast %143 : vector<2x1x144xbf16> to vector<2x144xbf16>
    %c0_139 = arith.constant 0 : index
    %c0_140 = arith.constant 0 : index
    %c432 = arith.constant 432 : index
    %145 = vector.load %arg17[%c0_139, %c0_140, %c432] : memref<2x16x864xbf16, #tpu.memory_space<vmem>>, vector<2x1x144xbf16>
    %146 = vector.shape_cast %145 : vector<2x1x144xbf16> to vector<2x144xbf16>
    %147 = vector.shape_cast %144 : vector<2x144xbf16> to vector<2x1x144xbf16>
    tpu.vector_store %arg17[%c0_139, %c0_140, %c432], %147 {strides = array<i32>} : memref<2x16x864xbf16, #tpu.memory_space<vmem>>, vector<2x1x144xbf16>,
    %c0_141 = arith.constant 0 : index
    %c4_142 = arith.constant 4 : index
    %c0_143 = arith.constant 0 : index
    %148 = vector.load %arg16[%c0_141, %c4_142, %c0_143] : memref<2x18x144xbf16, #tpu.memory_space<vmem>>, vector<2x1x144xbf16>
    %149 = vector.shape_cast %148 : vector<2x1x144xbf16> to vector<2x144xbf16>
    %c0_144 = arith.constant 0 : index
    %c0_145 = arith.constant 0 : index
    %c576 = arith.constant 576 : index
    %150 = vector.load %arg17[%c0_144, %c0_145, %c576] : memref<2x16x864xbf16, #tpu.memory_space<vmem>>, vector<2x1x144xbf16>
    %151 = vector.shape_cast %150 : vector<2x1x144xbf16> to vector<2x144xbf16>
    %152 = vector.shape_cast %149 : vector<2x144xbf16> to vector<2x1x144xbf16>
    tpu.vector_store %arg17[%c0_144, %c0_145, %c576], %152 {strides = array<i32>} : memref<2x16x864xbf16, #tpu.memory_space<vmem>>, vector<2x1x144xbf16>,
    %c0_146 = arith.constant 0 : index
    %c5 = arith.constant 5 : index
    %c0_147 = arith.constant 0 : index
    %153 = vector.load %arg16[%c0_146, %c5, %c0_147] : memref<2x18x144xbf16, #tpu.memory_space<vmem>>, vector<2x1x144xbf16>
    %154 = vector.shape_cast %153 : vector<2x1x144xbf16> to vector<2x144xbf16>
    %c0_148 = arith.constant 0 : index
    %c0_149 = arith.constant 0 : index
    %c720 = arith.constant 720 : index
    %155 = vector.load %arg17[%c0_148, %c0_149, %c720] : memref<2x16x864xbf16, #tpu.memory_space<vmem>>, vector<2x1x144xbf16>
    %156 = vector.shape_cast %155 : vector<2x1x144xbf16> to vector<2x144xbf16>
    %157 = vector.shape_cast %154 : vector<2x144xbf16> to vector<2x1x144xbf16>
    tpu.vector_store %arg17[%c0_148, %c0_149, %c720], %157 {strides = array<i32>} : memref<2x16x864xbf16, #tpu.memory_space<vmem>>, vector<2x1x144xbf16>,
    %c0_150 = arith.constant 0 : index
    %c4_151 = arith.constant 4 : index
    %c0_152 = arith.constant 0 : index
    %158 = vector.load %arg16[%c0_150, %c4_151, %c0_152] : memref<2x18x144xbf16, #tpu.memory_space<vmem>>, vector<2x1x144xbf16>
    %159 = vector.shape_cast %158 : vector<2x1x144xbf16> to vector<2x144xbf16>
    %c0_153 = arith.constant 0 : index
    %c1_154 = arith.constant 1 : index
    %c0_155 = arith.constant 0 : index
    %160 = vector.load %arg17[%c0_153, %c1_154, %c0_155] : memref<2x16x864xbf16, #tpu.memory_space<vmem>>, vector<2x1x144xbf16>
    %161 = vector.shape_cast %160 : vector<2x1x144xbf16> to vector<2x144xbf16>
    %162 = vector.shape_cast %159 : vector<2x144xbf16> to vector<2x1x144xbf16>
    tpu.vector_store %arg17[%c0_153, %c1_154, %c0_155], %162 {strides = array<i32>} : memref<2x16x864xbf16, #tpu.memory_space<vmem>>, vector<2x1x144xbf16>,
    %c0_156 = arith.constant 0 : index
    %c5_157 = arith.constant 5 : index
    %c0_158 = arith.constant 0 : index
    %163 = vector.load %arg16[%c0_156, %c5_157, %c0_158] : memref<2x18x144xbf16, #tpu.memory_space<vmem>>, vector<2x1x144xbf16>
    %164 = vector.shape_cast %163 : vector<2x1x144xbf16> to vector<2x144xbf16>
    %c0_159 = arith.constant 0 : index
    %c1_160 = arith.constant 1 : index
    %c144_161 = arith.constant 144 : index
    %165 = vector.load %arg17[%c0_159, %c1_160, %c144_161] : memref<2x16x864xbf16, #tpu.memory_space<vmem>>, vector<2x1x144xbf16>
    %166 = vector.shape_cast %165 : vector<2x1x144xbf16> to vector<2x144xbf16>
    %167 = vector.shape_cast %164 : vector<2x144xbf16> to vector<2x1x144xbf16>
    tpu.vector_store %arg17[%c0_159, %c1_160, %c144_161], %167 {strides = array<i32>} : memref<2x16x864xbf16, #tpu.memory_space<vmem>>, vector<2x1x144xbf16>,
    %c0_162 = arith.constant 0 : index
    %c6 = arith.constant 6 : index
    %c0_163 = arith.constant 0 : index
    %168 = vector.load %arg16[%c0_162, %c6, %c0_163] : memref<2x18x144xbf16, #tpu.memory_space<vmem>>, vector<2x1x144xbf16>
    %169 = vector.shape_cast %168 : vector<2x1x144xbf16> to vector<2x144xbf16>
    %c0_164 = arith.constant 0 : index
    %c1_165 = arith.constant 1 : index
    %c288_166 = arith.constant 288 : index
    %170 = vector.load %arg17[%c0_164, %c1_165, %c288_166] : memref<2x16x864xbf16, #tpu.memory_space<vmem>>, vector<2x1x144xbf16>
    %171 = vector.shape_cast %170 : vector<2x1x144xbf16> to vector<2x144xbf16>
    %172 = vector.shape_cast %169 : vector<2x144xbf16> to vector<2x1x144xbf16>
    tpu.vector_store %arg17[%c0_164, %c1_165, %c288_166], %172 {strides = array<i32>} : memref<2x16x864xbf16, #tpu.memory_space<vmem>>, vector<2x1x144xbf16>,
    %c0_167 = arith.constant 0 : index
    %c7 = arith.constant 7 : index
    %c0_168 = arith.constant 0 : index
    %173 = vector.load %arg16[%c0_167, %c7, %c0_168] : memref<2x18x144xbf16, #tpu.memory_space<vmem>>, vector<2x1x144xbf16>
    %174 = vector.shape_cast %173 : vector<2x1x144xbf16> to vector<2x144xbf16>
    %c0_169 = arith.constant 0 : index
    %c1_170 = arith.constant 1 : index
    %c432_171 = arith.constant 432 : index
    %175 = vector.load %arg17[%c0_169, %c1_170, %c432_171] : memref<2x16x864xbf16, #tpu.memory_space<vmem>>, vector<2x1x144xbf16>
    %176 = vector.shape_cast %175 : vector<2x1x144xbf16> to vector<2x144xbf16>
    %177 = vector.shape_cast %174 : vector<2x144xbf16> to vector<2x1x144xbf16>
    tpu.vector_store %arg17[%c0_169, %c1_170, %c432_171], %177 {strides = array<i32>} : memref<2x16x864xbf16, #tpu.memory_space<vmem>>, vector<2x1x144xbf16>,
    %c0_172 = arith.constant 0 : index
    %c8_173 = arith.constant 8 : index
    %c0_174 = arith.constant 0 : index
    %178 = vector.load %arg16[%c0_172, %c8_173, %c0_174] : memref<2x18x144xbf16, #tpu.memory_space<vmem>>, vector<2x1x144xbf16>
    %179 = vector.shape_cast %178 : vector<2x1x144xbf16> to vector<2x144xbf16>
    %c0_175 = arith.constant 0 : index
    %c1_176 = arith.constant 1 : index
    %c576_177 = arith.constant 576 : index
    %180 = vector.load %arg17[%c0_175, %c1_176, %c576_177] : memref<2x16x864xbf16, #tpu.memory_space<vmem>>, vector<2x1x144xbf16>
    %181 = vector.shape_cast %180 : vector<2x1x144xbf16> to vector<2x144xbf16>
    %182 = vector.shape_cast %179 : vector<2x144xbf16> to vector<2x1x144xbf16>
    tpu.vector_store %arg17[%c0_175, %c1_176, %c576_177], %182 {strides = array<i32>} : memref<2x16x864xbf16, #tpu.memory_space<vmem>>, vector<2x1x144xbf16>,
    %c0_178 = arith.constant 0 : index
    %c9 = arith.constant 9 : index
    %c0_179 = arith.constant 0 : index
    %183 = vector.load %arg16[%c0_178, %c9, %c0_179] : memref<2x18x144xbf16, #tpu.memory_space<vmem>>, vector<2x1x144xbf16>
    %184 = vector.shape_cast %183 : vector<2x1x144xbf16> to vector<2x144xbf16>
    %c0_180 = arith.constant 0 : index
    %c1_181 = arith.constant 1 : index
    %c720_182 = arith.constant 720 : index
    %185 = vector.load %arg17[%c0_180, %c1_181, %c720_182] : memref<2x16x864xbf16, #tpu.memory_space<vmem>>, vector<2x1x144xbf16>
    %186 = vector.shape_cast %185 : vector<2x1x144xbf16> to vector<2x144xbf16>
    %187 = vector.shape_cast %184 : vector<2x144xbf16> to vector<2x1x144xbf16>
    tpu.vector_store %arg17[%c0_180, %c1_181, %c720_182], %187 {strides = array<i32>} : memref<2x16x864xbf16, #tpu.memory_space<vmem>>, vector<2x1x144xbf16>,
    %c0_183 = arith.constant 0 : index
    %c8_184 = arith.constant 8 : index
    %c0_185 = arith.constant 0 : index
    %188 = vector.load %arg16[%c0_183, %c8_184, %c0_185] : memref<2x18x144xbf16, #tpu.memory_space<vmem>>, vector<2x1x144xbf16>
    %189 = vector.shape_cast %188 : vector<2x1x144xbf16> to vector<2x144xbf16>
    %c0_186 = arith.constant 0 : index
    %c2_187 = arith.constant 2 : index
    %c0_188 = arith.constant 0 : index
    %190 = vector.load %arg17[%c0_186, %c2_187, %c0_188] : memref<2x16x864xbf16, #tpu.memory_space<vmem>>, vector<2x1x144xbf16>
    %191 = vector.shape_cast %190 : vector<2x1x144xbf16> to vector<2x144xbf16>
    %192 = vector.shape_cast %189 : vector<2x144xbf16> to vector<2x1x144xbf16>
    tpu.vector_store %arg17[%c0_186, %c2_187, %c0_188], %192 {strides = array<i32>} : memref<2x16x864xbf16, #tpu.memory_space<vmem>>, vector<2x1x144xbf16>,
    %c0_189 = arith.constant 0 : index
    %c9_190 = arith.constant 9 : index
    %c0_191 = arith.constant 0 : index
    %193 = vector.load %arg16[%c0_189, %c9_190, %c0_191] : memref<2x18x144xbf16, #tpu.memory_space<vmem>>, vector<2x1x144xbf16>
    %194 = vector.shape_cast %193 : vector<2x1x144xbf16> to vector<2x144xbf16>
    %c0_192 = arith.constant 0 : index
    %c2_193 = arith.constant 2 : index
    %c144_194 = arith.constant 144 : index
    %195 = vector.load %arg17[%c0_192, %c2_193, %c144_194] : memref<2x16x864xbf16, #tpu.memory_space<vmem>>, vector<2x1x144xbf16>
    %196 = vector.shape_cast %195 : vector<2x1x144xbf16> to vector<2x144xbf16>
    %197 = vector.shape_cast %194 : vector<2x144xbf16> to vector<2x1x144xbf16>
    tpu.vector_store %arg17[%c0_192, %c2_193, %c144_194], %197 {strides = array<i32>} : memref<2x16x864xbf16, #tpu.memory_space<vmem>>, vector<2x1x144xbf16>,
    %c0_195 = arith.constant 0 : index
    %c10 = arith.constant 10 : index
    %c0_196 = arith.constant 0 : index
    %198 = vector.load %arg16[%c0_195, %c10, %c0_196] : memref<2x18x144xbf16, #tpu.memory_space<vmem>>, vector<2x1x144xbf16>
    %199 = vector.shape_cast %198 : vector<2x1x144xbf16> to vector<2x144xbf16>
    %c0_197 = arith.constant 0 : index
    %c2_198 = arith.constant 2 : index
    %c288_199 = arith.constant 288 : index
    %200 = vector.load %arg17[%c0_197, %c2_198, %c288_199] : memref<2x16x864xbf16, #tpu.memory_space<vmem>>, vector<2x1x144xbf16>
    %201 = vector.shape_cast %200 : vector<2x1x144xbf16> to vector<2x144xbf16>
    %202 = vector.shape_cast %199 : vector<2x144xbf16> to vector<2x1x144xbf16>
    tpu.vector_store %arg17[%c0_197, %c2_198, %c288_199], %202 {strides = array<i32>} : memref<2x16x864xbf16, #tpu.memory_space<vmem>>, vector<2x1x144xbf16>,
    %c0_200 = arith.constant 0 : index
    %c11 = arith.constant 11 : index
    %c0_201 = arith.constant 0 : index
    %203 = vector.load %arg16[%c0_200, %c11, %c0_201] : memref<2x18x144xbf16, #tpu.memory_space<vmem>>, vector<2x1x144xbf16>
    %204 = vector.shape_cast %203 : vector<2x1x144xbf16> to vector<2x144xbf16>
    %c0_202 = arith.constant 0 : index
    %c2_203 = arith.constant 2 : index
    %c432_204 = arith.constant 432 : index
    %205 = vector.load %arg17[%c0_202, %c2_203, %c432_204] : memref<2x16x864xbf16, #tpu.memory_space<vmem>>, vector<2x1x144xbf16>
    %206 = vector.shape_cast %205 : vector<2x1x144xbf16> to vector<2x144xbf16>
    %207 = vector.shape_cast %204 : vector<2x144xbf16> to vector<2x1x144xbf16>
    tpu.vector_store %arg17[%c0_202, %c2_203, %c432_204], %207 {strides = array<i32>} : memref<2x16x864xbf16, #tpu.memory_space<vmem>>, vector<2x1x144xbf16>,
    %c0_205 = arith.constant 0 : index
    %c12 = arith.constant 12 : index
    %c0_206 = arith.constant 0 : index
    %208 = vector.load %arg16[%c0_205, %c12, %c0_206] : memref<2x18x144xbf16, #tpu.memory_space<vmem>>, vector<2x1x144xbf16>
    %209 = vector.shape_cast %208 : vector<2x1x144xbf16> to vector<2x144xbf16>
    %c0_207 = arith.constant 0 : index
    %c2_208 = arith.constant 2 : index
    %c576_209 = arith.constant 576 : index
    %210 = vector.load %arg17[%c0_207, %c2_208, %c576_209] : memref<2x16x864xbf16, #tpu.memory_space<vmem>>, vector<2x1x144xbf16>
    %211 = vector.shape_cast %210 : vector<2x1x144xbf16> to vector<2x144xbf16>
    %212 = vector.shape_cast %209 : vector<2x144xbf16> to vector<2x1x144xbf16>
    tpu.vector_store %arg17[%c0_207, %c2_208, %c576_209], %212 {strides = array<i32>} : memref<2x16x864xbf16, #tpu.memory_space<vmem>>, vector<2x1x144xbf16>,
    %c0_210 = arith.constant 0 : index
    %c13 = arith.constant 13 : index
    %c0_211 = arith.constant 0 : index
    %213 = vector.load %arg16[%c0_210, %c13, %c0_211] : memref<2x18x144xbf16, #tpu.memory_space<vmem>>, vector<2x1x144xbf16>
    %214 = vector.shape_cast %213 : vector<2x1x144xbf16> to vector<2x144xbf16>
    %c0_212 = arith.constant 0 : index
    %c2_213 = arith.constant 2 : index
    %c720_214 = arith.constant 720 : index
    %215 = vector.load %arg17[%c0_212, %c2_213, %c720_214] : memref<2x16x864xbf16, #tpu.memory_space<vmem>>, vector<2x1x144xbf16>
    %216 = vector.shape_cast %215 : vector<2x1x144xbf16> to vector<2x144xbf16>
    %217 = vector.shape_cast %214 : vector<2x144xbf16> to vector<2x1x144xbf16>
    tpu.vector_store %arg17[%c0_212, %c2_213, %c720_214], %217 {strides = array<i32>} : memref<2x16x864xbf16, #tpu.memory_space<vmem>>, vector<2x1x144xbf16>,
    %c0_215 = arith.constant 0 : index
    %c12_216 = arith.constant 12 : index
    %c0_217 = arith.constant 0 : index
    %218 = vector.load %arg16[%c0_215, %c12_216, %c0_217] : memref<2x18x144xbf16, #tpu.memory_space<vmem>>, vector<2x1x144xbf16>
    %219 = vector.shape_cast %218 : vector<2x1x144xbf16> to vector<2x144xbf16>
    %c0_218 = arith.constant 0 : index
    %c3_219 = arith.constant 3 : index
    %c0_220 = arith.constant 0 : index
    %220 = vector.load %arg17[%c0_218, %c3_219, %c0_220] : memref<2x16x864xbf16, #tpu.memory_space<vmem>>, vector<2x1x144xbf16>
    %221 = vector.shape_cast %220 : vector<2x1x144xbf16> to vector<2x144xbf16>
    %222 = vector.shape_cast %219 : vector<2x144xbf16> to vector<2x1x144xbf16>
    tpu.vector_store %arg17[%c0_218, %c3_219, %c0_220], %222 {strides = array<i32>} : memref<2x16x864xbf16, #tpu.memory_space<vmem>>, vector<2x1x144xbf16>,
    %c0_221 = arith.constant 0 : index
    %c13_222 = arith.constant 13 : index
    %c0_223 = arith.constant 0 : index
    %223 = vector.load %arg16[%c0_221, %c13_222, %c0_223] : memref<2x18x144xbf16, #tpu.memory_space<vmem>>, vector<2x1x144xbf16>
    %224 = vector.shape_cast %223 : vector<2x1x144xbf16> to vector<2x144xbf16>
    %c0_224 = arith.constant 0 : index
    %c3_225 = arith.constant 3 : index
    %c144_226 = arith.constant 144 : index
    %225 = vector.load %arg17[%c0_224, %c3_225, %c144_226] : memref<2x16x864xbf16, #tpu.memory_space<vmem>>, vector<2x1x144xbf16>
    %226 = vector.shape_cast %225 : vector<2x1x144xbf16> to vector<2x144xbf16>
    %227 = vector.shape_cast %224 : vector<2x144xbf16> to vector<2x1x144xbf16>
    tpu.vector_store %arg17[%c0_224, %c3_225, %c144_226], %227 {strides = array<i32>} : memref<2x16x864xbf16, #tpu.memory_space<vmem>>, vector<2x1x144xbf16>,
    %c0_227 = arith.constant 0 : index
    %c14 = arith.constant 14 : index
    %c0_228 = arith.constant 0 : index
    %228 = vector.load %arg16[%c0_227, %c14, %c0_228] : memref<2x18x144xbf16, #tpu.memory_space<vmem>>, vector<2x1x144xbf16>
    %229 = vector.shape_cast %228 : vector<2x1x144xbf16> to vector<2x144xbf16>
    %c0_229 = arith.constant 0 : index
    %c3_230 = arith.constant 3 : index
    %c288_231 = arith.constant 288 : index
    %230 = vector.load %arg17[%c0_229, %c3_230, %c288_231] : memref<2x16x864xbf16, #tpu.memory_space<vmem>>, vector<2x1x144xbf16>
    %231 = vector.shape_cast %230 : vector<2x1x144xbf16> to vector<2x144xbf16>
    %232 = vector.shape_cast %229 : vector<2x144xbf16> to vector<2x1x144xbf16>
    tpu.vector_store %arg17[%c0_229, %c3_230, %c288_231], %232 {strides = array<i32>} : memref<2x16x864xbf16, #tpu.memory_space<vmem>>, vector<2x1x144xbf16>,
    %c0_232 = arith.constant 0 : index
    %c15 = arith.constant 15 : index
    %c0_233 = arith.constant 0 : index
    %233 = vector.load %arg16[%c0_232, %c15, %c0_233] : memref<2x18x144xbf16, #tpu.memory_space<vmem>>, vector<2x1x144xbf16>
    %234 = vector.shape_cast %233 : vector<2x1x144xbf16> to vector<2x144xbf16>
    %c0_234 = arith.constant 0 : index
    %c3_235 = arith.constant 3 : index
    %c432_236 = arith.constant 432 : index
    %235 = vector.load %arg17[%c0_234, %c3_235, %c432_236] : memref<2x16x864xbf16, #tpu.memory_space<vmem>>, vector<2x1x144xbf16>
    %236 = vector.shape_cast %235 : vector<2x1x144xbf16> to vector<2x144xbf16>
    %237 = vector.shape_cast %234 : vector<2x144xbf16> to vector<2x1x144xbf16>
    tpu.vector_store %arg17[%c0_234, %c3_235, %c432_236], %237 {strides = array<i32>} : memref<2x16x864xbf16, #tpu.memory_space<vmem>>, vector<2x1x144xbf16>,
    %c0_237 = arith.constant 0 : index
    %c16 = arith.constant 16 : index
    %c0_238 = arith.constant 0 : index
    %238 = vector.load %arg16[%c0_237, %c16, %c0_238] : memref<2x18x144xbf16, #tpu.memory_space<vmem>>, vector<2x1x144xbf16>
    %239 = vector.shape_cast %238 : vector<2x1x144xbf16> to vector<2x144xbf16>
    %c0_239 = arith.constant 0 : index
    %c3_240 = arith.constant 3 : index
    %c576_241 = arith.constant 576 : index
    %240 = vector.load %arg17[%c0_239, %c3_240, %c576_241] : memref<2x16x864xbf16, #tpu.memory_space<vmem>>, vector<2x1x144xbf16>
    %241 = vector.shape_cast %240 : vector<2x1x144xbf16> to vector<2x144xbf16>
    %242 = vector.shape_cast %239 : vector<2x144xbf16> to vector<2x1x144xbf16>
    tpu.vector_store %arg17[%c0_239, %c3_240, %c576_241], %242 {strides = array<i32>} : memref<2x16x864xbf16, #tpu.memory_space<vmem>>, vector<2x1x144xbf16>,
    %c0_242 = arith.constant 0 : index
    %c17_243 = arith.constant 17 : index
    %c0_244 = arith.constant 0 : index
    %243 = vector.load %arg16[%c0_242, %c17_243, %c0_244] : memref<2x18x144xbf16, #tpu.memory_space<vmem>>, vector<2x1x144xbf16>
    %244 = vector.shape_cast %243 : vector<2x1x144xbf16> to vector<2x144xbf16>
    %c0_245 = arith.constant 0 : index
    %c3_246 = arith.constant 3 : index
    %c720_247 = arith.constant 720 : index
    %245 = vector.load %arg17[%c0_245, %c3_246, %c720_247] : memref<2x16x864xbf16, #tpu.memory_space<vmem>>, vector<2x1x144xbf16>
    %246 = vector.shape_cast %245 : vector<2x1x144xbf16> to vector<2x144xbf16>
    %247 = vector.shape_cast %244 : vector<2x144xbf16> to vector<2x1x144xbf16>
    tpu.vector_store %arg17[%c0_245, %c3_246, %c720_247], %247 {strides = array<i32>} : memref<2x16x864xbf16, #tpu.memory_space<vmem>>, vector<2x1x144xbf16>,
    %c0_248 = arith.constant 0 : index
    %c0_249 = arith.constant 0 : index
    %c0_250 = arith.constant 0 : index
    %248 = vector.load %arg17[%c0_248, %c0_249, %c0_250] : memref<2x16x864xbf16, #tpu.memory_space<vmem>>, vector<2x4x864xbf16>
    %249 = vector.shape_cast %248 : vector<2x4x864xbf16> to vector<8x864xbf16>
    %c0_251 = arith.constant 0 : index
    %c0_252 = arith.constant 0 : index
    %250 = vector.load %arg6[%c0_251, %c0_252] : memref<864x128xbf16, #tpu.memory_space<vmem>>, vector<864x128xbf16>
    %cst_253 = arith.constant dense<0.000000e+00> : vector<8x128xf32>
    %251 = tpu.matmul %249, %250, %cst_253 {dimension_numbers = #tpu.dot_dimension_numbers<[1], [0], [0], [1], [0, 0, 1, 1], [], []>} : vector<8x864xbf16>, vector<864x128xbf16>, vector<8x128xf32> -> vector<8x128xf32>
    %c0_254 = arith.constant 0 : index
    %c0_255 = arith.constant 0 : index
    %252 = vector.load %arg7[%c0_254, %c0_255] : memref<1x128xf32, #tpu.memory_space<vmem>>, vector<1x128xf32>
    %253 = vector.broadcast %252 : vector<1x128xf32> to vector<8x128xf32>
    %254 = arith.addf %251, %253 : vector<8x128xf32>
    %255 = vector.shape_cast %254 : vector<8x128xf32> to vector<2x4x128xf32>
    %c0_256 = arith.constant 0 : index
    %c0_257 = arith.constant 0 : index
    %c0_258 = arith.constant 0 : index
    %256 = vector.load %arg14[%c0_256, %c0_257, %c0_258] : memref<2x4x128xf32, #tpu.memory_space<vmem>>, vector<2x4x128xf32>
    tpu.vector_store %arg14[%c0_256, %c0_257, %c0_258], %255 {strides = array<i32>} : memref<2x4x128xf32, #tpu.memory_space<vmem>>, vector<2x4x128xf32>,
    return
  }
}

</mosaic_0001>

<llo_original>
// kernel: tile.44
$region0: #{tile.44}
  %s0 = inlined_call_operand.vmem [shape: f32[8,16,8], index: 0, kind: input, shape index: {}]
  %s1 = inlined_call_operand.vmem [shape: f32[8,128], index: 1, kind: output, shape index: {}]
  %s2 = smov 3
  %v3 = vld [vmem:[%s0] ss:$16 sm:%s2]
  %s4 = smov 12
  %v5 = vld [vmem:[%s0] ss:$16 sm:%s4]
  %vm6 = vcmask 1043458
  %v7 = vsel %vm6, %v5, %v3
  %s8 = smov 48
  %v9 = vld [vmem:[%s0] ss:$16 sm:%s8]
  %vm10 = vcmask 1045508
  %v11 = vsel %vm10, %v9, %v7
  %s12 = smov 192
  %v13 = vld [vmem:[%s0] ss:$16 sm:%s12]
  %vm14 = vcmask 1047558
  %v15 = vsel %vm14, %v13, %v11
  %vm16 = vcmask 64512
  %17 = vst.msk [vmem:[%s1] sm:$0xff] %vm16, %v15
  %s18 = scalar_lea.vmem %s0, 15
  %s19 = smov 3
  %v20 = vld [vmem:[%s18] ss:$16 sm:%s19]
  %s21 = scalar_lea.vmem %s0, 15
  %s22 = smov 12
  %v23 = vld [vmem:[%s21] ss:$16 sm:%s22]
  %vm24 = vcmask 1043458
  %v25 = vsel %vm24, %v23, %v20
  %s26 = scalar_lea.vmem %s0, 15
  %s27 = smov 48
  %v28 = vld [vmem:[%s26] ss:$16 sm:%s27]
  %vm29 = vcmask 1045508
  %v30 = vsel %vm29, %v28, %v25
  %s31 = scalar_lea.vmem %s0, 15
  %s32 = smov 192
  %v33 = vld [vmem:[%s31] ss:$16 sm:%s32]
  %vm34 = vcmask 1047558
  %v35 = vsel %vm34, %v33, %v30
  %36 = vrot.lane.b32.xlu0 %v35, 120
  %v37 = vpop.permute.xlu0 %36
  %vm38 = vcmask 1048512
  %39 = vst.msk [vmem:[%s1] sm:$0xff] %vm38, %v37
  %s40 = scalar_lea.vmem %s0, 14
  %s41 = smov 3
  %v42 = vld [vmem:[%s40] ss:$16 sm:%s41]
  %s43 = scalar_lea.vmem %s0, 14
  %s44 = smov 12
  %v45 = vld [vmem:[%s43] ss:$16 sm:%s44]
  %vm46 = vcmask 1043458
  %v47 = vsel %vm46, %v45, %v42
  %s48 = scalar_lea.vmem %s0, 14
  %s49 = smov 48
  %v50 = vld [vmem:[%s48] ss:$16 sm:%s49]
  %vm51 = vcmask 1045508
  %v52 = vsel %vm51, %v50, %v47
  %s53 = scalar_lea.vmem %s0, 14
  %s54 = smov 192
  %v55 = vld [vmem:[%s53] ss:$16 sm:%s54]
  %vm56 = vcmask 1047558
  %v57 = vsel %vm56, %v55, %v52
  %58 = vrot.lane.b32.xlu0 %v57, 112
  %v59 = vpop.permute.xlu0 %58
  %vm60 = vcmask 982912
  %61 = vst.msk [vmem:[%s1] sm:$0xff] %vm60, %v59
  %s62 = scalar_lea.vmem %s0, 13
  %s63 = smov 3
  %v64 = vld [vmem:[%s62] ss:$16 sm:%s63]
  %s65 = scalar_lea.vmem %s0, 13
  %s66 = smov 12
  %v67 = vld [vmem:[%s65] ss:$16 sm:%s66]
  %vm68 = vcmask 1043458
  %v69 = vsel %vm68, %v67, %v64
  %s70 = scalar_lea.vmem %s0, 13
  %s71 = smov 48
  %v72 = vld [vmem:[%s70] ss:$16 sm:%s71]
  %vm73 = vcmask 1045508
  %v74 = vsel %vm73, %v72, %v69
  %s75 = scalar_lea.vmem %s0, 13
  %s76 = smov 192
  %v77 = vld [vmem:[%s75] ss:$16 sm:%s76]
  %vm78 = vcmask 1047558
  %v79 = vsel %vm78, %v77, %v74
  %80 = vrot.lane.b32.xlu0 %v79, 104
  %v81 = vpop.permute.xlu0 %80
  %vm82 = vcmask 917312
  %83 = vst.msk [vmem:[%s1] sm:$0xff] %vm82, %v81
  %s84 = scalar_lea.vmem %s0, 12
  %s85 = smov 3
  %v86 = vld [vmem:[%s84] ss:$16 sm:%s85]
  %s87 = scalar_lea.vmem %s0, 12
  %s88 = smov 12
  %v89 = vld [vmem:[%s87] ss:$16 sm:%s88]
  %vm90 = vcmask 1043458
  %v91 = vsel %vm90, %v89, %v86
  %s92 = scalar_lea.vmem %s0, 12
  %s93 = smov 48
  %v94 = vld [vmem:[%s92] ss:$16 sm:%s93]
  %vm95 = vcmask 1045508
  %v96 = vsel %vm95, %v94, %v91
  %s97 = scalar_lea.vmem %s0, 12
  %s98 = smov 192
  %v99 = vld [vmem:[%s97] ss:$16 sm:%s98]
  %vm100 = vcmask 1047558
  %v101 = vsel %vm100, %v99, %v96
  %102 = vrot.lane.b32.xlu0 %v101, 96
  %v103 = vpop.permute.xlu0 %102
  %vm104 = vcmask 851712
  %105 = vst.msk [vmem:[%s1] sm:$0xff] %vm104, %v103
  %s106 = scalar_lea.vmem %s0, 11
  %s107 = smov 3
  %v108 = vld [vmem:[%s106] ss:$16 sm:%s107]
  %s109 = scalar_lea.vmem %s0, 11
  %s110 = smov 12
  %v111 = vld [vmem:[%s109] ss:$16 sm:%s110]
  %vm112 = vcmask 1043458
  %v113 = vsel %vm112, %v111, %v108
  %s114 = scalar_lea.vmem %s0, 11
  %s115 = smov 48
  %v116 = vld [vmem:[%s114] ss:$16 sm:%s115]
  %vm117 = vcmask 1045508
  %v118 = vsel %vm117, %v116, %v113
  %s119 = scalar_lea.vmem %s0, 11
  %s120 = smov 192
  %v121 = vld [vmem:[%s119] ss:$16 sm:%s120]
  %vm122 = vcmask 1047558
  %v123 = vsel %vm122, %v121, %v118
  %124 = vrot.lane.b32.xlu0 %v123, 88
  %v125 = vpop.permute.xlu0 %124
  %vm126 = vcmask 786112
  %127 = vst.msk [vmem:[%s1] sm:$0xff] %vm126, %v125
  %s128 = scalar_lea.vmem %s0, 10
  %s129 = smov 3
  %v130 = vld [vmem:[%s128] ss:$16 sm:%s129]
  %s131 = scalar_lea.vmem %s0, 10
  %s132 = smov 12
  %v133 = vld [vmem:[%s131] ss:$16 sm:%s132]
  %vm134 = vcmask 1043458
  %v135 = vsel %vm134, %v133, %v130
  %s136 = scalar_lea.vmem %s0, 10
  %s137 = smov 48
  %v138 = vld [vmem:[%s136] ss:$16 sm:%s137]
  %vm139 = vcmask 1045508
  %v140 = vsel %vm139, %v138, %v135
  %s141 = scalar_lea.vmem %s0, 10
  %s142 = smov 192
  %v143 = vld [vmem:[%s141] ss:$16 sm:%s142]
  %vm144 = vcmask 1047558
  %v145 = vsel %vm144, %v143, %v140
  %146 = vrot.lane.b32.xlu0 %v145, 80
  %v147 = vpop.permute.xlu0 %146
  %vm148 = vcmask 720512
  %149 = vst.msk [vmem:[%s1] sm:$0xff] %vm148, %v147
  %s150 = scalar_lea.vmem %s0, 9
  %s151 = smov 3
  %v152 = vld [vmem:[%s150] ss:$16 sm:%s151]
  %s153 = scalar_lea.vmem %s0, 9
  %s154 = smov 12
  %v155 = vld [vmem:[%s153] ss:$16 sm:%s154]
  %vm156 = vcmask 1043458
  %v157 = vsel %vm156, %v155, %v152
  %s158 = scalar_lea.vmem %s0, 9
  %s159 = smov 48
  %v160 = vld [vmem:[%s158] ss:$16 sm:%s159]
  %vm161 = vcmask 1045508
  %v162 = vsel %vm161, %v160, %v157
  %s163 = scalar_lea.vmem %s0, 9
  %s164 = smov 192
  %v165 = vld [vmem:[%s163] ss:$16 sm:%s164]
  %vm166 = vcmask 1047558
  %v167 = vsel %vm166, %v165, %v162
  %168 = vrot.lane.b32.xlu0 %v167, 72
  %v169 = vpop.permute.xlu0 %168
  %vm170 = vcmask 654912
  %171 = vst.msk [vmem:[%s1] sm:$0xff] %vm170, %v169
  %s172 = scalar_lea.vmem %s0, 8
  %s173 = smov 3
  %v174 = vld [vmem:[%s172] ss:$16 sm:%s173]
  %s175 = scalar_lea.vmem %s0, 8
  %s176 = smov 12
  %v177 = vld [vmem:[%s175] ss:$16 sm:%s176]
  %vm178 = vcmask 1043458
  %v179 = vsel %vm178, %v177, %v174
  %s180 = scalar_lea.vmem %s0, 8
  %s181 = smov 48
  %v182 = vld [vmem:[%s180] ss:$16 sm:%s181]
  %vm183 = vcmask 1045508
  %v184 = vsel %vm183, %v182, %v179
  %s185 = scalar_lea.vmem %s0, 8
  %s186 = smov 192
  %v187 = vld [vmem:[%s185] ss:$16 sm:%s186]
  %vm188 = vcmask 1047558
  %v189 = vsel %vm188, %v187, %v184
  %190 = vrot.lane.b32.xlu0 %v189, 64
  %v191 = vpop.permute.xlu0 %190
  %vm192 = vcmask 589312
  %193 = vst.msk [vmem:[%s1] sm:$0xff] %vm192, %v191
  %s194 = scalar_lea.vmem %s0, 7
  %s195 = smov 3
  %v196 = vld [vmem:[%s194] ss:$16 sm:%s195]
  %s197 = scalar_lea.vmem %s0, 7
  %s198 = smov 12
  %v199 = vld [vmem:[%s197] ss:$16 sm:%s198]
  %vm200 = vcmask 1043458
  %v201 = vsel %vm200, %v199, %v196
  %s202 = scalar_lea.vmem %s0, 7
  %s203 = smov 48
  %v204 = vld [vmem:[%s202] ss:$16 sm:%s203]
  %vm205 = vcmask 1045508
  %v206 = vsel %vm205, %v204, %v201
  %s207 = scalar_lea.vmem %s0, 7
  %s208 = smov 192
  %v209 = vld [vmem:[%s207] ss:$16 sm:%s208]
  %vm210 = vcmask 1047558
  %v211 = vsel %vm210, %v209, %v206
  %212 = vrot.lane.b32.xlu0 %v211, 56
  %v213 = vpop.permute.xlu0 %212
  %vm214 = vcmask 523712
  %215 = vst.msk [vmem:[%s1] sm:$0xff] %vm214, %v213
  %s216 = scalar_lea.vmem %s0, 6
  %s217 = smov 3
  %v218 = vld [vmem:[%s216] ss:$16 sm:%s217]
  %s219 = scalar_lea.vmem %s0, 6
  %s220 = smov 12
  %v221 = vld [vmem:[%s219] ss:$16 sm:%s220]
  %vm222 = vcmask 1043458
  %v223 = vsel %vm222, %v221, %v218
  %s224 = scalar_lea.vmem %s0, 6
  %s225 = smov 48
  %v226 = vld [vmem:[%s224] ss:$16 sm:%s225]
  %vm227 = vcmask 1045508
  %v228 = vsel %vm227, %v226, %v223
  %s229 = scalar_lea.vmem %s0, 6
  %s230 = smov 192
  %v231 = vld [vmem:[%s229] ss:$16 sm:%s230]
  %vm232 = vcmask 1047558
  %v233 = vsel %vm232, %v231, %v228
  %234 = vrot.lane.b32.xlu0 %v233, 48
  %v235 = vpop.permute.xlu0 %234
  %vm236 = vcmask 458112
  %237 = vst.msk [vmem:[%s1] sm:$0xff] %vm236, %v235
  %s238 = scalar_lea.vmem %s0, 5
  %s239 = smov 3
  %v240 = vld [vmem:[%s238] ss:$16 sm:%s239]
  %s241 = scalar_lea.vmem %s0, 5
  %s242 = smov 12
  %v243 = vld [vmem:[%s241] ss:$16 sm:%s242]
  %vm244 = vcmask 1043458
  %v245 = vsel %vm244, %v243, %v240
  %s246 = scalar_lea.vmem %s0, 5
  %s247 = smov 48
  %v248 = vld [vmem:[%s246] ss:$16 sm:%s247]
  %vm249 = vcmask 1045508
  %v250 = vsel %vm249, %v248, %v245
  %s251 = scalar_lea.vmem %s0, 5
  %s252 = smov 192
  %v253 = vld [vmem:[%s251] ss:$16 sm:%s252]
  %vm254 = vcmask 1047558
  %v255 = vsel %vm254, %v253, %v250
  %256 = vrot.lane.b32.xlu0 %v255, 40
  %v257 = vpop.permute.xlu0 %256
  %vm258 = vcmask 392512
  %259 = vst.msk [vmem:[%s1] sm:$0xff] %vm258, %v257
  %s260 = scalar_lea.vmem %s0, 4
  %s261 = smov 3
  %v262 = vld [vmem:[%s260] ss:$16 sm:%s261]
  %s263 = scalar_lea.vmem %s0, 4
  %s264 = smov 12
  %v265 = vld [vmem:[%s263] ss:$16 sm:%s264]
  %vm266 = vcmask 1043458
  %v267 = vsel %vm266, %v265, %v262
  %s268 = scalar_lea.vmem %s0, 4
  %s269 = smov 48
  %v270 = vld [vmem:[%s268] ss:$16 sm:%s269]
  %vm271 = vcmask 1045508
  %v272 = vsel %vm271, %v270, %v267
  %s273 = scalar_lea.vmem %s0, 4
  %s274 = smov 192
  %v275 = vld [vmem:[%s273] ss:$16 sm:%s274]
  %vm276 = vcmask 1047558
  %v277 = vsel %vm276, %v275, %v272
  %278 = vrot.lane.b32.xlu0 %v277, 32
  %v279 = vpop.permute.xlu0 %278
  %vm280 = vcmask 326912
  %281 = vst.msk [vmem:[%s1] sm:$0xff] %vm280, %v279
  %s282 = scalar_lea.vmem %s0, 3
  %s283 = smov 3
  %v284 = vld [vmem:[%s282] ss:$16 sm:%s283]
  %s285 = scalar_lea.vmem %s0, 3
  %s286 = smov 12
  %v287 = vld [vmem:[%s285] ss:$16 sm:%s286]
  %vm288 = vcmask 1043458
  %v289 = vsel %vm288, %v287, %v284
  %s290 = scalar_lea.vmem %s0, 3
  %s291 = smov 48
  %v292 = vld [vmem:[%s290] ss:$16 sm:%s291]
  %vm293 = vcmask 1045508
  %v294 = vsel %vm293, %v292, %v289
  %s295 = scalar_lea.vmem %s0, 3
  %s296 = smov 192
  %v297 = vld [vmem:[%s295] ss:$16 sm:%s296]
  %vm298 = vcmask 1047558
  %v299 = vsel %vm298, %v297, %v294
  %300 = vrot.lane.b32.xlu0 %v299, 24
  %v301 = vpop.permute.xlu0 %300
  %vm302 = vcmask 261312
  %303 = vst.msk [vmem:[%s1] sm:$0xff] %vm302, %v301
  %s304 = scalar_lea.vmem %s0, 2
  %s305 = smov 3
  %v306 = vld [vmem:[%s304] ss:$16 sm:%s305]
  %s307 = scalar_lea.vmem %s0, 2
  %s308 = smov 12
  %v309 = vld [vmem:[%s307] ss:$16 sm:%s308]
  %vm310 = vcmask 1043458
  %v311 = vsel %vm310, %v309, %v306
  %s312 = scalar_lea.vmem %s0, 2
  %s313 = smov 48
  %v314 = vld [vmem:[%s312] ss:$16 sm:%s313]
  %vm315 = vcmask 1045508
  %v316 = vsel %vm315, %v314, %v311
  %s317 = scalar_lea.vmem %s0, 2
  %s318 = smov 192
  %v319 = vld [vmem:[%s317] ss:$16 sm:%s318]
  %vm320 = vcmask 1047558
  %v321 = vsel %vm320, %v319, %v316
  %322 = vrot.lane.b32.xlu0 %v321, 16
  %v323 = vpop.permute.xlu0 %322
  %vm324 = vcmask 195712
  %325 = vst.msk [vmem:[%s1] sm:$0xff] %vm324, %v323
  %s326 = scalar_lea.vmem %s0, 1
  %s327 = smov 3
  %v328 = vld [vmem:[%s326] ss:$16 sm:%s327]
  %s329 = scalar_lea.vmem %s0, 1
  %s330 = smov 12
  %v331 = vld [vmem:[%s329] ss:$16 sm:%s330]
  %vm332 = vcmask 1043458
  %v333 = vsel %vm332, %v331, %v328
  %s334 = scalar_lea.vmem %s0, 1
  %s335 = smov 48
  %v336 = vld [vmem:[%s334] ss:$16 sm:%s335]
  %vm337 = vcmask 1045508
  %v338 = vsel %vm337, %v336, %v333
  %s339 = scalar_lea.vmem %s0, 1
  %s340 = smov 192
  %v341 = vld [vmem:[%s339] ss:$16 sm:%s340]
  %vm342 = vcmask 1047558
  %v343 = vsel %vm342, %v341, %v338
  %344 = vrot.lane.b32.xlu0 %v343, 8
  %v345 = vpop.permute.xlu0 %344
  %vm346 = vcmask 130112
  %347 = vst.msk [vmem:[%s1] sm:$0xff] %vm346, %v345

// kernel: tile.28
$region0: #{tile.28}
  #allocation0 [shape = 's32[1]{0}', space=sflag, size = 0x4, scoped, tag = 'scoped memory for tile.28']
  %s0 = inlined_call_operand.vmem [shape: f32[8], index: 0, kind: input, shape index: {}]
  %s1 = inlined_call_operand.vmem [shape: f32[16,8], index: 1, kind: output, shape index: {}]
  // Predicated region
  $region2: #{tile.28} parent=0 // pred_check
    _
  $region3: #{tile.28} parent=0 // pred_check_branch
    %3 = sbr.rel (0) target = $region5
  $region4: #{tile.28} parent=0 // pred_region
    _
  $region5: #{tile.28} parent=0 // pred_fallthru
    _
  %v4 = vld [vmem:[%s0] ss:$0 sm:$0xff]
  %5 = vst [vmem:[%s1] sm:$0xff] %v4
  %s6 = scalar_lea.vmem %s1, 8
  %7 = vst [vmem:[%s6] sm:$0xff] %v4

// kernel: tile.29
$region0: #{tile.29}
  %s0 = inlined_call_operand.vmem [shape: f32[16,8], index: 0, kind: input, shape index: {}]
  %s1 = inlined_call_operand.vmem [shape: f32[1,128], index: 1, kind: output, shape index: {}]
  $region1: #{tile.29} parent=0
    #allocation0 [shape = 'u8[4096]{0}', space=vmem, size = 0x1000, scoped, tag = 'scoped mem for output reshape']
    %v2 = vld [vmem:[%s0] sm:$0x1]
    %vm3 = vcmask 64512
    %4 = vst.msk [vmem:[#allocation0] sm:$0x1] %vm3, %v2
    %s5 = scalar_lea.vmem %s0, 15
    %v6 = vld [vmem:[%s5] sm:$0x1]
    %7 = vrot.lane.b32.xlu0 %v6, 120
    %v8 = vpop.permute.xlu0 %7
    %vm9 = vcmask 1048512
    %10 = vst.msk [vmem:[#allocation0] sm:$0x1] %vm9, %v8
    %s11 = scalar_lea.vmem %s0, 14
    %v12 = vld [vmem:[%s11] sm:$0x1]
    %13 = vrot.lane.b32.xlu0 %v12, 112
    %v14 = vpop.permute.xlu0 %13
    %vm15 = vcmask 982912
    %16 = vst.msk [vmem:[#allocation0] sm:$0x1] %vm15, %v14
    %s17 = scalar_lea.vmem %s0, 13
    %v18 = vld [vmem:[%s17] sm:$0x1]
    %19 = vrot.lane.b32.xlu0 %v18, 104
    %v20 = vpop.permute.xlu0 %19
    %vm21 = vcmask 917312
    %22 = vst.msk [vmem:[#allocation0] sm:$0x1] %vm21, %v20
    %s23 = scalar_lea.vmem %s0, 12
    %v24 = vld [vmem:[%s23] sm:$0x1]
    %25 = vrot.lane.b32.xlu0 %v24, 96
    %v26 = vpop.permute.xlu0 %25
    %vm27 = vcmask 851712
    %28 = vst.msk [vmem:[#allocation0] sm:$0x1] %vm27, %v26
    %s29 = scalar_lea.vmem %s0, 11
    %v30 = vld [vmem:[%s29] sm:$0x1]
    %31 = vrot.lane.b32.xlu0 %v30, 88
    %v32 = vpop.permute.xlu0 %31
    %vm33 = vcmask 786112
    %34 = vst.msk [vmem:[#allocation0] sm:$0x1] %vm33, %v32
    %s35 = scalar_lea.vmem %s0, 10
    %v36 = vld [vmem:[%s35] sm:$0x1]
    %37 = vrot.lane.b32.xlu0 %v36, 80
    %v38 = vpop.permute.xlu0 %37
    %vm39 = vcmask 720512
    %40 = vst.msk [vmem:[#allocation0] sm:$0x1] %vm39, %v38
    %s41 = scalar_lea.vmem %s0, 9
    %v42 = vld [vmem:[%s41] sm:$0x1]
    %43 = vrot.lane.b32.xlu0 %v42, 72
    %v44 = vpop.permute.xlu0 %43
    %vm45 = vcmask 654912
    %46 = vst.msk [vmem:[#allocation0] sm:$0x1] %vm45, %v44
    %s47 = scalar_lea.vmem %s0, 8
    %v48 = vld [vmem:[%s47] sm:$0x1]
    %49 = vrot.lane.b32.xlu0 %v48, 64
    %v50 = vpop.permute.xlu0 %49
    %vm51 = vcmask 589312
    %52 = vst.msk [vmem:[#allocation0] sm:$0x1] %vm51, %v50
    %s53 = scalar_lea.vmem %s0, 7
    %v54 = vld [vmem:[%s53] sm:$0x1]
    %55 = vrot.lane.b32.xlu0 %v54, 56
    %v56 = vpop.permute.xlu0 %55
    %vm57 = vcmask 523712
    %58 = vst.msk [vmem:[#allocation0] sm:$0x1] %vm57, %v56
    %s59 = scalar_lea.vmem %s0, 6
    %v60 = vld [vmem:[%s59] sm:$0x1]
    %61 = vrot.lane.b32.xlu0 %v60, 48
    %v62 = vpop.permute.xlu0 %61
    %vm63 = vcmask 458112
    %64 = vst.msk [vmem:[#allocation0] sm:$0x1] %vm63, %v62
    %s65 = scalar_lea.vmem %s0, 5
    %v66 = vld [vmem:[%s65] sm:$0x1]
    %67 = vrot.lane.b32.xlu0 %v66, 40
    %v68 = vpop.permute.xlu0 %67
    %vm69 = vcmask 392512
    %70 = vst.msk [vmem:[#allocation0] sm:$0x1] %vm69, %v68
    %s71 = scalar_lea.vmem %s0, 4
    %v72 = vld [vmem:[%s71] sm:$0x1]
    %73 = vrot.lane.b32.xlu0 %v72, 32
    %v74 = vpop.permute.xlu0 %73
    %vm75 = vcmask 326912
    %76 = vst.msk [vmem:[#allocation0] sm:$0x1] %vm75, %v74
    %s77 = scalar_lea.vmem %s0, 3
    %v78 = vld [vmem:[%s77] sm:$0x1]
    %79 = vrot.lane.b32.xlu0 %v78, 24
    %v80 = vpop.permute.xlu0 %79
    %vm81 = vcmask 261312
    %82 = vst.msk [vmem:[#allocation0] sm:$0x1] %vm81, %v80
    %s83 = scalar_lea.vmem %s0, 2
    %v84 = vld [vmem:[%s83] sm:$0x1]
    %85 = vrot.lane.b32.xlu0 %v84, 16
    %v86 = vpop.permute.xlu0 %85
    %vm87 = vcmask 195712
    %88 = vst.msk [vmem:[#allocation0] sm:$0x1] %vm87, %v86
    %s89 = scalar_lea.vmem %s0, 1
    %v90 = vld [vmem:[%s89] sm:$0x1]
    %91 = vrot.lane.b32.xlu0 %v90, 8
    %v92 = vpop.permute.xlu0 %91
    %vm93 = vcmask 130112
    %94 = vst.msk [vmem:[#allocation0] sm:$0x1] %vm93, %v92
    %s96 = sshllo.u32 0, 1
    %v98 = vld [vmem:[#allocation0] sm:%s96]
    %s99 = sshllo.u32 0, 1
    %100 = vst [vmem:[%s1] sm:%s99] %v98

// kernel: block_forward.1
$region0: #{block_forward.1}
  #allocation0 [shape = 'u32[]', space=smem, size = 0x4, offset = 0x4, fixed_abs, tag = 'smem constant byte address 0x4 - core index']
  #allocation1 [shape = 'u32[144,128]{1,0:T(1,128)}', space=vmem, size = 0x12000, scoped, tag = 'internal scratch']
  #allocation2 [shape = 'bf16[2,18,72]{2,1,0:T(8,128)(2,1)}', space=vmem, size = 0x3000, scoped, tag = 'scratch operand']
  #allocation3 [shape = 'bf16[2,18,144]{2,1,0:T(8,128)(2,1)}', space=vmem, size = 0x6000, scoped, tag = 'scratch operand']
  #allocation4 [shape = 'bf16[2,16,864]{2,1,0:T(16,128)(2,1)}', space=vmem, size = 0xe000, scoped, tag = 'scratch operand']
  %s0 = inlined_call_operand.vmem [shape: bf16[2,16,64], index: 0, kind: input, shape index: {}]
  %s1 = inlined_call_operand.vmem [shape: f32[2,32], index: 1, kind: input, shape index: {}]
  %s2 = inlined_call_operand.vmem [shape: bf16[216,128], index: 2, kind: input, shape index: {}]
  %s3 = inlined_call_operand.vmem [shape: f32[1,128], index: 3, kind: input, shape index: {}]
  %s4 = inlined_call_operand.vmem [shape: bf16[432,128], index: 4, kind: input, shape index: {}]
  %s5 = inlined_call_operand.vmem [shape: f32[1,128], index: 5, kind: input, shape index: {}]
  %s6 = inlined_call_operand.vmem [shape: bf16[864,128], index: 6, kind: input, shape index: {}]
  %s7 = inlined_call_operand.vmem [shape: f32[1,128], index: 7, kind: input, shape index: {}]
  %s8 = inlined_call_operand.vmem [shape: f32[32,8], index: 8, kind: input, shape index: {}]
  %s9 = inlined_call_operand.vmem [shape: f32[1,8], index: 9, kind: input, shape index: {}]
  %s10 = inlined_call_operand.vmem [shape: f32[1,8], index: 10, kind: input, shape index: {}]
  %s11 = inlined_call_operand.vmem [shape: f32[1,8], index: 11, kind: input, shape index: {}]
  %s12 = inlined_call_operand.vmem [shape: f32[128,8], index: 12, kind: input, shape index: {}]
  %s13 = inlined_call_operand.vmem [shape: f32[8,128], index: 13, kind: input, shape index: {}]
  %s14 = inlined_call_operand.vmem [shape: f32[2,4,128], index: 14, kind: output, shape index: {}]
  %s15 = sld [smem:[#allocation0]]
  $region66: #{block_forward.1} parent=0
    _
  %s17 = ssub.s32 1, %s15
  %s18 = scalar_select 0, %s17, %s15
  // Predicated region
  $region2: #{block_forward.1} parent=0 // pred_check
    _
  $region3: #{block_forward.1} parent=0 // pred_check_branch
    %20 = sbr.rel (0) target = $region5
  $region4: #{block_forward.1} parent=0 // pred_region
    _
  $region5: #{block_forward.1} parent=0 // pred_fallthru
    _
  // Predicated region
  $region6: #{block_forward.1} parent=0 // pred_check
    _
  $region7: #{block_forward.1} parent=0 // pred_check_branch
    %22 = sbr.rel (0) target = $region9
  $region8: #{block_forward.1} parent=0 // pred_region
    _
  $region9: #{block_forward.1} parent=0 // pred_fallthru
    _
  // Predicated region
  $region10: #{block_forward.1} parent=0 // pred_check
    _
  $region11: #{block_forward.1} parent=0 // pred_check_branch
    %24 = sbr.rel (0) target = $region13
  $region12: #{block_forward.1} parent=0 // pred_region
    _
  $region13: #{block_forward.1} parent=0 // pred_fallthru
    _
  // Predicated region
  $region14: #{block_forward.1} parent=0 // pred_check
    _
  $region15: #{block_forward.1} parent=0 // pred_check_branch
    %26 = sbr.rel (0) target = $region17
  $region16: #{block_forward.1} parent=0 // pred_region
    _
  $region17: #{block_forward.1} parent=0 // pred_fallthru
    _
  // Predicated region
  $region18: #{block_forward.1} parent=0 // pred_check
    _
  $region19: #{block_forward.1} parent=0 // pred_check_branch
    %28 = sbr.rel (0) target = $region21
  $region20: #{block_forward.1} parent=0 // pred_region
    _
  $region21: #{block_forward.1} parent=0 // pred_fallthru
    _
  // Predicated region
  $region22: #{block_forward.1} parent=0 // pred_check
    _
  $region23: #{block_forward.1} parent=0 // pred_check_branch
    %30 = sbr.rel (0) target = $region25
  $region24: #{block_forward.1} parent=0 // pred_region
    _
  $region25: #{block_forward.1} parent=0 // pred_fallthru
    _
  // Predicated region
  $region26: #{block_forward.1} parent=0 // pred_check
    _
  $region27: #{block_forward.1} parent=0 // pred_check_branch
    %32 = sbr.rel (0) target = $region29
  $region28: #{block_forward.1} parent=0 // pred_region
    _
  $region29: #{block_forward.1} parent=0 // pred_fallthru
    _
  // Predicated region
  $region30: #{block_forward.1} parent=0 // pred_check
    _
  $region31: #{block_forward.1} parent=0 // pred_check_branch
    %34 = sbr.rel (0) target = $region33
  $region32: #{block_forward.1} parent=0 // pred_region
    _
  $region33: #{block_forward.1} parent=0 // pred_fallthru
    _
  // Predicated region
  $region34: #{block_forward.1} parent=0 // pred_check
    _
  $region35: #{block_forward.1} parent=0 // pred_check_branch
    %36 = sbr.rel (0) target = $region37
  $region36: #{block_forward.1} parent=0 // pred_region
    _
  $region37: #{block_forward.1} parent=0 // pred_fallthru
    _
  // Predicated region
  $region38: #{block_forward.1} parent=0 // pred_check
    _
  $region39: #{block_forward.1} parent=0 // pred_check_branch
    %38 = sbr.rel (0) target = $region41
  $region40: #{block_forward.1} parent=0 // pred_region
    _
  $region41: #{block_forward.1} parent=0 // pred_fallthru
    _
  // Predicated region
  $region42: #{block_forward.1} parent=0 // pred_check
    _
  $region43: #{block_forward.1} parent=0 // pred_check_branch
    %40 = sbr.rel (0) target = $region45
  $region44: #{block_forward.1} parent=0 // pred_region
    _
  $region45: #{block_forward.1} parent=0 // pred_fallthru
    _
  // Predicated region
  $region46: #{block_forward.1} parent=0 // pred_check
    _
  $region47: #{block_forward.1} parent=0 // pred_check_branch
    %42 = sbr.rel (0) target = $region49
  $region48: #{block_forward.1} parent=0 // pred_region
    _
  $region49: #{block_forward.1} parent=0 // pred_fallthru
    _
  // Predicated region
  $region50: #{block_forward.1} parent=0 // pred_check
    _
  $region51: #{block_forward.1} parent=0 // pred_check_branch
    %44 = sbr.rel (0) target = $region53
  $region52: #{block_forward.1} parent=0 // pred_region
    _
  $region53: #{block_forward.1} parent=0 // pred_fallthru
    _
  // Predicated region
  $region54: #{block_forward.1} parent=0 // pred_check
    _
  $region55: #{block_forward.1} parent=0 // pred_check_branch
    %46 = sbr.rel (0) target = $region57
  $region56: #{block_forward.1} parent=0 // pred_region
    _
  $region57: #{block_forward.1} parent=0 // pred_fallthru
    _
  %v48 = vld [vmem:[%s12] sm:$0xff]
  %v49 = vld [vmem:[%s12 + $0x8] sm:$0xff]
  %v50 = vld [vmem:[%s12 + $0x10] sm:$0xff]
  %v51 = vld [vmem:[%s12 + $0x18] sm:$0xff]
  %v52 = vld [vmem:[%s12 + $0x20] sm:$0xff]
  %v53 = vld [vmem:[%s12 + $0x28] sm:$0xff]
  %v54 = vld [vmem:[%s12 + $0x30] sm:$0xff]
  %v55 = vld [vmem:[%s12 + $0x38] sm:$0xff]
  %v56 = vld [vmem:[%s12 + $0x40] sm:$0xff]
  %v57 = vld [vmem:[%s12 + $0x48] sm:$0xff]
  %v58 = vld [vmem:[%s12 + $0x50] sm:$0xff]
  %v59 = vld [vmem:[%s12 + $0x58] sm:$0xff]
  %v60 = vld [vmem:[%s12 + $0x60] sm:$0xff]
  %v61 = vld [vmem:[%s12 + $0x68] sm:$0xff]
  %v62 = vld [vmem:[%s12 + $0x70] sm:$0xff]
  %v63 = vld [vmem:[%s12 + $0x78] sm:$0xff]
  %v64 = vld [vmem:[%s13] sm:$0xff]
  %v65 = vld [vmem:[%s10] sm:$0x1]
  %v66 = vld [vmem:[%s11] sm:$0x1]
  %vm67 = vcmask 581632
  %vm68 = vsmask.f32 256
  %vm69 = vmand %vm67, %vm68
  %v70 = vld [vmem:[#allocation2] sm:$0x1]
  %v71 = vsel %vm69, 0, %v70
  %72 = vst [vmem:[#allocation2] sm:$0x1] %v71
  %v73 = vld [vmem:[#allocation2 + $0xc] sm:$0x1]
  %v74 = vsel %vm69, 0, %v73
  %75 = vst [vmem:[#allocation2 + $0xc] sm:$0x1] %v74
  %vm76 = vsmask.f32 7938
  %vm77 = vmand %vm67, %vm76
  %v78 = vld [vmem:[#allocation2 + $0x8] sm:$0x1]
  %v79 = vsel %vm77, 0, %v78
  %80 = vst [vmem:[#allocation2 + $0x8] sm:$0x1] %v79
  %v81 = vld [vmem:[#allocation2 + $0x14] sm:$0x1]
  %v82 = vsel %vm77, 0, %v81
  %83 = vst [vmem:[#allocation2 + $0x14] sm:$0x1] %v82
  %vm84 = vcmask 27648
  %85 = vst.msk [vmem:[#allocation2] sm:$0xf] %vm84, 0
  %86 = vst.msk [vmem:[#allocation2 + $0x4] sm:$0xf] %vm84, 0
  %vm87 = vcmask 24576
  %88 = vst.msk [vmem:[#allocation2 + $0x8] sm:$0x1] %vm87, 0
  %89 = vst.msk [vmem:[#allocation2 + $0xc] sm:$0xf] %vm84, 0
  %90 = vst.msk [vmem:[#allocation2 + $0x10] sm:$0xf] %vm84, 0
  %91 = vst.msk [vmem:[#allocation2 + $0x14] sm:$0x1] %vm87, 0
  %vm92 = vcmask 585248
  %93 = vst.msk [vmem:[#allocation2] sm:$0xf] %vm92, 0
  %94 = vst.msk [vmem:[#allocation2 + $0x4] sm:$0xf] %vm92, 0
  %vm95 = vcmask 582176
  %96 = vst.msk [vmem:[#allocation2 + $0x8] sm:$0x1] %vm95, 0
  %97 = vst.msk [vmem:[#allocation2 + $0xc] sm:$0xf] %vm92, 0
  %98 = vst.msk [vmem:[#allocation2 + $0x10] sm:$0xf] %vm92, 0
  %99 = vst.msk [vmem:[#allocation2 + $0x14] sm:$0x1] %vm95, 0
  %vm100 = vcmask 1040384
  %vm101 = vmand %vm100, %vm68
  %vm102 = vcmask 126980
  %vm103 = vsmask.f32 4352
  %vm104 = vmand %vm102, %vm103
  %vm105 = vmor %vm104, %vm101
  %v106 = vld [vmem:[#allocation3] sm:$0x11]
  %v107 = vsel %vm105, 0, %v106
  %108 = vst [vmem:[#allocation3] sm:$0x11] %v107
  %v109 = vld [vmem:[#allocation3 + $0x18] sm:$0x11]
  %v110 = vsel %vm105, 0, %v109
  %111 = vst [vmem:[#allocation3 + $0x18] sm:$0x11] %v110
  %vm112 = vmand %vm100, %vm76
  %vm113 = vsmask.f32 7954
  %vm114 = vmand %vm102, %vm113
  %vm115 = vmor %vm114, %vm112
  %v116 = vld [vmem:[#allocation3 + $0x10] sm:$0x11]
  %v117 = vsel %vm115, 0, %v116
  %118 = vst [vmem:[#allocation3 + $0x10] sm:$0x11] %v117
  %v119 = vld [vmem:[#allocation3 + $0x28] sm:$0x11]
  %v120 = vsel %vm115, 0, %v119
  %121 = vst [vmem:[#allocation3 + $0x28] sm:$0x11] %v120
  %vm122 = vcmask 60416
  %123 = vst.msk [vmem:[#allocation3] sm:$0xf] %vm122, 0
  %124 = vst.msk [vmem:[#allocation3 + $0x8] sm:$0xf] %vm122, 0
  %vm125 = vcmask 57344
  %126 = vst.msk [vmem:[#allocation3 + $0x10] sm:$0x1] %vm125, 0
  %127 = vst.msk [vmem:[#allocation3 + $0x18] sm:$0xf] %vm122, 0
  %128 = vst.msk [vmem:[#allocation3 + $0x20] sm:$0xf] %vm122, 0
  %129 = vst.msk [vmem:[#allocation3 + $0x28] sm:$0x1] %vm125, 0
  %vm130 = vcmask 126016
  %131 = vst.msk [vmem:[#allocation3 + $0x4] sm:$0xf] %vm130, 0
  %132 = vst.msk [vmem:[#allocation3 + $0xc] sm:$0xf] %vm130, 0
  %vm133 = vcmask 122944
  %134 = vst.msk [vmem:[#allocation3 + $0x14] sm:$0x1] %vm133, 0
  %135 = vst.msk [vmem:[#allocation3 + $0x1c] sm:$0xf] %vm130, 0
  %136 = vst.msk [vmem:[#allocation3 + $0x24] sm:$0xf] %vm130, 0
  %137 = vst.msk [vmem:[#allocation3 + $0x2c] sm:$0x1] %vm133, 0
  %v138 = vld [vmem:[%s1] sm:$0x3]
  %v139 = vld [vmem:[%s8] sm:$0xff]
  %v140 = vld [vmem:[%s8 + $0x8] sm:$0xff]
  %v141 = vld [vmem:[%s8 + $0x10] sm:$0xff]
  %v142 = vld [vmem:[%s8 + $0x18] sm:$0xff]
  %v143 = vld [vmem:[%s9] sm:$0x1]
  %v145 = vlaneseq
  %v146 = vshrl.u32 %v145, 7
  %v147 = vsub.s32 0, %v146
  %v148 = vrot.slane %v143, %v147
  %vm150 = vcmask 261120
  %v152 = vsel %vm150, %v138, 0
  %154 = vmatprep.subr.mxu0 0.0
  %155 = vmatpush1.msra.mxu0 %v139
  %156 = vmatprep.subr.mxu0 0.0
  %157 = vmatpush1.msra.mxu0 %v140
  %158 = vmatprep.subr.mxu0 0.0
  %159 = vmatpush1.msra.mxu0 %v141
  %160 = vmatprep.subr.mxu0 0.0
  %161 = vmatpush1.msra.mxu0 %v142
  %162 = vmatprep.subr.mxu0 0.0
  %163 = vmatpush1.msra.mxu0 0.0
  %164 = vmatprep.subr.mxu0 0.0
  %165 = vmatpush1.msra.mxu0 0.0
  %166 = vmatprep.subr.mxu0 0.0
  %167 = vmatpush1.msra.mxu0 0.0
  %168 = vmatprep.subr.mxu0 0.0
  %169 = vmatpush1.msra.mxu0 0.0
  %170 = vmatprep.subr.mxu0 0.0
  %171 = vmatpush1.msra.mxu0 0.0
  %172 = vmatprep.subr.mxu0 0.0
  %173 = vmatpush1.msra.mxu0 0.0
  %174 = vmatprep.subr.mxu0 0.0
  %175 = vmatpush1.msra.mxu0 0.0
  %176 = vmatprep.subr.mxu0 0.0
  %177 = vmatpush1.msra.mxu0 0.0
  %178 = vmatprep.subr.mxu0 0.0
  %179 = vmatpush1.msra.mxu0 0.0
  %180 = vmatprep.subr.mxu0 0.0
  %181 = vmatpush1.msra.mxu0 0.0
  %182 = vmatprep.subr.mxu0 0.0
  %183 = vmatpush1.msra.mxu0 0.0
  %184 = vmatprep.subr.mxu0 0.0
  %185 = vmatpush1.msra.mxu0 0.0
  %186 = vmatprep.subr.mxu0 0.0
  %187 = vmatpush1.msra.mxu0 0.0
  %188 = vmatprep.subr.mxu0 0.0
  %189 = vmatpush1.msra.mxu0 0.0
  %190 = vmatprep.subr.mxu0 0.0
  %191 = vmatpush1.msra.mxu0 0.0
  %192 = vmatprep.subr.mxu0 0.0
  %193 = vmatpush1.msra.mxu0 0.0
  %194 = vmatprep.subr.mxu0 0.0
  %195 = vmatpush1.msra.mxu0 0.0
  %196 = vmatprep.subr.mxu0 0.0
  %197 = vmatpush1.msra.mxu0 0.0
  %198 = vmatprep.subr.mxu0 0.0
  %199 = vmatpush1.msra.mxu0 0.0
  %200 = vmatprep.subr.mxu0 0.0
  %201 = vmatpush1.msra.mxu0 0.0
  %202 = vmatprep.subr.mxu0 0.0
  %203 = vmatpush1.msra.mxu0 0.0
  %204 = vmatprep.subr.mxu0 0.0
  %205 = vmatpush1.msra.mxu0 0.0
  %206 = vmatprep.subr.mxu0 0.0
  %207 = vmatpush1.msra.mxu0 0.0
  %208 = vmatprep.subr.mxu0 0.0
  %209 = vmatpush1.msra.mxu0 0.0
  %210 = vmatprep.subr.mxu0 0.0
  %211 = vmatpush1.msra.mxu0 0.0
  %212 = vmatprep.subr.mxu0 0.0
  %213 = vmatpush1.msra.mxu0 0.0
  %214 = vmatprep.subr.mxu0 0.0
  %215 = vmatpush1.msra.mxu0 0.0
  %216 = vmatprep.subr.mxu0 0.0
  %217 = vmatpush1.msra.mxu0 0.0
  %218 = vmatprep.mubr.f32.mxu0 0.0
  %219 = vmatmul.mubr.f32.gmra.mrb[0].mxu0 %v152
  %v220 = vpop.f32.mrb[0].mxu0
  %v221 = vadd.f32 %v148, %v220
  %v222 = vpop.f32.mrb[0].mxu0
  %223 = vdwg.mxu0
  %v224 = vmax.f32 %v221, 0.0
  %vm225 = vcmask 64512
  %v227 = vsel %vm225, %v224, 0
  %229 = vmatprep.subr.mxu0 0.0
  %230 = vmatpush1.msra.mxu0 %v64
  %231 = vmatprep.subr.mxu0 0.0
  %232 = vmatpush1.msra.mxu0 0.0
  %233 = vmatprep.subr.mxu0 0.0
  %234 = vmatpush1.msra.mxu0 0.0
  %235 = vmatprep.subr.mxu0 0.0
  %236 = vmatpush1.msra.mxu0 0.0
  %237 = vmatprep.subr.mxu0 0.0
  %238 = vmatpush1.msra.mxu0 0.0
  %239 = vmatprep.subr.mxu0 0.0
  %240 = vmatpush1.msra.mxu0 0.0
  %241 = vmatprep.subr.mxu0 0.0
  %242 = vmatpush1.msra.mxu0 0.0
  %243 = vmatprep.subr.mxu0 0.0
  %244 = vmatpush1.msra.mxu0 0.0
  %245 = vmatprep.subr.mxu0 0.0
  %246 = vmatpush1.msra.mxu0 0.0
  %247 = vmatprep.subr.mxu0 0.0
  %248 = vmatpush1.msra.mxu0 0.0
  %249 = vmatprep.subr.mxu0 0.0
  %250 = vmatpush1.msra.mxu0 0.0
  %251 = vmatprep.subr.mxu0 0.0
  %252 = vmatpush1.msra.mxu0 0.0
  %253 = vmatprep.subr.mxu0 0.0
  %254 = vmatpush1.msra.mxu0 0.0
  %255 = vmatprep.subr.mxu0 0.0
  %256 = vmatpush1.msra.mxu0 0.0
  %257 = vmatprep.subr.mxu0 0.0
  %258 = vmatpush1.msra.mxu0 0.0
  %259 = vmatprep.subr.mxu0 0.0
  %260 = vmatpush1.msra.mxu0 0.0
  %261 = vmatprep.subr.mxu0 0.0
  %262 = vmatpush1.msra.mxu0 0.0
  %263 = vmatprep.subr.mxu0 0.0
  %264 = vmatpush1.msra.mxu0 0.0
  %265 = vmatprep.subr.mxu0 0.0
  %266 = vmatpush1.msra.mxu0 0.0
  %267 = vmatprep.subr.mxu0 0.0
  %268 = vmatpush1.msra.mxu0 0.0
  %269 = vmatprep.subr.mxu0 0.0
  %270 = vmatpush1.msra.mxu0 0.0
  %271 = vmatprep.subr.mxu0 0.0
  %272 = vmatpush1.msra.mxu0 0.0
  %273 = vmatprep.subr.mxu0 0.0
  %274 = vmatpush1.msra.mxu0 0.0
  %275 = vmatprep.subr.mxu0 0.0
  %276 = vmatpush1.msra.mxu0 0.0
  %277 = vmatprep.subr.mxu0 0.0
  %278 = vmatpush1.msra.mxu0 0.0
  %279 = vmatprep.subr.mxu0 0.0
  %280 = vmatpush1.msra.mxu0 0.0
  %281 = vmatprep.subr.mxu0 0.0
  %282 = vmatpush1.msra.mxu0 0.0
  %283 = vmatprep.subr.mxu0 0.0
  %284 = vmatpush1.msra.mxu0 0.0
  %285 = vmatprep.subr.mxu0 0.0
  %286 = vmatpush1.msra.mxu0 0.0
  %287 = vmatprep.subr.mxu0 0.0
  %288 = vmatpush1.msra.mxu0 0.0
  %289 = vmatprep.subr.mxu0 0.0
  %290 = vmatpush1.msra.mxu0 0.0
  %291 = vmatprep.subr.mxu0 0.0
  %292 = vmatpush1.msra.mxu0 0.0
  %293 = vmatprep.mubr.f32.mxu0 0.0
  %294 = vmatmul.mubr.f32.gmra.mrb[0].mxu0 %v227
  %v295 = vpop.f32.mrb[0].mxu0
  %v296 = vadd.f32 0.0, %v295
  %v297 = vpop.f32.mrb[0].mxu0
  %298 = vdwg.mxu0
  %v299 = vld [vmem:[%s0] sm:$0xf]
  %v300 = vld [vmem:[%s0 + $0x4] sm:$0xf]
  %v301 = vld [vmem:[%s0 + $0x8] sm:$0xf]
  %v302 = vld [vmem:[%s0 + $0xc] sm:$0xf]
  %vm303 = vsmask.f32 4368
  %vm304 = vmor %vm68, %vm303
  %v306 = vshrl.u32 %v299, 16
  %v308 = vrot.slane %v306, 7
  %v309 = vshll.u32 %v299, 16
  %v311 = vor.u32 %v308, %v309
  %v312 = vrot.slane %v308, 4
  %v314 = vshrl.u32 %v300, 16
  %v316 = vrot.slane %v314, 7
  %v317 = vshll.u32 %v300, 16
  %v319 = vor.u32 %v316, %v317
  %v320 = vsel %vm304, %v312, %v319
  %v321 = vrot.slane %v316, 4
  %v323 = vshrl.u32 %v301, 16
  %v325 = vrot.slane %v323, 7
  %v326 = vshll.u32 %v301, 16
  %v328 = vor.u32 %v325, %v326
  %v329 = vrot.slane %v325, 4
  %v331 = vshrl.u32 %v302, 16
  %v333 = vrot.slane %v331, 7
  %v334 = vshll.u32 %v302, 16
  %v336 = vor.u32 %v333, %v334
  %v337 = vsel %vm304, %v329, %v336
  %v338 = vrot.slane %v333, 4
  %339 = vrot.lane.b32.xlu0 %v311, 4
  %v340 = vpop.permute.xlu0 %339
  %341 = vrot.lane.b32.xlu0 %v320, 4
  %v342 = vpop.permute.xlu0 %341
  %343 = vrot.lane.b32.xlu0 %v321, 4
  %v344 = vpop.permute.xlu0 %343
  %345 = vrot.lane.b32.xlu0 %v328, 4
  %v346 = vpop.permute.xlu0 %345
  %347 = vrot.lane.b32.xlu0 %v337, 4
  %v348 = vpop.permute.xlu0 %347
  %349 = vrot.lane.b32.xlu0 %v338, 4
  %v350 = vpop.permute.xlu0 %349
  %vm357 = vcmask 551968
  %vm358 = vmand %vm357, %vm76
  %v359 = vld [vmem:[#allocation2] sm:$0xf]
  %v360 = vsel %vm358, %v340, %v359
  %361 = vst [vmem:[#allocation2] sm:$0xf] %v360
  %vm362 = vcmask 551968
  %363 = vst.msk [vmem:[#allocation2 + $0x4] sm:$0xf] %vm362, %v342
  %vm364 = vcmask 548896
  %vm365 = vmand %vm364, %vm68
  %v366 = vld [vmem:[#allocation2 + $0x8] sm:$0x1]
  %v367 = vsel %vm365, %v344, %v366
  %368 = vst [vmem:[#allocation2 + $0x8] sm:$0x1] %v367
  %v369 = vld [vmem:[#allocation2 + $0xc] sm:$0xf]
  %v370 = vsel %vm358, %v346, %v369
  %371 = vst [vmem:[#allocation2 + $0xc] sm:$0xf] %v370
  %372 = vst.msk [vmem:[#allocation2 + $0x10] sm:$0xf] %vm362, %v348
  %v373 = vld [vmem:[#allocation2 + $0x14] sm:$0x1]
  %v374 = vsel %vm365, %v350, %v373
  %375 = vst [vmem:[#allocation2 + $0x14] sm:$0x1] %v374
  %v376 = vld [vmem:[#allocation2] sm:$0xf]
  %v377 = vld [vmem:[#allocation2 + $0x4] sm:$0xf]
  %v378 = vld [vmem:[#allocation2 + $0xc] sm:$0xf]
  %v379 = vld [vmem:[#allocation2 + $0x10] sm:$0xf]
  %v384 = vunpack.c.l.b16 %v376
  %v385 = vunpack.c.l.b16 %v377
  %v386 = vunpack.c.l.b16 %v378
  %v387 = vunpack.c.l.b16 %v379
  %v388 = vpack.c.b16 %v385, %v384
  %v389 = vpack.c.b16 %v387, %v386
  %vm392 = vcmask 588800
  %393 = vst.msk [vmem:[#allocation4] sm:$0xff] %vm392, %v388
  %394 = vst.msk [vmem:[#allocation4 + $0x38] sm:$0xff] %vm392, %v389
  %v395 = vld [vmem:[#allocation2] sm:$0xf]
  %v396 = vld [vmem:[#allocation2 + $0x4] sm:$0xf]
  %v397 = vld [vmem:[#allocation2 + $0x8] sm:$0x1]
  %v398 = vld [vmem:[#allocation2 + $0xc] sm:$0xf]
  %v399 = vld [vmem:[#allocation2 + $0x10] sm:$0xf]
  %v400 = vld [vmem:[#allocation2 + $0x14] sm:$0x1]
  %v407 = vunpack.c.l.b16 %v395
  %v408 = vunpack.c.l.b16 %v396
  %v409 = vunpack.c.l.b16 %v397
  %v410 = vunpack.c.l.b16 %v398
  %v411 = vunpack.c.l.b16 %v399
  %v412 = vunpack.c.l.b16 %v400
  %v413 = vpack.c.b16 %v408, %v407
  %v414 = vpack.c.b16 %v409, %v409
  %v415 = vpack.c.b16 %v411, %v410
  %v416 = vpack.c.b16 %v412, %v412
  %vm417 = vsmask.f32 7424
  %v419 = vshrl.u32 %v413, 16
  %v421 = vshll.u32 %v413, 16
  %v423 = vrot.slane %v421, 1
  %v424 = vor.u32 %v419, %v423
  %v426 = vshll.u32 %v414, 16
  %v428 = vrot.slane %v426, 1
  %v429 = vsel %vm417, %v424, %v428
  %v431 = vshrl.u32 %v415, 16
  %v433 = vshll.u32 %v415, 16
  %v435 = vrot.slane %v433, 1
  %v436 = vor.u32 %v431, %v435
  %v438 = vshll.u32 %v416, 16
  %v440 = vrot.slane %v438, 1
  %v441 = vsel %vm417, %v436, %v440
  %442 = vrot.lane.b32.xlu0 %v429, 72
  %v443 = vpop.permute.xlu0 %442
  %444 = vrot.lane.b32.xlu0 %v441, 72
  %v445 = vpop.permute.xlu0 %444
  %vm448 = vcmask 1048128
  %449 = vst.msk [vmem:[#allocation4] sm:$0xff] %vm448, %v443
  %vm450 = vcmask 130048
  %451 = vst.msk [vmem:[#allocation4 + $0x8] sm:$0xff] %vm450, %v443
  %452 = vst.msk [vmem:[#allocation4 + $0x38] sm:$0xff] %vm448, %v445
  %453 = vst.msk [vmem:[#allocation4 + $0x40] sm:$0xff] %vm450, %v445
  %v454 = vld [vmem:[#allocation2] sm:$0xe]
  %v455 = vld [vmem:[#allocation2 + $0x4] sm:$0xf]
  %v456 = vld [vmem:[#allocation2 + $0x8] sm:$0x1]
  %v457 = vld [vmem:[#allocation2 + $0xc] sm:$0xe]
  %v458 = vld [vmem:[#allocation2 + $0x10] sm:$0xf]
  %v459 = vld [vmem:[#allocation2 + $0x14] sm:$0x1]
  %v466 = vunpack.c.l.b16 %v454
  %v467 = vunpack.c.l.b16 %v455
  %v468 = vunpack.c.l.b16 %v456
  %v469 = vunpack.c.l.b16 %v457
  %v470 = vunpack.c.l.b16 %v458
  %v471 = vunpack.c.l.b16 %v459
  %v472 = vpack.c.b16 %v467, %v466
  %v473 = vpack.c.b16 %v468, %v468
  %v474 = vpack.c.b16 %v470, %v469
  %v475 = vpack.c.b16 %v471, %v471
  %vm476 = vcmask 1046528
  %v477 = vrot.slane %v472, 1
  %v478 = vrot.slane %v473, 1
  %v479 = vsel %vm476, %v477, %v478
  %v480 = vrot.slane %v474, 1
  %v481 = vrot.slane %v475, 1
  %v482 = vsel %vm476, %v480, %v481
  %483 = vrot.lane.b32.xlu0 %v479, 16
  %v484 = vpop.permute.xlu0 %483
  %485 = vrot.lane.b32.xlu0 %v482, 16
  %v486 = vpop.permute.xlu0 %485
  %vm489 = vcmask 720000
  %490 = vst.msk [vmem:[#allocation4 + $0x8] sm:$0xff] %vm489, %v484
  %491 = vst.msk [vmem:[#allocation4 + $0x40] sm:$0xff] %vm489, %v486
  %v492 = vld [vmem:[#allocation4] sm:$0xff]
  %v493 = vld [vmem:[#allocation4 + $0x8] sm:$0xff]
  %v494 = vld [vmem:[#allocation4 + $0x38] sm:$0xff]
  %v495 = vld [vmem:[#allocation4 + $0x40] sm:$0xff]
  %v496 = vld [vmem:[%s2] sm:$0xf]
  %v497 = vld [vmem:[%s2 + $0x4] sm:$0xf]
  %v498 = vld [vmem:[%s2 + $0x8] sm:$0xf]
  %v499 = vld [vmem:[%s2 + $0xc] sm:$0xf]
  %v500 = vld [vmem:[%s2 + $0x10] sm:$0xf]
  %v501 = vld [vmem:[%s2 + $0x14] sm:$0xf]
  %v502 = vld [vmem:[%s2 + $0x18] sm:$0xf]
  %v503 = vld [vmem:[%s2 + $0x1c] sm:$0xf]
  %v504 = vld [vmem:[%s2 + $0x20] sm:$0xf]
  %v505 = vld [vmem:[%s2 + $0x24] sm:$0xf]
  %v506 = vld [vmem:[%s2 + $0x28] sm:$0xf]
  %v507 = vld [vmem:[%s2 + $0x2c] sm:$0xf]
  %v508 = vld [vmem:[%s2 + $0x30] sm:$0xf]
  %v509 = vld [vmem:[%s2 + $0x34] sm:$0xf]
  %v510 = vld [vmem:[%s2 + $0x38] sm:$0xf]
  %v511 = vld [vmem:[%s2 + $0x3c] sm:$0xf]
  %v512 = vld [vmem:[%s2 + $0x40] sm:$0xf]
  %v513 = vld [vmem:[%s2 + $0x44] sm:$0xf]
  %v514 = vld [vmem:[%s2 + $0x48] sm:$0xf]
  %v515 = vld [vmem:[%s2 + $0x4c] sm:$0xf]
  %v516 = vld [vmem:[%s2 + $0x50] sm:$0xf]
  %v517 = vld [vmem:[%s2 + $0x54] sm:$0xf]
  %v518 = vld [vmem:[%s2 + $0x58] sm:$0xf]
  %v519 = vld [vmem:[%s2 + $0x5c] sm:$0xf]
  %v520 = vld [vmem:[%s2 + $0x60] sm:$0xf]
  %v521 = vld [vmem:[%s2 + $0x64] sm:$0xf]
  %v522 = vld [vmem:[%s2 + $0x68] sm:$0xf]
  %v523 = vld [vmem:[%s3] sm:$0x1]
  %v525 = vlaneseq
  %v526 = vshrl.u32 %v525, 7
  %v527 = vsub.s32 0, %v526
  %v528 = vrot.slane %v523, %v527
  %v557 = vunpack.c.l.b16 %v496
  %v558 = vunpack.c.l.b16 %v497
  %v559 = vunpack.c.l.b16 %v498
  %v560 = vunpack.c.l.b16 %v499
  %v561 = vunpack.c.l.b16 %v500
  %v562 = vunpack.c.l.b16 %v501
  %v563 = vunpack.c.l.b16 %v502
  %v564 = vunpack.c.l.b16 %v503
  %v565 = vunpack.c.l.b16 %v504
  %v566 = vunpack.c.l.b16 %v505
  %v567 = vunpack.c.l.b16 %v506
  %v568 = vunpack.c.l.b16 %v507
  %v569 = vunpack.c.l.b16 %v508
  %v570 = vunpack.c.l.b16 %v509
  %v571 = vunpack.c.l.b16 %v510
  %v572 = vunpack.c.l.b16 %v511
  %v573 = vunpack.c.l.b16 %v512
  %v574 = vunpack.c.l.b16 %v513
  %v575 = vunpack.c.l.b16 %v514
  %v576 = vunpack.c.l.b16 %v515
  %v577 = vunpack.c.l.b16 %v516
  %v578 = vunpack.c.l.b16 %v517
  %v579 = vunpack.c.l.b16 %v518
  %v580 = vunpack.c.l.b16 %v519
  %v581 = vunpack.c.l.b16 %v520
  %v582 = vunpack.c.l.b16 %v521
  %v583 = vunpack.c.l.b16 %v522
  %v584 = vpack.c.b16 %v558, %v557
  %v585 = vpack.c.b16 %v560, %v559
  %v586 = vpack.c.b16 %v562, %v561
  %v587 = vpack.c.b16 %v564, %v563
  %v588 = vpack.c.b16 %v566, %v565
  %v589 = vpack.c.b16 %v568, %v567
  %v590 = vpack.c.b16 %v570, %v569
  %v591 = vpack.c.b16 %v572, %v571
  %v592 = vpack.c.b16 %v574, %v573
  %v593 = vpack.c.b16 %v576, %v575
  %v594 = vpack.c.b16 %v578, %v577
  %v595 = vpack.c.b16 %v580, %v579
  %v596 = vpack.c.b16 %v582, %v581
  %v597 = vpack.c.b16 %v583, %v583
  %vm611 = vcmask 719872
  %v613 = vsel %vm611, %v493, 0
  %v616 = vsel %vm611, %v495, 0
  %vm618 = vcmask 1043456
  %v620 = vsel %vm618, %v597, 0
  %622 = vmatprep.subr.bf16.mxu0 0
  %623 = vmatpush1.bf16.msra.mxu0 %v584
  %624 = vmatprep.subr.bf16.mxu0 0
  %625 = vmatpush1.bf16.msra.mxu0 %v585
  %626 = vmatprep.subr.bf16.mxu0 0
  %627 = vmatpush1.bf16.msra.mxu0 %v586
  %628 = vmatprep.subr.bf16.mxu0 0
  %629 = vmatpush1.bf16.msra.mxu0 %v587
  %630 = vmatprep.subr.bf16.mxu0 0
  %631 = vmatpush1.bf16.msra.mxu0 %v588
  %632 = vmatprep.subr.bf16.mxu0 0
  %633 = vmatpush1.bf16.msra.mxu0 %v589
  %634 = vmatprep.subr.bf16.mxu0 0
  %635 = vmatpush1.bf16.msra.mxu0 %v590
  %636 = vmatprep.subr.bf16.mxu0 0
  %637 = vmatpush1.bf16.msra.mxu0 %v591
  %638 = vmatprep.subr.bf16.mxu0 0
  %639 = vmatpush1.bf16.msra.mxu0 %v592
  %640 = vmatprep.subr.bf16.mxu0 0
  %641 = vmatpush1.bf16.msra.mxu0 %v593
  %642 = vmatprep.subr.bf16.mxu0 0
  %643 = vmatpush1.bf16.msra.mxu0 %v594
  %644 = vmatprep.subr.bf16.mxu0 0
  %645 = vmatpush1.bf16.msra.mxu0 %v595
  %646 = vmatprep.subr.bf16.mxu0 0
  %647 = vmatpush1.bf16.msra.mxu0 %v596
  %648 = vmatprep.subr.bf16.mxu0 0
  %649 = vmatpush1.bf16.msra.mxu0 %v620
  %650 = vmatprep.subr.bf16.mxu0 0
  %651 = vmatpush1.bf16.msra.mxu0 0
  %652 = vmatprep.subr.bf16.mxu0 0
  %653 = vmatpush1.bf16.msra.mxu0 0
  %654 = vmatprep.mubr.bf16.mxu0 %v613
  %655 = vmatmul.mubr.bf16.gmra.mrb[0].mxu0 %v492
  %v656 = vpop.f32.mrb[0].mxu0
  %v657 = vadd.f32 %v528, %v656
  %v658 = vpop.f32.mrb[0].mxu0
  %v659 = vpop.f32.mrb[0].mxu0
  %v660 = vadd.f32 %v528, %v659
  %v661 = vpop.f32.mrb[0].mxu0
  %662 = vmatprep.mubr.bf16.mxu0 %v616
  %663 = vmatmul.mubr.bf16.gmra.mrb[0].mxu0 %v494
  %v664 = vpop.f32.mrb[0].mxu0
  %v665 = vadd.f32 %v528, %v664
  %v666 = vpop.f32.mrb[0].mxu0
  %v667 = vpop.f32.mrb[0].mxu0
  %v668 = vadd.f32 %v528, %v667
  %v669 = vpop.f32.mrb[0].mxu0
  %670 = vdwg.mxu0
  %v671 = vmax.f32 %v657, 0.0
  %v672 = vmax.f32 %v660, 0.0
  %v673 = vmax.f32 %v665, 0.0
  %v674 = vmax.f32 %v668, 0.0
  %v675 = vadd.f32 %v671, %v672
  %v676 = vadd.f32 %v675, %v673
  %v677 = vadd.f32 %v676, %v674
  %v678 = vrot.slane %v677, 4
  %v679 = vadd.f32 %v677, %v678
  %v680 = vrot.slane %v679, 2
  %v681 = vadd.f32 %v679, %v680
  %v682 = vrot.slane %v681, 1
  %v683 = vadd.f32 %v681, %v682
  %v684 = vmul.f32 %v671, %v671
  %v685 = vmul.f32 %v672, %v672
  %v686 = vmul.f32 %v673, %v673
  %v687 = vmul.f32 %v674, %v674
  %v688 = vadd.f32 %v684, %v685
  %v689 = vadd.f32 %v688, %v686
  %v690 = vadd.f32 %v689, %v687
  %v691 = vrot.slane %v690, 4
  %v692 = vadd.f32 %v690, %v691
  %v693 = vrot.slane %v692, 2
  %v694 = vadd.f32 %v692, %v693
  %v695 = vrot.slane %v694, 1
  %v696 = vadd.f32 %v694, %v695
  %697 = vmatprep.subr.mxu0 0.0
  %698 = vmatpush1.msra.mxu0 %v48
  %699 = vmatprep.subr.mxu0 0.0
  %700 = vmatpush1.msra.mxu0 %v49
  %701 = vmatprep.subr.mxu0 0.0
  %702 = vmatpush1.msra.mxu0 %v50
  %703 = vmatprep.subr.mxu0 0.0
  %704 = vmatpush1.msra.mxu0 %v51
  %705 = vmatprep.subr.mxu0 0.0
  %706 = vmatpush1.msra.mxu0 %v52
  %707 = vmatprep.subr.mxu0 0.0
  %708 = vmatpush1.msra.mxu0 %v53
  %709 = vmatprep.subr.mxu0 0.0
  %710 = vmatpush1.msra.mxu0 %v54
  %711 = vmatprep.subr.mxu0 0.0
  %712 = vmatpush1.msra.mxu0 %v55
  %713 = vmatprep.subr.mxu0 0.0
  %714 = vmatpush1.msra.mxu0 %v56
  %715 = vmatprep.subr.mxu0 0.0
  %716 = vmatpush1.msra.mxu0 %v57
  %717 = vmatprep.subr.mxu0 0.0
  %718 = vmatpush1.msra.mxu0 %v58
  %719 = vmatprep.subr.mxu0 0.0
  %720 = vmatpush1.msra.mxu0 %v59
  %721 = vmatprep.subr.mxu0 0.0
  %722 = vmatpush1.msra.mxu0 %v60
  %723 = vmatprep.subr.mxu0 0.0
  %724 = vmatpush1.msra.mxu0 %v61
  %725 = vmatprep.subr.mxu0 0.0
  %726 = vmatpush1.msra.mxu0 %v62
  %727 = vmatprep.subr.mxu0 0.0
  %728 = vmatpush1.msra.mxu0 %v63
  %729 = vmatprep.subr.mxu0 0.0
  %730 = vmatpush1.msra.mxu0 0.0
  %731 = vmatprep.subr.mxu0 0.0
  %732 = vmatpush1.msra.mxu0 0.0
  %733 = vmatprep.subr.mxu0 0.0
  %734 = vmatpush1.msra.mxu0 0.0
  %735 = vmatprep.subr.mxu0 0.0
  %736 = vmatpush1.msra.mxu0 0.0
  %737 = vmatprep.subr.mxu0 0.0
  %738 = vmatpush1.msra.mxu0 0.0
  %739 = vmatprep.subr.mxu0 0.0
  %740 = vmatpush1.msra.mxu0 0.0
  %741 = vmatprep.subr.mxu0 0.0
  %742 = vmatpush1.msra.mxu0 0.0
  %743 = vmatprep.subr.mxu0 0.0
  %744 = vmatpush1.msra.mxu0 0.0
  %745 = vmatprep.subr.mxu0 0.0
  %746 = vmatpush1.msra.mxu0 0.0
  %747 = vmatprep.subr.mxu0 0.0
  %748 = vmatpush1.msra.mxu0 0.0
  %749 = vmatprep.subr.mxu0 0.0
  %750 = vmatpush1.msra.mxu0 0.0
  %751 = vmatprep.subr.mxu0 0.0
  %752 = vmatpush1.msra.mxu0 0.0
  %753 = vmatprep.subr.mxu0 0.0
  %754 = vmatpush1.msra.mxu0 0.0
  %755 = vmatprep.subr.mxu0 0.0
  %756 = vmatpush1.msra.mxu0 0.0
  %757 = vmatprep.subr.mxu0 0.0
  %758 = vmatpush1.msra.mxu0 0.0
  %759 = vmatprep.subr.mxu0 0.0
  %760 = vmatpush1.msra.mxu0 0.0
  %761 = vmatprep.mubr.f32.mxu0 0.0
  %762 = vmatmul.mubr.f32.gmra.mrb[0].mxu0 %v683
  %v763 = vpop.f32.mrb[0].mxu0
  %v764 = vadd.f32 0.0, %v763
  %v765 = vpop.f32.mrb[0].mxu0
  %766 = vdwg.mxu0
  %767 = vmatprep.subr.mxu0 0.0
  %768 = vmatpush1.msra.mxu0 %v48
  %769 = vmatprep.subr.mxu0 0.0
  %770 = vmatpush1.msra.mxu0 %v49
  %771 = vmatprep.subr.mxu0 0.0
  %772 = vmatpush1.msra.mxu0 %v50
  %773 = vmatprep.subr.mxu0 0.0
  %774 = vmatpush1.msra.mxu0 %v51
  %775 = vmatprep.subr.mxu0 0.0
  %776 = vmatpush1.msra.mxu0 %v52
  %777 = vmatprep.subr.mxu0 0.0
  %778 = vmatpush1.msra.mxu0 %v53
  %779 = vmatprep.subr.mxu0 0.0
  %780 = vmatpush1.msra.mxu0 %v54
  %781 = vmatprep.subr.mxu0 0.0
  %782 = vmatpush1.msra.mxu0 %v55
  %783 = vmatprep.subr.mxu0 0.0
  %784 = vmatpush1.msra.mxu0 %v56
  %785 = vmatprep.subr.mxu0 0.0
  %786 = vmatpush1.msra.mxu0 %v57
  %787 = vmatprep.subr.mxu0 0.0
  %788 = vmatpush1.msra.mxu0 %v58
  %789 = vmatprep.subr.mxu0 0.0
  %790 = vmatpush1.msra.mxu0 %v59
  %791 = vmatprep.subr.mxu0 0.0
  %792 = vmatpush1.msra.mxu0 %v60
  %793 = vmatprep.subr.mxu0 0.0
  %794 = vmatpush1.msra.mxu0 %v61
  %795 = vmatprep.subr.mxu0 0.0
  %796 = vmatpush1.msra.mxu0 %v62
  %797 = vmatprep.subr.mxu0 0.0
  %798 = vmatpush1.msra.mxu0 %v63
  %799 = vmatprep.subr.mxu0 0.0
  %800 = vmatpush1.msra.mxu0 0.0
  %801 = vmatprep.subr.mxu0 0.0
  %802 = vmatpush1.msra.mxu0 0.0
  %803 = vmatprep.subr.mxu0 0.0
  %804 = vmatpush1.msra.mxu0 0.0
  %805 = vmatprep.subr.mxu0 0.0
  %806 = vmatpush1.msra.mxu0 0.0
  %807 = vmatprep.subr.mxu0 0.0
  %808 = vmatpush1.msra.mxu0 0.0
  %809 = vmatprep.subr.mxu0 0.0
  %810 = vmatpush1.msra.mxu0 0.0
  %811 = vmatprep.subr.mxu0 0.0
  %812 = vmatpush1.msra.mxu0 0.0
  %813 = vmatprep.subr.mxu0 0.0
  %814 = vmatpush1.msra.mxu0 0.0
  %815 = vmatprep.subr.mxu0 0.0
  %816 = vmatpush1.msra.mxu0 0.0
  %817 = vmatprep.subr.mxu0 0.0
  %818 = vmatpush1.msra.mxu0 0.0
  %819 = vmatprep.subr.mxu0 0.0
  %820 = vmatpush1.msra.mxu0 0.0
  %821 = vmatprep.subr.mxu0 0.0
  %822 = vmatpush1.msra.mxu0 0.0
  %823 = vmatprep.subr.mxu0 0.0
  %824 = vmatpush1.msra.mxu0 0.0
  %825 = vmatprep.subr.mxu0 0.0
  %826 = vmatpush1.msra.mxu0 0.0
  %827 = vmatprep.subr.mxu0 0.0
  %828 = vmatpush1.msra.mxu0 0.0
  %829 = vmatprep.subr.mxu0 0.0
  %830 = vmatpush1.msra.mxu0 0.0
  %831 = vmatprep.mubr.f32.mxu0 0.0
  %832 = vmatmul.mubr.f32.gmra.mrb[0].mxu0 %v696
  %v833 = vpop.f32.mrb[0].mxu0
  %v834 = vadd.f32 0.0, %v833
  %v835 = vpop.f32.mrb[0].mxu0
  %836 = vdwg.mxu0
  %v837 = vrcp.pop 512.0
  %v838 = vmul.f32 %v764, %v837
  %v839 = vmul.f32 %v834, %v837
  %v840 = vmul.f32 %v838, %v838
  %v841 = vsub.f32 %v839, %v840
  %v842 = vmax.f32 %v841, 0.0
  %v843 = vadd.f32 %v842, 1e-05
  %v844 = vrsqrt.pop %v843
  %v845 = vmul.f32 %v65, %v844
  %v846 = vmul.f32 %v838, %v845
  %v847 = vsub.f32 %v66, %v846
  %v849 = vsel %vm225, %v845, 0
  %851 = vmatprep.subr.mxu0 0.0
  %852 = vmatpush1.msra.mxu0 %v64
  %853 = vmatprep.subr.mxu0 0.0
  %854 = vmatpush1.msra.mxu0 0.0
  %855 = vmatprep.subr.mxu0 0.0
  %856 = vmatpush1.msra.mxu0 0.0
  %857 = vmatprep.subr.mxu0 0.0
  %858 = vmatpush1.msra.mxu0 0.0
  %859 = vmatprep.subr.mxu0 0.0
  %860 = vmatpush1.msra.mxu0 0.0
  %861 = vmatprep.subr.mxu0 0.0
  %862 = vmatpush1.msra.mxu0 0.0
  %863 = vmatprep.subr.mxu0 0.0
  %864 = vmatpush1.msra.mxu0 0.0
  %865 = vmatprep.subr.mxu0 0.0
  %866 = vmatpush1.msra.mxu0 0.0
  %867 = vmatprep.subr.mxu0 0.0
  %868 = vmatpush1.msra.mxu0 0.0
  %869 = vmatprep.subr.mxu0 0.0
  %870 = vmatpush1.msra.mxu0 0.0
  %871 = vmatprep.subr.mxu0 0.0
  %872 = vmatpush1.msra.mxu0 0.0
  %873 = vmatprep.subr.mxu0 0.0
  %874 = vmatpush1.msra.mxu0 0.0
  %875 = vmatprep.subr.mxu0 0.0
  %876 = vmatpush1.msra.mxu0 0.0
  %877 = vmatprep.subr.mxu0 0.0
  %878 = vmatpush1.msra.mxu0 0.0
  %879 = vmatprep.subr.mxu0 0.0
  %880 = vmatpush1.msra.mxu0 0.0
  %881 = vmatprep.subr.mxu0 0.0
  %882 = vmatpush1.msra.mxu0 0.0
  %883 = vmatprep.subr.mxu0 0.0
  %884 = vmatpush1.msra.mxu0 0.0
  %885 = vmatprep.subr.mxu0 0.0
  %886 = vmatpush1.msra.mxu0 0.0
  %887 = vmatprep.subr.mxu0 0.0
  %888 = vmatpush1.msra.mxu0 0.0
  %889 = vmatprep.subr.mxu0 0.0
  %890 = vmatpush1.msra.mxu0 0.0
  %891 = vmatprep.subr.mxu0 0.0
  %892 = vmatpush1.msra.mxu0 0.0
  %893 = vmatprep.subr.mxu0 0.0
  %894 = vmatpush1.msra.mxu0 0.0
  %895 = vmatprep.subr.mxu0 0.0
  %896 = vmatpush1.msra.mxu0 0.0
  %897 = vmatprep.subr.mxu0 0.0
  %898 = vmatpush1.msra.mxu0 0.0
  %899 = vmatprep.subr.mxu0 0.0
  %900 = vmatpush1.msra.mxu0 0.0
  %901 = vmatprep.subr.mxu0 0.0
  %902 = vmatpush1.msra.mxu0 0.0
  %903 = vmatprep.subr.mxu0 0.0
  %904 = vmatpush1.msra.mxu0 0.0
  %905 = vmatprep.subr.mxu0 0.0
  %906 = vmatpush1.msra.mxu0 0.0
  %907 = vmatprep.subr.mxu0 0.0
  %908 = vmatpush1.msra.mxu0 0.0
  %909 = vmatprep.subr.mxu0 0.0
  %910 = vmatpush1.msra.mxu0 0.0
  %911 = vmatprep.subr.mxu0 0.0
  %912 = vmatpush1.msra.mxu0 0.0
  %913 = vmatprep.subr.mxu0 0.0
  %914 = vmatpush1.msra.mxu0 0.0
  %915 = vmatprep.mubr.f32.mxu0 0.0
  %916 = vmatmul.mubr.f32.gmra.mrb[0].mxu0 %v849
  %v917 = vpop.f32.mrb[0].mxu0
  %v918 = vadd.f32 0.0, %v917
  %v919 = vpop.f32.mrb[0].mxu0
  %920 = vdwg.mxu0
  %v922 = vsel %vm225, %v847, 0
  %924 = vmatprep.subr.mxu0 0.0
  %925 = vmatpush1.msra.mxu0 %v64
  %926 = vmatprep.subr.mxu0 0.0
  %927 = vmatpush1.msra.mxu0 0.0
  %928 = vmatprep.subr.mxu0 0.0
  %929 = vmatpush1.msra.mxu0 0.0
  %930 = vmatprep.subr.mxu0 0.0
  %931 = vmatpush1.msra.mxu0 0.0
  %932 = vmatprep.subr.mxu0 0.0
  %933 = vmatpush1.msra.mxu0 0.0
  %934 = vmatprep.subr.mxu0 0.0
  %935 = vmatpush1.msra.mxu0 0.0
  %936 = vmatprep.subr.mxu0 0.0
  %937 = vmatpush1.msra.mxu0 0.0
  %938 = vmatprep.subr.mxu0 0.0
  %939 = vmatpush1.msra.mxu0 0.0
  %940 = vmatprep.subr.mxu0 0.0
  %941 = vmatpush1.msra.mxu0 0.0
  %942 = vmatprep.subr.mxu0 0.0
  %943 = vmatpush1.msra.mxu0 0.0
  %944 = vmatprep.subr.mxu0 0.0
  %945 = vmatpush1.msra.mxu0 0.0
  %946 = vmatprep.subr.mxu0 0.0
  %947 = vmatpush1.msra.mxu0 0.0
  %948 = vmatprep.subr.mxu0 0.0
  %949 = vmatpush1.msra.mxu0 0.0
  %950 = vmatprep.subr.mxu0 0.0
  %951 = vmatpush1.msra.mxu0 0.0
  %952 = vmatprep.subr.mxu0 0.0
  %953 = vmatpush1.msra.mxu0 0.0
  %954 = vmatprep.subr.mxu0 0.0
  %955 = vmatpush1.msra.mxu0 0.0
  %956 = vmatprep.subr.mxu0 0.0
  %957 = vmatpush1.msra.mxu0 0.0
  %958 = vmatprep.subr.mxu0 0.0
  %959 = vmatpush1.msra.mxu0 0.0
  %960 = vmatprep.subr.mxu0 0.0
  %961 = vmatpush1.msra.mxu0 0.0
  %962 = vmatprep.subr.mxu0 0.0
  %963 = vmatpush1.msra.mxu0 0.0
  %964 = vmatprep.subr.mxu0 0.0
  %965 = vmatpush1.msra.mxu0 0.0
  %966 = vmatprep.subr.mxu0 0.0
  %967 = vmatpush1.msra.mxu0 0.0
  %968 = vmatprep.subr.mxu0 0.0
  %969 = vmatpush1.msra.mxu0 0.0
  %970 = vmatprep.subr.mxu0 0.0
  %971 = vmatpush1.msra.mxu0 0.0
  %972 = vmatprep.subr.mxu0 0.0
  %973 = vmatpush1.msra.mxu0 0.0
  %974 = vmatprep.subr.mxu0 0.0
  %975 = vmatpush1.msra.mxu0 0.0
  %976 = vmatprep.subr.mxu0 0.0
  %977 = vmatpush1.msra.mxu0 0.0
  %978 = vmatprep.subr.mxu0 0.0
  %979 = vmatpush1.msra.mxu0 0.0
  %980 = vmatprep.subr.mxu0 0.0
  %981 = vmatpush1.msra.mxu0 0.0
  %982 = vmatprep.subr.mxu0 0.0
  %983 = vmatpush1.msra.mxu0 0.0
  %984 = vmatprep.subr.mxu0 0.0
  %985 = vmatpush1.msra.mxu0 0.0
  %986 = vmatprep.subr.mxu0 0.0
  %987 = vmatpush1.msra.mxu0 0.0
  %988 = vmatprep.mubr.f32.mxu0 0.0
  %989 = vmatmul.mubr.f32.gmra.mrb[0].mxu0 %v922
  %v990 = vpop.f32.mrb[0].mxu0
  %v991 = vadd.f32 0.0, %v990
  %v992 = vpop.f32.mrb[0].mxu0
  %993 = vdwg.mxu0
  %v994 = vlaneseq
  %v995 = vshrl.u32 %v994, 7
  %v996 = vsub.s32 0, %v995
  %v997 = vrot.slane %v918, %v996
  %v998 = vmul.f32 %v671, %v997
  %v999 = vmul.f32 %v672, %v997
  %v1000 = vmul.f32 %v673, %v997
  %v1001 = vmul.f32 %v674, %v997
  %v1002 = vlaneseq
  %v1003 = vshrl.u32 %v1002, 7
  %v1004 = vsub.s32 0, %v1003
  %v1005 = vrot.slane %v991, %v1004
  %v1006 = vadd.f32 %v998, %v1005
  %v1007 = vadd.f32 %v999, %v1005
  %v1008 = vadd.f32 %v1000, %v1005
  %v1009 = vadd.f32 %v1001, %v1005
  %v1012 = vunpack.c.l.s4 1966171168
  %v1013 = vunpack.c.0.s8 %v1012
  %v1014 = vlaneseq
  %v1015 = vshrl.u32 %v1014, 7
  %v1016 = vsub.s32 %v1013, %v1015
  %v1017 = vrot.slane %v296, %v1016
  %v1018 = vcombine.high %v1017, %v1017
  %v1020 = vunpack.c.l.s4 1966171168
  %v1021 = vunpack.c.0.s8 %v1020
  %v1022 = vlaneseq
  %v1023 = vshrl.u32 %v1022, 7
  %v1024 = vsub.s32 %v1021, %v1023
  %v1025 = vrot.slane %v1017, %v1024
  %v1027 = vunpack.c.l.s4 1966171168
  %v1028 = vunpack.c.0.s8 %v1027
  %v1029 = vlaneseq
  %v1030 = vshrl.u32 %v1029, 7
  %v1031 = vsub.s32 %v1028, %v1030
  %v1032 = vrot.slane %v1018, %v1031
  %v1033 = vlaneseq
  %v1034 = vshrl.u32 %v1033, 7
  %v1035 = vsub.s32 0, %v1034
  %v1036 = vrot.slane %v1025, %v1035
  %v1037 = vlaneseq
  %v1038 = vshrl.u32 %v1037, 7
  %v1039 = vsub.s32 0, %v1038
  %v1040 = vrot.slane %v1032, %v1039
  %v1043 = vadd.f32 %v1006, %v1036
  %v1044 = vadd.f32 %v1007, %v1036
  %v1045 = vadd.f32 %v1008, %v1040
  %v1046 = vadd.f32 %v1009, %v1040
  %v1047 = vpack.c.bf16 %v1044, %v1043
  %v1048 = vpack.c.bf16 %v1046, %v1045
  %v1051 = vunpack.c.l.b16 %v1047
  %v1052 = vunpack.c.h.b16 %v1047
  %v1053 = vunpack.c.l.b16 %v1048
  %v1054 = vunpack.c.h.b16 %v1048
  %v1055 = vpack.c.b16 %v1051, %v1051
  %v1056 = vpack.c.b16 %v1052, %v1052
  %v1057 = vpack.c.b16 %v1053, %v1053
  %v1058 = vpack.c.b16 %v1054, %v1054
  %v1060 = vshrl.u32 %v1055, 16
  %v1062 = vrot.slane %v1060, 7
  %v1063 = vshll.u32 %v1055, 16
  %v1065 = vor.u32 %v1062, %v1063
  %v1066 = vrot.slane %v1062, 4
  %v1068 = vshrl.u32 %v1056, 16
  %v1070 = vrot.slane %v1068, 7
  %v1071 = vshll.u32 %v1056, 16
  %v1073 = vor.u32 %v1070, %v1071
  %v1074 = vsel %vm304, %v1066, %v1073
  %v1075 = vrot.slane %v1070, 4
  %v1077 = vshrl.u32 %v1057, 16
  %v1079 = vrot.slane %v1077, 7
  %v1080 = vshll.u32 %v1057, 16
  %v1082 = vor.u32 %v1079, %v1080
  %v1083 = vrot.slane %v1079, 4
  %v1085 = vshrl.u32 %v1058, 16
  %v1087 = vrot.slane %v1085, 7
  %v1088 = vshll.u32 %v1058, 16
  %v1090 = vor.u32 %v1087, %v1088
  %v1091 = vsel %vm304, %v1083, %v1090
  %v1092 = vrot.slane %v1087, 4
  %1093 = vrot.lane.b32.xlu0 %v1065, 8
  %v1094 = vpop.permute.xlu0 %1093
  %1095 = vrot.lane.b32.xlu0 %v1074, 8
  %v1096 = vpop.permute.xlu0 %1095
  %1097 = vrot.lane.b32.xlu0 %v1075, 8
  %v1098 = vpop.permute.xlu0 %1097
  %1099 = vrot.lane.b32.xlu0 %v1082, 8
  %v1100 = vpop.permute.xlu0 %1099
  %1101 = vrot.lane.b32.xlu0 %v1091, 8
  %v1102 = vpop.permute.xlu0 %1101
  %1103 = vrot.lane.b32.xlu0 %v1092, 8
  %v1104 = vpop.permute.xlu0 %1103
  %v1105 = vrot.slane %v1094, 4
  %v1106 = vrot.slane %v1096, 4
  %v1107 = vrot.slane %v1098, 4
  %v1108 = vrot.slane %v1100, 4
  %v1109 = vrot.slane %v1102, 4
  %v1110 = vrot.slane %v1104, 4
  %vm1111 = vcmask 64512
  %v1112 = vsel %vm1111, %v1105, %v1094
  %v1113 = vsel %vm1111, %v1106, %v1096
  %v1114 = vsel %vm1111, %v1107, %v1098
  %v1115 = vsel %vm1111, %v1108, %v1100
  %v1116 = vsel %vm1111, %v1109, %v1102
  %v1117 = vsel %vm1111, %v1110, %v1104
  %vm1124 = vcmask 1043520
  %vm1125 = vmand %vm1124, %vm76
  %vm1126 = vcmask 64516
  %vm1127 = vmand %vm1126, %vm113
  %vm1128 = vmor %vm1127, %vm1125
  %v1129 = vld [vmem:[#allocation3] sm:$0xff]
  %v1130 = vsel %vm1128, %v1112, %v1129
  %1131 = vst [vmem:[#allocation3] sm:$0xff] %v1130
  %vm1132 = vcmask 1043520
  %vm1133 = vcmask 64516
  %vm1134 = vmor %vm1133, %vm1132
  %1135 = vst.msk [vmem:[#allocation3 + $0x8] sm:$0xff] %vm1134, %v1113
  %vm1136 = vcmask 1040448
  %vm1137 = vmand %vm1136, %vm68
  %vm1138 = vcmask 61444
  %vm1139 = vmand %vm1138, %vm103
  %vm1140 = vmor %vm1139, %vm1137
  %v1141 = vld [vmem:[#allocation3 + $0x10] sm:$0x11]
  %v1142 = vsel %vm1140, %v1114, %v1141
  %1143 = vst [vmem:[#allocation3 + $0x10] sm:$0x11] %v1142
  %v1144 = vld [vmem:[#allocation3 + $0x18] sm:$0xff]
  %v1145 = vsel %vm1128, %v1115, %v1144
  %1146 = vst [vmem:[#allocation3 + $0x18] sm:$0xff] %v1145
  %1147 = vst.msk [vmem:[#allocation3 + $0x20] sm:$0xff] %vm1134, %v1116
  %v1148 = vld [vmem:[#allocation3 + $0x28] sm:$0x11]
  %v1149 = vsel %vm1140, %v1117, %v1148
  %1150 = vst [vmem:[#allocation3 + $0x28] sm:$0x11] %v1149
  %v1151 = vld [vmem:[#allocation3] sm:$0xff]
  %v1152 = vld [vmem:[#allocation3 + $0x8] sm:$0xff]
  %v1153 = vld [vmem:[#allocation3 + $0x18] sm:$0xff]
  %v1154 = vld [vmem:[#allocation3 + $0x20] sm:$0xff]
  %v1159 = vunpack.c.l.b16 %v1151
  %v1160 = vunpack.c.h.b16 %v1151
  %v1161 = vunpack.c.l.b16 %v1152
  %v1162 = vunpack.c.h.b16 %v1152
  %v1163 = vunpack.c.l.b16 %v1153
  %v1164 = vunpack.c.h.b16 %v1153
  %v1165 = vunpack.c.l.b16 %v1154
  %v1166 = vunpack.c.h.b16 %v1154
  %v1167 = vpack.c.b16 %v1161, %v1159
  %v1168 = vpack.c.b16 %v1162, %v1160
  %v1169 = vpack.c.b16 %v1165, %v1163
  %v1170 = vpack.c.b16 %v1166, %v1164
  %1175 = vst [vmem:[#allocation4] sm:$0xff] %v1167
  %1176 = vst.msk [vmem:[#allocation4 + $0x8] sm:$0xff] %vm450, %v1168
  %1177 = vst [vmem:[#allocation4 + $0x38] sm:$0xff] %v1169
  %1178 = vst.msk [vmem:[#allocation4 + $0x40] sm:$0xff] %vm450, %v1170
  %v1179 = vld [vmem:[#allocation3] sm:$0xff]
  %v1180 = vld [vmem:[#allocation3 + $0x8] sm:$0xff]
  %v1181 = vld [vmem:[#allocation3 + $0x10] sm:$0x11]
  %v1182 = vld [vmem:[#allocation3 + $0x18] sm:$0xff]
  %v1183 = vld [vmem:[#allocation3 + $0x20] sm:$0xff]
  %v1184 = vld [vmem:[#allocation3 + $0x28] sm:$0x11]
  %v1191 = vunpack.c.l.b16 %v1179
  %v1192 = vunpack.c.h.b16 %v1179
  %v1193 = vunpack.c.l.b16 %v1180
  %v1194 = vunpack.c.h.b16 %v1180
  %v1195 = vunpack.c.l.b16 %v1181
  %v1196 = vunpack.c.h.b16 %v1181
  %v1197 = vunpack.c.l.b16 %v1182
  %v1198 = vunpack.c.h.b16 %v1182
  %v1199 = vunpack.c.l.b16 %v1183
  %v1200 = vunpack.c.h.b16 %v1183
  %v1201 = vunpack.c.l.b16 %v1184
  %v1202 = vunpack.c.h.b16 %v1184
  %v1203 = vpack.c.b16 %v1193, %v1191
  %v1204 = vpack.c.b16 %v1194, %v1192
  %v1205 = vpack.c.b16 %v1195, %v1195
  %v1206 = vpack.c.b16 %v1196, %v1196
  %v1207 = vpack.c.b16 %v1199, %v1197
  %v1208 = vpack.c.b16 %v1200, %v1198
  %v1209 = vpack.c.b16 %v1201, %v1201
  %v1210 = vpack.c.b16 %v1202, %v1202
  %v1212 = vshrl.u32 %v1203, 16
  %v1214 = vshll.u32 %v1203, 16
  %v1216 = vrot.slane %v1214, 1
  %v1217 = vor.u32 %v1212, %v1216
  %v1219 = vshll.u32 %v1205, 16
  %v1221 = vrot.slane %v1219, 1
  %v1222 = vsel %vm417, %v1217, %v1221
  %v1224 = vshrl.u32 %v1204, 16
  %v1226 = vshll.u32 %v1204, 16
  %v1228 = vrot.slane %v1226, 1
  %v1229 = vor.u32 %v1224, %v1228
  %v1231 = vshll.u32 %v1206, 16
  %v1233 = vrot.slane %v1231, 1
  %v1234 = vsel %vm417, %v1229, %v1233
  %v1236 = vshrl.u32 %v1207, 16
  %v1238 = vshll.u32 %v1207, 16
  %v1240 = vrot.slane %v1238, 1
  %v1241 = vor.u32 %v1236, %v1240
  %v1243 = vshll.u32 %v1209, 16
  %v1245 = vrot.slane %v1243, 1
  %v1246 = vsel %vm417, %v1241, %v1245
  %v1248 = vshrl.u32 %v1208, 16
  %v1250 = vshll.u32 %v1208, 16
  %v1252 = vrot.slane %v1250, 1
  %v1253 = vor.u32 %v1248, %v1252
  %v1255 = vshll.u32 %v1210, 16
  %v1257 = vrot.slane %v1255, 1
  %v1258 = vsel %vm417, %v1253, %v1257
  %1259 = vrot.lane.b32.xlu0 %v1222, 16
  %v1260 = vpop.permute.xlu0 %1259
  %1261 = vrot.lane.b32.xlu0 %v1234, 16
  %v1262 = vpop.permute.xlu0 %1261
  %1263 = vrot.lane.b32.xlu0 %v1246, 16
  %v1264 = vpop.permute.xlu0 %1263
  %1265 = vrot.lane.b32.xlu0 %v1258, 16
  %v1266 = vpop.permute.xlu0 %1265
  %vm1267 = vcmask 130048
  %v1268 = vsel %vm1267, %v1260, %v1262
  %v1269 = vsel %vm1267, %v1264, %v1266
  %vm1274 = vcmask 1047680
  %1275 = vst.msk [vmem:[#allocation4 + $0x8] sm:$0xff] %vm1274, %v1260
  %1276 = vst.msk [vmem:[#allocation4 + $0x10] sm:$0xff] %vm150, %v1268
  %1277 = vst.msk [vmem:[#allocation4 + $0x40] sm:$0xff] %vm1274, %v1264
  %1278 = vst.msk [vmem:[#allocation4 + $0x48] sm:$0xff] %vm150, %v1269
  %v1279 = vld [vmem:[#allocation3] sm:$0xee]
  %v1280 = vld [vmem:[#allocation3 + $0x8] sm:$0xff]
  %v1281 = vld [vmem:[#allocation3 + $0x10] sm:$0x11]
  %v1282 = vld [vmem:[#allocation3 + $0x18] sm:$0xee]
  %v1283 = vld [vmem:[#allocation3 + $0x20] sm:$0xff]
  %v1284 = vld [vmem:[#allocation3 + $0x28] sm:$0x11]
  %v1291 = vunpack.c.l.b16 %v1279
  %v1292 = vunpack.c.h.b16 %v1279
  %v1293 = vunpack.c.l.b16 %v1280
  %v1294 = vunpack.c.h.b16 %v1280
  %v1295 = vunpack.c.l.b16 %v1281
  %v1296 = vunpack.c.h.b16 %v1281
  %v1297 = vunpack.c.l.b16 %v1282
  %v1298 = vunpack.c.h.b16 %v1282
  %v1299 = vunpack.c.l.b16 %v1283
  %v1300 = vunpack.c.h.b16 %v1283
  %v1301 = vunpack.c.l.b16 %v1284
  %v1302 = vunpack.c.h.b16 %v1284
  %v1303 = vpack.c.b16 %v1293, %v1291
  %v1304 = vpack.c.b16 %v1294, %v1292
  %v1305 = vpack.c.b16 %v1295, %v1295
  %v1306 = vpack.c.b16 %v1296, %v1296
  %v1307 = vpack.c.b16 %v1299, %v1297
  %v1308 = vpack.c.b16 %v1300, %v1298
  %v1309 = vpack.c.b16 %v1301, %v1301
  %v1310 = vpack.c.b16 %v1302, %v1302
  %v1311 = vrot.slane %v1303, 1
  %v1312 = vrot.slane %v1305, 1
  %v1313 = vsel %vm476, %v1311, %v1312
  %v1314 = vrot.slane %v1304, 1
  %v1315 = vrot.slane %v1306, 1
  %v1316 = vsel %vm476, %v1314, %v1315
  %v1317 = vrot.slane %v1307, 1
  %v1318 = vrot.slane %v1309, 1
  %v1319 = vsel %vm476, %v1317, %v1318
  %v1320 = vrot.slane %v1308, 1
  %v1321 = vrot.slane %v1310, 1
  %v1322 = vsel %vm476, %v1320, %v1321
  %1323 = vrot.lane.b32.xlu0 %v1313, 32
  %v1324 = vpop.permute.xlu0 %1323
  %1325 = vrot.lane.b32.xlu0 %v1316, 32
  %v1326 = vpop.permute.xlu0 %1325
  %1327 = vrot.lane.b32.xlu0 %v1319, 32
  %v1328 = vpop.permute.xlu0 %1327
  %1329 = vrot.lane.b32.xlu0 %v1322, 32
  %v1330 = vpop.permute.xlu0 %1329
  %vm1331 = vcmask 261120
  %v1332 = vsel %vm1331, %v1324, %v1326
  %v1333 = vsel %vm1331, %v1328, %v1330
  %vm1338 = vcmask 1047808
  %1339 = vst.msk [vmem:[#allocation4 + $0x10] sm:$0xff] %vm1338, %v1324
  %vm1340 = vcmask 392192
  %1341 = vst.msk [vmem:[#allocation4 + $0x18] sm:$0xff] %vm1340, %v1332
  %1342 = vst.msk [vmem:[#allocation4 + $0x48] sm:$0xff] %vm1338, %v1328
  %1343 = vst.msk [vmem:[#allocation4 + $0x50] sm:$0xff] %vm1340, %v1333
  %v1344 = vld [vmem:[#allocation4] sm:$0xff]
  %v1345 = vld [vmem:[#allocation4 + $0x8] sm:$0xff]
  %v1346 = vld [vmem:[#allocation4 + $0x10] sm:$0xff]
  %v1347 = vld [vmem:[#allocation4 + $0x18] sm:$0xff]
  %v1348 = vld [vmem:[#allocation4 + $0x38] sm:$0xff]
  %v1349 = vld [vmem:[#allocation4 + $0x40] sm:$0xff]
  %v1350 = vld [vmem:[#allocation4 + $0x48] sm:$0xff]
  %v1351 = vld [vmem:[#allocation4 + $0x50] sm:$0xff]
  %v1352 = vld [vmem:[%s4] sm:$0xf]
  %v1353 = vld [vmem:[%s4 + $0x4] sm:$0xf]
  %v1354 = vld [vmem:[%s4 + $0x8] sm:$0xf]
  %v1355 = vld [vmem:[%s4 + $0xc] sm:$0xf]
  %v1356 = vld [vmem:[%s4 + $0x10] sm:$0xf]
  %v1357 = vld [vmem:[%s4 + $0x14] sm:$0xf]
  %v1358 = vld [vmem:[%s4 + $0x18] sm:$0xf]
  %v1359 = vld [vmem:[%s4 + $0x1c] sm:$0xf]
  %v1360 = vld [vmem:[%s4 + $0x20] sm:$0xf]
  %v1361 = vld [vmem:[%s4 + $0x24] sm:$0xf]
  %v1362 = vld [vmem:[%s4 + $0x28] sm:$0xf]
  %v1363 = vld [vmem:[%s4 + $0x2c] sm:$0xf]
  %v1364 = vld [vmem:[%s4 + $0x30] sm:$0xf]
  %v1365 = vld [vmem:[%s4 + $0x34] sm:$0xf]
  %v1366 = vld [vmem:[%s4 + $0x38] sm:$0xf]
  %v1367 = vld [vmem:[%s4 + $0x3c] sm:$0xf]
  %v1368 = vld [vmem:[%s4 + $0x40] sm:$0xf]
  %v1369 = vld [vmem:[%s4 + $0x44] sm:$0xf]
  %v1370 = vld [vmem:[%s4 + $0x48] sm:$0xf]
  %v1371 = vld [vmem:[%s4 + $0x4c] sm:$0xf]
  %v1372 = vld [vmem:[%s4 + $0x50] sm:$0xf]
  %v1373 = vld [vmem:[%s4 + $0x54] sm:$0xf]
  %v1374 = vld [vmem:[%s4 + $0x58] sm:$0xf]
  %v1375 = vld [vmem:[%s4 + $0x5c] sm:$0xf]
  %v1376 = vld [vmem:[%s4 + $0x60] sm:$0xf]
  %v1377 = vld [vmem:[%s4 + $0x64] sm:$0xf]
  %v1378 = vld [vmem:[%s4 + $0x68] sm:$0xf]
  %v1379 = vld [vmem:[%s4 + $0x6c] sm:$0xf]
  %v1380 = vld [vmem:[%s4 + $0x70] sm:$0xf]
  %v1381 = vld [vmem:[%s4 + $0x74] sm:$0xf]
  %v1382 = vld [vmem:[%s4 + $0x78] sm:$0xf]
  %v1383 = vld [vmem:[%s4 + $0x7c] sm:$0xf]
  %v1384 = vld [vmem:[%s4 + $0x80] sm:$0xf]
  %v1385 = vld [vmem:[%s4 + $0x84] sm:$0xf]
  %v1386 = vld [vmem:[%s4 + $0x88] sm:$0xf]
  %v1387 = vld [vmem:[%s4 + $0x8c] sm:$0xf]
  %v1388 = vld [vmem:[%s4 + $0x90] sm:$0xf]
  %v1389 = vld [vmem:[%s4 + $0x94] sm:$0xf]
  %v1390 = vld [vmem:[%s4 + $0x98] sm:$0xf]
  %v1391 = vld [vmem:[%s4 + $0x9c] sm:$0xf]
  %v1392 = vld [vmem:[%s4 + $0xa0] sm:$0xf]
  %v1393 = vld [vmem:[%s4 + $0xa4] sm:$0xf]
  %v1394 = vld [vmem:[%s4 + $0xa8] sm:$0xf]
  %v1395 = vld [vmem:[%s4 + $0xac] sm:$0xf]
  %v1396 = vld [vmem:[%s4 + $0xb0] sm:$0xf]
  %v1397 = vld [vmem:[%s4 + $0xb4] sm:$0xf]
  %v1398 = vld [vmem:[%s4 + $0xb8] sm:$0xf]
  %v1399 = vld [vmem:[%s4 + $0xbc] sm:$0xf]
  %v1400 = vld [vmem:[%s4 + $0xc0] sm:$0xf]
  %v1401 = vld [vmem:[%s4 + $0xc4] sm:$0xf]
  %v1402 = vld [vmem:[%s4 + $0xc8] sm:$0xf]
  %v1403 = vld [vmem:[%s4 + $0xcc] sm:$0xf]
  %v1404 = vld [vmem:[%s4 + $0xd0] sm:$0xf]
  %v1405 = vld [vmem:[%s4 + $0xd4] sm:$0xf]
  %v1406 = vld [vmem:[%s5] sm:$0x1]
  %v1408 = vlaneseq
  %v1409 = vshrl.u32 %v1408, 7
  %v1410 = vsub.s32 0, %v1409
  %v1411 = vrot.slane %v1406, %v1410
  %v1467 = vunpack.c.l.b16 %v1352
  %v1468 = vunpack.c.l.b16 %v1353
  %v1469 = vunpack.c.l.b16 %v1354
  %v1470 = vunpack.c.l.b16 %v1355
  %v1471 = vunpack.c.l.b16 %v1356
  %v1472 = vunpack.c.l.b16 %v1357
  %v1473 = vunpack.c.l.b16 %v1358
  %v1474 = vunpack.c.l.b16 %v1359
  %v1475 = vunpack.c.l.b16 %v1360
  %v1476 = vunpack.c.l.b16 %v1361
  %v1477 = vunpack.c.l.b16 %v1362
  %v1478 = vunpack.c.l.b16 %v1363
  %v1479 = vunpack.c.l.b16 %v1364
  %v1480 = vunpack.c.l.b16 %v1365
  %v1481 = vunpack.c.l.b16 %v1366
  %v1482 = vunpack.c.l.b16 %v1367
  %v1483 = vunpack.c.l.b16 %v1368
  %v1484 = vunpack.c.l.b16 %v1369
  %v1485 = vunpack.c.l.b16 %v1370
  %v1486 = vunpack.c.l.b16 %v1371
  %v1487 = vunpack.c.l.b16 %v1372
  %v1488 = vunpack.c.l.b16 %v1373
  %v1489 = vunpack.c.l.b16 %v1374
  %v1490 = vunpack.c.l.b16 %v1375
  %v1491 = vunpack.c.l.b16 %v1376
  %v1492 = vunpack.c.l.b16 %v1377
  %v1493 = vunpack.c.l.b16 %v1378
  %v1494 = vunpack.c.l.b16 %v1379
  %v1495 = vunpack.c.l.b16 %v1380
  %v1496 = vunpack.c.l.b16 %v1381
  %v1497 = vunpack.c.l.b16 %v1382
  %v1498 = vunpack.c.l.b16 %v1383
  %v1499 = vunpack.c.l.b16 %v1384
  %v1500 = vunpack.c.l.b16 %v1385
  %v1501 = vunpack.c.l.b16 %v1386
  %v1502 = vunpack.c.l.b16 %v1387
  %v1503 = vunpack.c.l.b16 %v1388
  %v1504 = vunpack.c.l.b16 %v1389
  %v1505 = vunpack.c.l.b16 %v1390
  %v1506 = vunpack.c.l.b16 %v1391
  %v1507 = vunpack.c.l.b16 %v1392
  %v1508 = vunpack.c.l.b16 %v1393
  %v1509 = vunpack.c.l.b16 %v1394
  %v1510 = vunpack.c.l.b16 %v1395
  %v1511 = vunpack.c.l.b16 %v1396
  %v1512 = vunpack.c.l.b16 %v1397
  %v1513 = vunpack.c.l.b16 %v1398
  %v1514 = vunpack.c.l.b16 %v1399
  %v1515 = vunpack.c.l.b16 %v1400
  %v1516 = vunpack.c.l.b16 %v1401
  %v1517 = vunpack.c.l.b16 %v1402
  %v1518 = vunpack.c.l.b16 %v1403
  %v1519 = vunpack.c.l.b16 %v1404
  %v1520 = vunpack.c.l.b16 %v1405
  %v1521 = vpack.c.b16 %v1468, %v1467
  %v1522 = vpack.c.b16 %v1470, %v1469
  %v1523 = vpack.c.b16 %v1472, %v1471
  %v1524 = vpack.c.b16 %v1474, %v1473
  %v1525 = vpack.c.b16 %v1476, %v1475
  %v1526 = vpack.c.b16 %v1478, %v1477
  %v1527 = vpack.c.b16 %v1480, %v1479
  %v1528 = vpack.c.b16 %v1482, %v1481
  %v1529 = vpack.c.b16 %v1484, %v1483
  %v1530 = vpack.c.b16 %v1486, %v1485
  %v1531 = vpack.c.b16 %v1488, %v1487
  %v1532 = vpack.c.b16 %v1490, %v1489
  %v1533 = vpack.c.b16 %v1492, %v1491
  %v1534 = vpack.c.b16 %v1494, %v1493
  %v1535 = vpack.c.b16 %v1496, %v1495
  %v1536 = vpack.c.b16 %v1498, %v1497
  %v1537 = vpack.c.b16 %v1500, %v1499
  %v1538 = vpack.c.b16 %v1502, %v1501
  %v1539 = vpack.c.b16 %v1504, %v1503
  %v1540 = vpack.c.b16 %v1506, %v1505
  %v1541 = vpack.c.b16 %v1508, %v1507
  %v1542 = vpack.c.b16 %v1510, %v1509
  %v1543 = vpack.c.b16 %v1512, %v1511
  %v1544 = vpack.c.b16 %v1514, %v1513
  %v1545 = vpack.c.b16 %v1516, %v1515
  %v1546 = vpack.c.b16 %v1518, %v1517
  %v1547 = vpack.c.b16 %v1520, %v1519
  %v1576 = vsel %vm1340, %v1347, 0
  %v1579 = vsel %vm1340, %v1351, 0
  %1581 = vmatprep.subr.bf16.mxu0 0
  %1582 = vmatpush1.bf16.msra.mxu0 %v1521
  %1583 = vmatprep.subr.bf16.mxu0 0
  %1584 = vmatpush1.bf16.msra.mxu0 %v1522
  %1585 = vmatprep.subr.bf16.mxu0 0
  %1586 = vmatpush1.bf16.msra.mxu0 %v1523
  %1587 = vmatprep.subr.bf16.mxu0 0
  %1588 = vmatpush1.bf16.msra.mxu0 %v1524
  %1589 = vmatprep.subr.bf16.mxu0 0
  %1590 = vmatpush1.bf16.msra.mxu0 %v1525
  %1591 = vmatprep.subr.bf16.mxu0 0
  %1592 = vmatpush1.bf16.msra.mxu0 %v1526
  %1593 = vmatprep.subr.bf16.mxu0 0
  %1594 = vmatpush1.bf16.msra.mxu0 %v1527
  %1595 = vmatprep.subr.bf16.mxu0 0
  %1596 = vmatpush1.bf16.msra.mxu0 %v1528
  %1597 = vmatprep.subr.bf16.mxu0 0
  %1598 = vmatpush1.bf16.msra.mxu0 %v1529
  %1599 = vmatprep.subr.bf16.mxu0 0
  %1600 = vmatpush1.bf16.msra.mxu0 %v1530
  %1601 = vmatprep.subr.bf16.mxu0 0
  %1602 = vmatpush1.bf16.msra.mxu0 %v1531
  %1603 = vmatprep.subr.bf16.mxu0 0
  %1604 = vmatpush1.bf16.msra.mxu0 %v1532
  %1605 = vmatprep.subr.bf16.mxu0 0
  %1606 = vmatpush1.bf16.msra.mxu0 %v1533
  %1607 = vmatprep.subr.bf16.mxu0 0
  %1608 = vmatpush1.bf16.msra.mxu0 %v1534
  %1609 = vmatprep.subr.bf16.mxu0 0
  %1610 = vmatpush1.bf16.msra.mxu0 %v1535
  %1611 = vmatprep.subr.bf16.mxu0 0
  %1612 = vmatpush1.bf16.msra.mxu0 %v1536
  %1613 = vmatprep.mubr.bf16.mxu0 %v1345
  %1614 = vmatmul.mubr.bf16.gmra.mrb[0].mxu0 %v1344
  %v1615 = vpop.f32.mrb[0].mxu0
  %v1616 = vadd.f32 %v1411, %v1615
  %v1617 = vpop.f32.mrb[0].mxu0
  %v1618 = vpop.f32.mrb[0].mxu0
  %v1619 = vadd.f32 %v1411, %v1618
  %v1620 = vpop.f32.mrb[0].mxu0
  %1621 = vmatprep.mubr.bf16.mxu0 %v1349
  %1622 = vmatmul.mubr.bf16.gmra.mrb[0].mxu0 %v1348
  %v1623 = vpop.f32.mrb[0].mxu0
  %v1624 = vadd.f32 %v1411, %v1623
  %v1625 = vpop.f32.mrb[0].mxu0
  %v1626 = vpop.f32.mrb[0].mxu0
  %v1627 = vadd.f32 %v1411, %v1626
  %v1628 = vpop.f32.mrb[0].mxu0
  %1629 = vdwg.mxu0
  %1630 = vmatprep.subr.bf16.mxu0 0
  %1631 = vmatpush1.bf16.msra.mxu0 %v1537
  %1632 = vmatprep.subr.bf16.mxu0 0
  %1633 = vmatpush1.bf16.msra.mxu0 %v1538
  %1634 = vmatprep.subr.bf16.mxu0 0
  %1635 = vmatpush1.bf16.msra.mxu0 %v1539
  %1636 = vmatprep.subr.bf16.mxu0 0
  %1637 = vmatpush1.bf16.msra.mxu0 %v1540
  %1638 = vmatprep.subr.bf16.mxu0 0
  %1639 = vmatpush1.bf16.msra.mxu0 %v1541
  %1640 = vmatprep.subr.bf16.mxu0 0
  %1641 = vmatpush1.bf16.msra.mxu0 %v1542
  %1642 = vmatprep.subr.bf16.mxu0 0
  %1643 = vmatpush1.bf16.msra.mxu0 %v1543
  %1644 = vmatprep.subr.bf16.mxu0 0
  %1645 = vmatpush1.bf16.msra.mxu0 %v1544
  %1646 = vmatprep.subr.bf16.mxu0 0
  %1647 = vmatpush1.bf16.msra.mxu0 %v1545
  %1648 = vmatprep.subr.bf16.mxu0 0
  %1649 = vmatpush1.bf16.msra.mxu0 %v1546
  %1650 = vmatprep.subr.bf16.mxu0 0
  %1651 = vmatpush1.bf16.msra.mxu0 %v1547
  %1652 = vmatprep.subr.bf16.mxu0 0
  %1653 = vmatpush1.bf16.msra.mxu0 0
  %1654 = vmatprep.subr.bf16.mxu0 0
  %1655 = vmatpush1.bf16.msra.mxu0 0
  %1656 = vmatprep.subr.bf16.mxu0 0
  %1657 = vmatpush1.bf16.msra.mxu0 0
  %1658 = vmatprep.subr.bf16.mxu0 0
  %1659 = vmatpush1.bf16.msra.mxu0 0
  %1660 = vmatprep.subr.bf16.mxu0 0
  %1661 = vmatpush1.bf16.msra.mxu0 0
  %1662 = vmatprep.mubr.bf16.mxu0 %v1576
  %1663 = vmatmul.mubr.bf16.gmra.mrb[0].mxu0 %v1346
  %v1664 = vpop.f32.mrb[0].mxu0
  %v1665 = vadd.f32 %v1616, %v1664
  %v1666 = vpop.f32.mrb[0].mxu0
  %v1667 = vpop.f32.mrb[0].mxu0
  %v1668 = vadd.f32 %v1619, %v1667
  %v1669 = vpop.f32.mrb[0].mxu0
  %1670 = vmatprep.mubr.bf16.mxu0 %v1579
  %1671 = vmatmul.mubr.bf16.gmra.mrb[0].mxu0 %v1350
  %v1672 = vpop.f32.mrb[0].mxu0
  %v1673 = vadd.f32 %v1624, %v1672
  %v1674 = vpop.f32.mrb[0].mxu0
  %v1675 = vpop.f32.mrb[0].mxu0
  %v1676 = vadd.f32 %v1627, %v1675
  %v1677 = vpop.f32.mrb[0].mxu0
  %1678 = vdwg.mxu0
  %v1679 = vmax.f32 %v1665, 0.0
  %v1680 = vmax.f32 %v1668, 0.0
  %v1681 = vmax.f32 %v1673, 0.0
  %v1682 = vmax.f32 %v1676, 0.0
  %v1683 = vadd.f32 %v1679, %v1680
  %v1684 = vadd.f32 %v1683, %v1681
  %v1685 = vadd.f32 %v1684, %v1682
  %v1686 = vrot.slane %v1685, 4
  %v1687 = vadd.f32 %v1685, %v1686
  %v1688 = vrot.slane %v1687, 2
  %v1689 = vadd.f32 %v1687, %v1688
  %v1690 = vrot.slane %v1689, 1
  %v1691 = vadd.f32 %v1689, %v1690
  %v1692 = vmul.f32 %v1679, %v1679
  %v1693 = vmul.f32 %v1680, %v1680
  %v1694 = vmul.f32 %v1681, %v1681
  %v1695 = vmul.f32 %v1682, %v1682
  %v1696 = vadd.f32 %v1692, %v1693
  %v1697 = vadd.f32 %v1696, %v1694
  %v1698 = vadd.f32 %v1697, %v1695
  %v1699 = vrot.slane %v1698, 4
  %v1700 = vadd.f32 %v1698, %v1699
  %v1701 = vrot.slane %v1700, 2
  %v1702 = vadd.f32 %v1700, %v1701
  %v1703 = vrot.slane %v1702, 1
  %v1704 = vadd.f32 %v1702, %v1703
  %1705 = vmatprep.subr.mxu0 0.0
  %1706 = vmatpush1.msra.mxu0 %v48
  %1707 = vmatprep.subr.mxu0 0.0
  %1708 = vmatpush1.msra.mxu0 %v49
  %1709 = vmatprep.subr.mxu0 0.0
  %1710 = vmatpush1.msra.mxu0 %v50
  %1711 = vmatprep.subr.mxu0 0.0
  %1712 = vmatpush1.msra.mxu0 %v51
  %1713 = vmatprep.subr.mxu0 0.0
  %1714 = vmatpush1.msra.mxu0 %v52
  %1715 = vmatprep.subr.mxu0 0.0
  %1716 = vmatpush1.msra.mxu0 %v53
  %1717 = vmatprep.subr.mxu0 0.0
  %1718 = vmatpush1.msra.mxu0 %v54
  %1719 = vmatprep.subr.mxu0 0.0
  %1720 = vmatpush1.msra.mxu0 %v55
  %1721 = vmatprep.subr.mxu0 0.0
  %1722 = vmatpush1.msra.mxu0 %v56
  %1723 = vmatprep.subr.mxu0 0.0
  %1724 = vmatpush1.msra.mxu0 %v57
  %1725 = vmatprep.subr.mxu0 0.0
  %1726 = vmatpush1.msra.mxu0 %v58
  %1727 = vmatprep.subr.mxu0 0.0
  %1728 = vmatpush1.msra.mxu0 %v59
  %1729 = vmatprep.subr.mxu0 0.0
  %1730 = vmatpush1.msra.mxu0 %v60
  %1731 = vmatprep.subr.mxu0 0.0
  %1732 = vmatpush1.msra.mxu0 %v61
  %1733 = vmatprep.subr.mxu0 0.0
  %1734 = vmatpush1.msra.mxu0 %v62
  %1735 = vmatprep.subr.mxu0 0.0
  %1736 = vmatpush1.msra.mxu0 %v63
  %1737 = vmatprep.subr.mxu0 0.0
  %1738 = vmatpush1.msra.mxu0 0.0
  %1739 = vmatprep.subr.mxu0 0.0
  %1740 = vmatpush1.msra.mxu0 0.0
  %1741 = vmatprep.subr.mxu0 0.0
  %1742 = vmatpush1.msra.mxu0 0.0
  %1743 = vmatprep.subr.mxu0 0.0
  %1744 = vmatpush1.msra.mxu0 0.0
  %1745 = vmatprep.subr.mxu0 0.0
  %1746 = vmatpush1.msra.mxu0 0.0
  %1747 = vmatprep.subr.mxu0 0.0
  %1748 = vmatpush1.msra.mxu0 0.0
  %1749 = vmatprep.subr.mxu0 0.0
  %1750 = vmatpush1.msra.mxu0 0.0
  %1751 = vmatprep.subr.mxu0 0.0
  %1752 = vmatpush1.msra.mxu0 0.0
  %1753 = vmatprep.subr.mxu0 0.0
  %1754 = vmatpush1.msra.mxu0 0.0
  %1755 = vmatprep.subr.mxu0 0.0
  %1756 = vmatpush1.msra.mxu0 0.0
  %1757 = vmatprep.subr.mxu0 0.0
  %1758 = vmatpush1.msra.mxu0 0.0
  %1759 = vmatprep.subr.mxu0 0.0
  %1760 = vmatpush1.msra.mxu0 0.0
  %1761 = vmatprep.subr.mxu0 0.0
  %1762 = vmatpush1.msra.mxu0 0.0
  %1763 = vmatprep.subr.mxu0 0.0
  %1764 = vmatpush1.msra.mxu0 0.0
  %1765 = vmatprep.subr.mxu0 0.0
  %1766 = vmatpush1.msra.mxu0 0.0
  %1767 = vmatprep.subr.mxu0 0.0
  %1768 = vmatpush1.msra.mxu0 0.0
  %1769 = vmatprep.mubr.f32.mxu0 0.0
  %1770 = vmatmul.mubr.f32.gmra.mrb[0].mxu0 %v1691
  %v1771 = vpop.f32.mrb[0].mxu0
  %v1772 = vadd.f32 0.0, %v1771
  %v1773 = vpop.f32.mrb[0].mxu0
  %1774 = vdwg.mxu0
  %1775 = vmatprep.subr.mxu0 0.0
  %1776 = vmatpush1.msra.mxu0 %v48
  %1777 = vmatprep.subr.mxu0 0.0
  %1778 = vmatpush1.msra.mxu0 %v49
  %1779 = vmatprep.subr.mxu0 0.0
  %1780 = vmatpush1.msra.mxu0 %v50
  %1781 = vmatprep.subr.mxu0 0.0
  %1782 = vmatpush1.msra.mxu0 %v51
  %1783 = vmatprep.subr.mxu0 0.0
  %1784 = vmatpush1.msra.mxu0 %v52
  %1785 = vmatprep.subr.mxu0 0.0
  %1786 = vmatpush1.msra.mxu0 %v53
  %1787 = vmatprep.subr.mxu0 0.0
  %1788 = vmatpush1.msra.mxu0 %v54
  %1789 = vmatprep.subr.mxu0 0.0
  %1790 = vmatpush1.msra.mxu0 %v55
  %1791 = vmatprep.subr.mxu0 0.0
  %1792 = vmatpush1.msra.mxu0 %v56
  %1793 = vmatprep.subr.mxu0 0.0
  %1794 = vmatpush1.msra.mxu0 %v57
  %1795 = vmatprep.subr.mxu0 0.0
  %1796 = vmatpush1.msra.mxu0 %v58
  %1797 = vmatprep.subr.mxu0 0.0
  %1798 = vmatpush1.msra.mxu0 %v59
  %1799 = vmatprep.subr.mxu0 0.0
  %1800 = vmatpush1.msra.mxu0 %v60
  %1801 = vmatprep.subr.mxu0 0.0
  %1802 = vmatpush1.msra.mxu0 %v61
  %1803 = vmatprep.subr.mxu0 0.0
  %1804 = vmatpush1.msra.mxu0 %v62
  %1805 = vmatprep.subr.mxu0 0.0
  %1806 = vmatpush1.msra.mxu0 %v63
  %1807 = vmatprep.subr.mxu0 0.0
  %1808 = vmatpush1.msra.mxu0 0.0
  %1809 = vmatprep.subr.mxu0 0.0
  %1810 = vmatpush1.msra.mxu0 0.0
  %1811 = vmatprep.subr.mxu0 0.0
  %1812 = vmatpush1.msra.mxu0 0.0
  %1813 = vmatprep.subr.mxu0 0.0
  %1814 = vmatpush1.msra.mxu0 0.0
  %1815 = vmatprep.subr.mxu0 0.0
  %1816 = vmatpush1.msra.mxu0 0.0
  %1817 = vmatprep.subr.mxu0 0.0
  %1818 = vmatpush1.msra.mxu0 0.0
  %1819 = vmatprep.subr.mxu0 0.0
  %1820 = vmatpush1.msra.mxu0 0.0
  %1821 = vmatprep.subr.mxu0 0.0
  %1822 = vmatpush1.msra.mxu0 0.0
  %1823 = vmatprep.subr.mxu0 0.0
  %1824 = vmatpush1.msra.mxu0 0.0
  %1825 = vmatprep.subr.mxu0 0.0
  %1826 = vmatpush1.msra.mxu0 0.0
  %1827 = vmatprep.subr.mxu0 0.0
  %1828 = vmatpush1.msra.mxu0 0.0
  %1829 = vmatprep.subr.mxu0 0.0
  %1830 = vmatpush1.msra.mxu0 0.0
  %1831 = vmatprep.subr.mxu0 0.0
  %1832 = vmatpush1.msra.mxu0 0.0
  %1833 = vmatprep.subr.mxu0 0.0
  %1834 = vmatpush1.msra.mxu0 0.0
  %1835 = vmatprep.subr.mxu0 0.0
  %1836 = vmatpush1.msra.mxu0 0.0
  %1837 = vmatprep.subr.mxu0 0.0
  %1838 = vmatpush1.msra.mxu0 0.0
  %1839 = vmatprep.mubr.f32.mxu0 0.0
  %1840 = vmatmul.mubr.f32.gmra.mrb[0].mxu0 %v1704
  %v1841 = vpop.f32.mrb[0].mxu0
  %v1842 = vadd.f32 0.0, %v1841
  %v1843 = vpop.f32.mrb[0].mxu0
  %1844 = vdwg.mxu0
  %v1845 = vmul.f32 %v1772, %v837
  %v1846 = vmul.f32 %v1842, %v837
  %v1847 = vmul.f32 %v1845, %v1845
  %v1848 = vsub.f32 %v1846, %v1847
  %v1849 = vmax.f32 %v1848, 0.0
  %v1850 = vadd.f32 %v1849, 1e-05
  %v1851 = vrsqrt.pop %v1850
  %v1852 = vmul.f32 %v65, %v1851
  %v1853 = vmul.f32 %v1845, %v1852
  %v1854 = vsub.f32 %v66, %v1853
  %v1856 = vsel %vm225, %v1852, 0
  %1858 = vmatprep.subr.mxu0 0.0
  %1859 = vmatpush1.msra.mxu0 %v64
  %1860 = vmatprep.subr.mxu0 0.0
  %1861 = vmatpush1.msra.mxu0 0.0
  %1862 = vmatprep.subr.mxu0 0.0
  %1863 = vmatpush1.msra.mxu0 0.0
  %1864 = vmatprep.subr.mxu0 0.0
  %1865 = vmatpush1.msra.mxu0 0.0
  %1866 = vmatprep.subr.mxu0 0.0
  %1867 = vmatpush1.msra.mxu0 0.0
  %1868 = vmatprep.subr.mxu0 0.0
  %1869 = vmatpush1.msra.mxu0 0.0
  %1870 = vmatprep.subr.mxu0 0.0
  %1871 = vmatpush1.msra.mxu0 0.0
  %1872 = vmatprep.subr.mxu0 0.0
  %1873 = vmatpush1.msra.mxu0 0.0
  %1874 = vmatprep.subr.mxu0 0.0
  %1875 = vmatpush1.msra.mxu0 0.0
  %1876 = vmatprep.subr.mxu0 0.0
  %1877 = vmatpush1.msra.mxu0 0.0
  %1878 = vmatprep.subr.mxu0 0.0
  %1879 = vmatpush1.msra.mxu0 0.0
  %1880 = vmatprep.subr.mxu0 0.0
  %1881 = vmatpush1.msra.mxu0 0.0
  %1882 = vmatprep.subr.mxu0 0.0
  %1883 = vmatpush1.msra.mxu0 0.0
  %1884 = vmatprep.subr.mxu0 0.0
  %1885 = vmatpush1.msra.mxu0 0.0
  %1886 = vmatprep.subr.mxu0 0.0
  %1887 = vmatpush1.msra.mxu0 0.0
  %1888 = vmatprep.subr.mxu0 0.0
  %1889 = vmatpush1.msra.mxu0 0.0
  %1890 = vmatprep.subr.mxu0 0.0
  %1891 = vmatpush1.msra.mxu0 0.0
  %1892 = vmatprep.subr.mxu0 0.0
  %1893 = vmatpush1.msra.mxu0 0.0
  %1894 = vmatprep.subr.mxu0 0.0
  %1895 = vmatpush1.msra.mxu0 0.0
  %1896 = vmatprep.subr.mxu0 0.0
  %1897 = vmatpush1.msra.mxu0 0.0
  %1898 = vmatprep.subr.mxu0 0.0
  %1899 = vmatpush1.msra.mxu0 0.0
  %1900 = vmatprep.subr.mxu0 0.0
  %1901 = vmatpush1.msra.mxu0 0.0
  %1902 = vmatprep.subr.mxu0 0.0
  %1903 = vmatpush1.msra.mxu0 0.0
  %1904 = vmatprep.subr.mxu0 0.0
  %1905 = vmatpush1.msra.mxu0 0.0
  %1906 = vmatprep.subr.mxu0 0.0
  %1907 = vmatpush1.msra.mxu0 0.0
  %1908 = vmatprep.subr.mxu0 0.0
  %1909 = vmatpush1.msra.mxu0 0.0
  %1910 = vmatprep.subr.mxu0 0.0
  %1911 = vmatpush1.msra.mxu0 0.0
  %1912 = vmatprep.subr.mxu0 0.0
  %1913 = vmatpush1.msra.mxu0 0.0
  %1914 = vmatprep.subr.mxu0 0.0
  %1915 = vmatpush1.msra.mxu0 0.0
  %1916 = vmatprep.subr.mxu0 0.0
  %1917 = vmatpush1.msra.mxu0 0.0
  %1918 = vmatprep.subr.mxu0 0.0
  %1919 = vmatpush1.msra.mxu0 0.0
  %1920 = vmatprep.subr.mxu0 0.0
  %1921 = vmatpush1.msra.mxu0 0.0
  %1922 = vmatprep.mubr.f32.mxu0 0.0
  %1923 = vmatmul.mubr.f32.gmra.mrb[0].mxu0 %v1856
  %v1924 = vpop.f32.mrb[0].mxu0
  %v1925 = vadd.f32 0.0, %v1924
  %v1926 = vpop.f32.mrb[0].mxu0
  %1927 = vdwg.mxu0
  %v1929 = vsel %vm225, %v1854, 0
  %1931 = vmatprep.subr.mxu0 0.0
  %1932 = vmatpush1.msra.mxu0 %v64
  %1933 = vmatprep.subr.mxu0 0.0
  %1934 = vmatpush1.msra.mxu0 0.0
  %1935 = vmatprep.subr.mxu0 0.0
  %1936 = vmatpush1.msra.mxu0 0.0
  %1937 = vmatprep.subr.mxu0 0.0
  %1938 = vmatpush1.msra.mxu0 0.0
  %1939 = vmatprep.subr.mxu0 0.0
  %1940 = vmatpush1.msra.mxu0 0.0
  %1941 = vmatprep.subr.mxu0 0.0
  %1942 = vmatpush1.msra.mxu0 0.0
  %1943 = vmatprep.subr.mxu0 0.0
  %1944 = vmatpush1.msra.mxu0 0.0
  %1945 = vmatprep.subr.mxu0 0.0
  %1946 = vmatpush1.msra.mxu0 0.0
  %1947 = vmatprep.subr.mxu0 0.0
  %1948 = vmatpush1.msra.mxu0 0.0
  %1949 = vmatprep.subr.mxu0 0.0
  %1950 = vmatpush1.msra.mxu0 0.0
  %1951 = vmatprep.subr.mxu0 0.0
  %1952 = vmatpush1.msra.mxu0 0.0
  %1953 = vmatprep.subr.mxu0 0.0
  %1954 = vmatpush1.msra.mxu0 0.0
  %1955 = vmatprep.subr.mxu0 0.0
  %1956 = vmatpush1.msra.mxu0 0.0
  %1957 = vmatprep.subr.mxu0 0.0
  %1958 = vmatpush1.msra.mxu0 0.0
  %1959 = vmatprep.subr.mxu0 0.0
  %1960 = vmatpush1.msra.mxu0 0.0
  %1961 = vmatprep.subr.mxu0 0.0
  %1962 = vmatpush1.msra.mxu0 0.0
  %1963 = vmatprep.subr.mxu0 0.0
  %1964 = vmatpush1.msra.mxu0 0.0
  %1965 = vmatprep.subr.mxu0 0.0
  %1966 = vmatpush1.msra.mxu0 0.0
  %1967 = vmatprep.subr.mxu0 0.0
  %1968 = vmatpush1.msra.mxu0 0.0
  %1969 = vmatprep.subr.mxu0 0.0
  %1970 = vmatpush1.msra.mxu0 0.0
  %1971 = vmatprep.subr.mxu0 0.0
  %1972 = vmatpush1.msra.mxu0 0.0
  %1973 = vmatprep.subr.mxu0 0.0
  %1974 = vmatpush1.msra.mxu0 0.0
  %1975 = vmatprep.subr.mxu0 0.0
  %1976 = vmatpush1.msra.mxu0 0.0
  %1977 = vmatprep.subr.mxu0 0.0
  %1978 = vmatpush1.msra.mxu0 0.0
  %1979 = vmatprep.subr.mxu0 0.0
  %1980 = vmatpush1.msra.mxu0 0.0
  %1981 = vmatprep.subr.mxu0 0.0
  %1982 = vmatpush1.msra.mxu0 0.0
  %1983 = vmatprep.subr.mxu0 0.0
  %1984 = vmatpush1.msra.mxu0 0.0
  %1985 = vmatprep.subr.mxu0 0.0
  %1986 = vmatpush1.msra.mxu0 0.0
  %1987 = vmatprep.subr.mxu0 0.0
  %1988 = vmatpush1.msra.mxu0 0.0
  %1989 = vmatprep.subr.mxu0 0.0
  %1990 = vmatpush1.msra.mxu0 0.0
  %1991 = vmatprep.subr.mxu0 0.0
  %1992 = vmatpush1.msra.mxu0 0.0
  %1993 = vmatprep.subr.mxu0 0.0
  %1994 = vmatpush1.msra.mxu0 0.0
  %1995 = vmatprep.mubr.f32.mxu0 0.0
  %1996 = vmatmul.mubr.f32.gmra.mrb[0].mxu0 %v1929
  %v1997 = vpop.f32.mrb[0].mxu0
  %v1998 = vadd.f32 0.0, %v1997
  %v1999 = vpop.f32.mrb[0].mxu0
  %2000 = vdwg.mxu0
  %v2001 = vlaneseq
  %v2002 = vshrl.u32 %v2001, 7
  %v2003 = vsub.s32 0, %v2002
  %v2004 = vrot.slane %v1925, %v2003
  %v2005 = vmul.f32 %v1679, %v2004
  %v2006 = vmul.f32 %v1680, %v2004
  %v2007 = vmul.f32 %v1681, %v2004
  %v2008 = vmul.f32 %v1682, %v2004
  %v2009 = vlaneseq
  %v2010 = vshrl.u32 %v2009, 7
  %v2011 = vsub.s32 0, %v2010
  %v2012 = vrot.slane %v1998, %v2011
  %v2013 = vadd.f32 %v2005, %v2012
  %v2014 = vadd.f32 %v2006, %v2012
  %v2015 = vadd.f32 %v2007, %v2012
  %v2016 = vadd.f32 %v2008, %v2012
  %v2017 = vpack.c.bf16 %v2014, %v2013
  %v2018 = vpack.c.bf16 %v2016, %v2015
  %v2021 = vunpack.c.l.b16 %v2017
  %v2022 = vunpack.c.h.b16 %v2017
  %v2023 = vunpack.c.l.b16 %v2018
  %v2024 = vunpack.c.h.b16 %v2018
  %v2025 = vpack.c.b16 %v2021, %v2021
  %v2026 = vpack.c.b16 %v2022, %v2022
  %v2027 = vpack.c.b16 %v2023, %v2023
  %v2028 = vpack.c.b16 %v2024, %v2024
  %v2030 = vshrl.u32 %v2025, 16
  %v2032 = vrot.slane %v2030, 7
  %v2033 = vshll.u32 %v2025, 16
  %v2035 = vor.u32 %v2032, %v2033
  %v2036 = vrot.slane %v2032, 4
  %v2038 = vshrl.u32 %v2026, 16
  %v2040 = vrot.slane %v2038, 7
  %v2041 = vshll.u32 %v2026, 16
  %v2043 = vor.u32 %v2040, %v2041
  %v2044 = vsel %vm304, %v2036, %v2043
  %v2045 = vrot.slane %v2040, 4
  %v2047 = vshrl.u32 %v2027, 16
  %v2049 = vrot.slane %v2047, 7
  %v2050 = vshll.u32 %v2027, 16
  %v2052 = vor.u32 %v2049, %v2050
  %v2053 = vrot.slane %v2049, 4
  %v2055 = vshrl.u32 %v2028, 16
  %v2057 = vrot.slane %v2055, 7
  %v2058 = vshll.u32 %v2028, 16
  %v2060 = vor.u32 %v2057, %v2058
  %v2061 = vsel %vm304, %v2053, %v2060
  %v2062 = vrot.slane %v2057, 4
  %2063 = vrot.lane.b32.xlu0 %v2035, 8
  %v2064 = vpop.permute.xlu0 %2063
  %2065 = vrot.lane.b32.xlu0 %v2044, 8
  %v2066 = vpop.permute.xlu0 %2065
  %2067 = vrot.lane.b32.xlu0 %v2045, 8
  %v2068 = vpop.permute.xlu0 %2067
  %2069 = vrot.lane.b32.xlu0 %v2052, 8
  %v2070 = vpop.permute.xlu0 %2069
  %2071 = vrot.lane.b32.xlu0 %v2061, 8
  %v2072 = vpop.permute.xlu0 %2071
  %2073 = vrot.lane.b32.xlu0 %v2062, 8
  %v2074 = vpop.permute.xlu0 %2073
  %v2075 = vrot.slane %v2064, 4
  %v2076 = vrot.slane %v2066, 4
  %v2077 = vrot.slane %v2068, 4
  %v2078 = vrot.slane %v2070, 4
  %v2079 = vrot.slane %v2072, 4
  %v2080 = vrot.slane %v2074, 4
  %v2081 = vsel %vm1111, %v2075, %v2064
  %v2082 = vsel %vm1111, %v2076, %v2066
  %v2083 = vsel %vm1111, %v2077, %v2068
  %v2084 = vsel %vm1111, %v2078, %v2070
  %v2085 = vsel %vm1111, %v2079, %v2072
  %v2086 = vsel %vm1111, %v2080, %v2074
  %v2093 = vld [vmem:[#allocation3] sm:$0xff]
  %v2094 = vsel %vm1128, %v2081, %v2093
  %2095 = vst [vmem:[#allocation3] sm:$0xff] %v2094
  %2096 = vst.msk [vmem:[#allocation3 + $0x8] sm:$0xff] %vm1134, %v2082
  %v2097 = vld [vmem:[#allocation3 + $0x10] sm:$0x11]
  %v2098 = vsel %vm1140, %v2083, %v2097
  %2099 = vst [vmem:[#allocation3 + $0x10] sm:$0x11] %v2098
  %v2100 = vld [vmem:[#allocation3 + $0x18] sm:$0xff]
  %v2101 = vsel %vm1128, %v2084, %v2100
  %2102 = vst [vmem:[#allocation3 + $0x18] sm:$0xff] %v2101
  %2103 = vst.msk [vmem:[#allocation3 + $0x20] sm:$0xff] %vm1134, %v2085
  %v2104 = vld [vmem:[#allocation3 + $0x28] sm:$0x11]
  %v2105 = vsel %vm1140, %v2086, %v2104
  %2106 = vst [vmem:[#allocation3 + $0x28] sm:$0x11] %v2105
  %v2107 = vld [vmem:[#allocation3] sm:$0x11]
  %v2108 = vld [vmem:[#allocation3 + $0x18] sm:$0x11]
  %v2111 = vunpack.c.l.b16 %v2107
  %v2112 = vunpack.c.h.b16 %v2107
  %v2113 = vunpack.c.l.b16 %v2108
  %v2114 = vunpack.c.h.b16 %v2108
  %v2115 = vpack.c.b16 %v2111, %v2111
  %v2116 = vpack.c.b16 %v2112, %v2112
  %v2117 = vpack.c.b16 %v2113, %v2113
  %v2118 = vpack.c.b16 %v2114, %v2114
  %v2123 = vld [vmem:[#allocation4] sm:$0x1]
  %v2124 = vsel %vm101, %v2115, %v2123
  %2125 = vst [vmem:[#allocation4] sm:$0x1] %v2124
  %vm2126 = vcmask 122880
  %vm2127 = vmand %vm2126, %vm68
  %v2128 = vld [vmem:[#allocation4 + $0x8] sm:$0x1]
  %v2129 = vsel %vm2127, %v2116, %v2128
  %2130 = vst [vmem:[#allocation4 + $0x8] sm:$0x1] %v2129
  %v2131 = vld [vmem:[#allocation4 + $0x38] sm:$0x1]
  %v2132 = vsel %vm101, %v2117, %v2131
  %2133 = vst [vmem:[#allocation4 + $0x38] sm:$0x1] %v2132
  %v2134 = vld [vmem:[#allocation4 + $0x40] sm:$0x1]
  %v2135 = vsel %vm2127, %v2118, %v2134
  %2136 = vst [vmem:[#allocation4 + $0x40] sm:$0x1] %v2135
  %v2137 = vld [vmem:[#allocation3] sm:$0x11]
  %v2138 = vld [vmem:[#allocation3 + $0x18] sm:$0x11]
  %v2141 = vunpack.c.l.b16 %v2137
  %v2142 = vunpack.c.h.b16 %v2137
  %v2143 = vunpack.c.l.b16 %v2138
  %v2144 = vunpack.c.h.b16 %v2138
  %v2145 = vpack.c.b16 %v2141, %v2141
  %v2146 = vpack.c.b16 %v2142, %v2142
  %v2147 = vpack.c.b16 %v2143, %v2143
  %v2148 = vpack.c.b16 %v2144, %v2144
  %v2150 = vshrl.u32 %v2145, 16
  %v2153 = vshrl.u32 %v2146, 16
  %v2156 = vshrl.u32 %v2147, 16
  %v2159 = vshrl.u32 %v2148, 16
  %2161 = vrot.lane.b32.xlu0 %v2150, 16
  %v2162 = vpop.permute.xlu0 %2161
  %2163 = vrot.lane.b32.xlu0 %v2153, 16
  %v2164 = vpop.permute.xlu0 %2163
  %2165 = vrot.lane.b32.xlu0 %v2156, 16
  %v2166 = vpop.permute.xlu0 %2165
  %2167 = vrot.lane.b32.xlu0 %v2159, 16
  %v2168 = vpop.permute.xlu0 %2167
  %v2169 = vsel %vm1267, %v2162, %v2164
  %v2170 = vsel %vm1267, %v2166, %v2168
  %vm2175 = vcmask 1040512
  %vm2176 = vmand %vm2175, %vm68
  %v2177 = vld [vmem:[#allocation4 + $0x8] sm:$0x1]
  %v2178 = vsel %vm2176, %v2162, %v2177
  %2179 = vst [vmem:[#allocation4 + $0x8] sm:$0x1] %v2178
  %vm2180 = vcmask 253952
  %vm2181 = vmand %vm2180, %vm68
  %v2182 = vld [vmem:[#allocation4 + $0x10] sm:$0x1]
  %v2183 = vsel %vm2181, %v2169, %v2182
  %2184 = vst [vmem:[#allocation4 + $0x10] sm:$0x1] %v2183
  %v2185 = vld [vmem:[#allocation4 + $0x40] sm:$0x1]
  %v2186 = vsel %vm2176, %v2166, %v2185
  %2187 = vst [vmem:[#allocation4 + $0x40] sm:$0x1] %v2186
  %v2188 = vld [vmem:[#allocation4 + $0x48] sm:$0x1]
  %v2189 = vsel %vm2181, %v2170, %v2188
  %2190 = vst [vmem:[#allocation4 + $0x48] sm:$0x1] %v2189
  %v2191 = vld [vmem:[#allocation3] sm:$0x22]
  %v2192 = vld [vmem:[#allocation3 + $0x18] sm:$0x22]
  %v2195 = vunpack.c.l.b16 %v2191
  %v2196 = vunpack.c.h.b16 %v2191
  %v2197 = vunpack.c.l.b16 %v2192
  %v2198 = vunpack.c.h.b16 %v2192
  %v2199 = vpack.c.b16 %v2195, %v2195
  %v2200 = vpack.c.b16 %v2196, %v2196
  %v2201 = vpack.c.b16 %v2197, %v2197
  %v2202 = vpack.c.b16 %v2198, %v2198
  %v2203 = vrot.slane %v2199, 1
  %v2204 = vrot.slane %v2200, 1
  %v2205 = vrot.slane %v2201, 1
  %v2206 = vrot.slane %v2202, 1
  %2207 = vrot.lane.b32.xlu0 %v2203, 32
  %v2208 = vpop.permute.xlu0 %2207
  %2209 = vrot.lane.b32.xlu0 %v2204, 32
  %v2210 = vpop.permute.xlu0 %2209
  %2211 = vrot.lane.b32.xlu0 %v2205, 32
  %v2212 = vpop.permute.xlu0 %2211
  %2213 = vrot.lane.b32.xlu0 %v2206, 32
  %v2214 = vpop.permute.xlu0 %2213
  %v2215 = vsel %vm1331, %v2208, %v2210
  %v2216 = vsel %vm1331, %v2212, %v2214
  %vm2221 = vcmask 1040640
  %vm2222 = vmand %vm2221, %vm68
  %v2223 = vld [vmem:[#allocation4 + $0x10] sm:$0x1]
  %v2224 = vsel %vm2222, %v2208, %v2223
  %2225 = vst [vmem:[#allocation4 + $0x10] sm:$0x1] %v2224
  %vm2226 = vcmask 385024
  %vm2227 = vmand %vm2226, %vm68
  %v2228 = vld [vmem:[#allocation4 + $0x18] sm:$0x1]
  %v2229 = vsel %vm2227, %v2215, %v2228
  %2230 = vst [vmem:[#allocation4 + $0x18] sm:$0x1] %v2229
  %v2231 = vld [vmem:[#allocation4 + $0x48] sm:$0x1]
  %v2232 = vsel %vm2222, %v2212, %v2231
  %2233 = vst [vmem:[#allocation4 + $0x48] sm:$0x1] %v2232
  %v2234 = vld [vmem:[#allocation4 + $0x50] sm:$0x1]
  %v2235 = vsel %vm2227, %v2216, %v2234
  %2236 = vst [vmem:[#allocation4 + $0x50] sm:$0x1] %v2235
  %v2237 = vld [vmem:[#allocation3] sm:$0x22]
  %v2238 = vld [vmem:[#allocation3 + $0x18] sm:$0x22]
  %v2241 = vunpack.c.l.b16 %v2237
  %v2242 = vunpack.c.h.b16 %v2237
  %v2243 = vunpack.c.l.b16 %v2238
  %v2244 = vunpack.c.h.b16 %v2238
  %v2245 = vpack.c.b16 %v2241, %v2241
  %v2246 = vpack.c.b16 %v2242, %v2242
  %v2247 = vpack.c.b16 %v2243, %v2243
  %v2248 = vpack.c.b16 %v2244, %v2244
  %v2250 = vshrl.u32 %v2245, 16
  %v2252 = vrot.slane %v2250, 1
  %v2254 = vshrl.u32 %v2246, 16
  %v2256 = vrot.slane %v2254, 1
  %v2258 = vshrl.u32 %v2247, 16
  %v2260 = vrot.slane %v2258, 1
  %v2262 = vshrl.u32 %v2248, 16
  %v2264 = vrot.slane %v2262, 1
  %2265 = vrot.lane.b32.xlu0 %v2252, 48
  %v2266 = vpop.permute.xlu0 %2265
  %2267 = vrot.lane.b32.xlu0 %v2256, 48
  %v2268 = vpop.permute.xlu0 %2267
  %2269 = vrot.lane.b32.xlu0 %v2260, 48
  %v2270 = vpop.permute.xlu0 %2269
  %2271 = vrot.lane.b32.xlu0 %v2264, 48
  %v2272 = vpop.permute.xlu0 %2271
  %vm2273 = vcmask 392192
  %v2274 = vsel %vm2273, %v2266, %v2268
  %v2275 = vsel %vm2273, %v2270, %v2272
  %vm2280 = vcmask 1040768
  %vm2281 = vmand %vm2280, %vm68
  %v2282 = vld [vmem:[#allocation4 + $0x18] sm:$0x1]
  %v2283 = vsel %vm2281, %v2266, %v2282
  %2284 = vst [vmem:[#allocation4 + $0x18] sm:$0x1] %v2283
  %vm2285 = vcmask 516096
  %vm2286 = vmand %vm2285, %vm68
  %v2287 = vld [vmem:[#allocation4 + $0x20] sm:$0x1]
  %v2288 = vsel %vm2286, %v2274, %v2287
  %2289 = vst [vmem:[#allocation4 + $0x20] sm:$0x1] %v2288
  %v2290 = vld [vmem:[#allocation4 + $0x50] sm:$0x1]
  %v2291 = vsel %vm2281, %v2270, %v2290
  %2292 = vst [vmem:[#allocation4 + $0x50] sm:$0x1] %v2291
  %v2293 = vld [vmem:[#allocation4 + $0x58] sm:$0x1]
  %v2294 = vsel %vm2286, %v2275, %v2293
  %2295 = vst [vmem:[#allocation4 + $0x58] sm:$0x1] %v2294
  %v2296 = vld [vmem:[#allocation3] sm:$0x44]
  %v2297 = vld [vmem:[#allocation3 + $0x18] sm:$0x44]
  %v2300 = vunpack.c.l.b16 %v2296
  %v2301 = vunpack.c.h.b16 %v2296
  %v2302 = vunpack.c.l.b16 %v2297
  %v2303 = vunpack.c.h.b16 %v2297
  %v2304 = vpack.c.b16 %v2300, %v2300
  %v2305 = vpack.c.b16 %v2301, %v2301
  %v2306 = vpack.c.b16 %v2302, %v2302
  %v2307 = vpack.c.b16 %v2303, %v2303
  %v2308 = vrot.slane %v2304, 2
  %v2309 = vrot.slane %v2305, 2
  %v2310 = vrot.slane %v2306, 2
  %v2311 = vrot.slane %v2307, 2
  %2312 = vrot.lane.b32.xlu0 %v2308, 64
  %v2313 = vpop.permute.xlu0 %2312
  %2314 = vrot.lane.b32.xlu0 %v2309, 64
  %v2315 = vpop.permute.xlu0 %2314
  %2316 = vrot.lane.b32.xlu0 %v2310, 64
  %v2317 = vpop.permute.xlu0 %2316
  %2318 = vrot.lane.b32.xlu0 %v2311, 64
  %v2319 = vpop.permute.xlu0 %2318
  %vm2320 = vcmask 523264
  %v2321 = vsel %vm2320, %v2313, %v2315
  %v2322 = vsel %vm2320, %v2317, %v2319
  %vm2327 = vcmask 1040896
  %vm2328 = vmand %vm2327, %vm68
  %v2329 = vld [vmem:[#allocation4 + $0x20] sm:$0x1]
  %v2330 = vsel %vm2328, %v2313, %v2329
  %2331 = vst [vmem:[#allocation4 + $0x20] sm:$0x1] %v2330
  %vm2332 = vcmask 647168
  %vm2333 = vmand %vm2332, %vm68
  %v2334 = vld [vmem:[#allocation4 + $0x28] sm:$0x1]
  %v2335 = vsel %vm2333, %v2321, %v2334
  %2336 = vst [vmem:[#allocation4 + $0x28] sm:$0x1] %v2335
  %v2337 = vld [vmem:[#allocation4 + $0x58] sm:$0x1]
  %v2338 = vsel %vm2328, %v2317, %v2337
  %2339 = vst [vmem:[#allocation4 + $0x58] sm:$0x1] %v2338
  %v2340 = vld [vmem:[#allocation4 + $0x60] sm:$0x1]
  %v2341 = vsel %vm2333, %v2322, %v2340
  %2342 = vst [vmem:[#allocation4 + $0x60] sm:$0x1] %v2341
  %v2343 = vld [vmem:[#allocation3] sm:$0x44]
  %v2344 = vld [vmem:[#allocation3 + $0x18] sm:$0x44]
  %v2347 = vunpack.c.l.b16 %v2343
  %v2348 = vunpack.c.h.b16 %v2343
  %v2349 = vunpack.c.l.b16 %v2344
  %v2350 = vunpack.c.h.b16 %v2344
  %v2351 = vpack.c.b16 %v2347, %v2347
  %v2352 = vpack.c.b16 %v2348, %v2348
  %v2353 = vpack.c.b16 %v2349, %v2349
  %v2354 = vpack.c.b16 %v2350, %v2350
  %v2356 = vshrl.u32 %v2351, 16
  %v2358 = vrot.slane %v2356, 2
  %v2360 = vshrl.u32 %v2352, 16
  %v2362 = vrot.slane %v2360, 2
  %v2364 = vshrl.u32 %v2353, 16
  %v2366 = vrot.slane %v2364, 2
  %v2368 = vshrl.u32 %v2354, 16
  %v2370 = vrot.slane %v2368, 2
  %2371 = vrot.lane.b32.xlu0 %v2358, 80
  %v2372 = vpop.permute.xlu0 %2371
  %2373 = vrot.lane.b32.xlu0 %v2362, 80
  %v2374 = vpop.permute.xlu0 %2373
  %2375 = vrot.lane.b32.xlu0 %v2366, 80
  %v2376 = vpop.permute.xlu0 %2375
  %2377 = vrot.lane.b32.xlu0 %v2370, 80
  %v2378 = vpop.permute.xlu0 %2377
  %vm2379 = vcmask 654336
  %v2380 = vsel %vm2379, %v2372, %v2374
  %v2381 = vsel %vm2379, %v2376, %v2378
  %vm2386 = vcmask 1041024
  %vm2387 = vmand %vm2386, %vm68
  %v2388 = vld [vmem:[#allocation4 + $0x28] sm:$0x1]
  %v2389 = vsel %vm2387, %v2372, %v2388
  %2390 = vst [vmem:[#allocation4 + $0x28] sm:$0x1] %v2389
  %vm2391 = vcmask 778240
  %vm2392 = vmand %vm2391, %vm68
  %v2393 = vld [vmem:[#allocation4 + $0x30] sm:$0x1]
  %v2394 = vsel %vm2392, %v2380, %v2393
  %2395 = vst [vmem:[#allocation4 + $0x30] sm:$0x1] %v2394
  %v2396 = vld [vmem:[#allocation4 + $0x60] sm:$0x1]
  %v2397 = vsel %vm2387, %v2376, %v2396
  %2398 = vst [vmem:[#allocation4 + $0x60] sm:$0x1] %v2397
  %v2399 = vld [vmem:[#allocation4 + $0x68] sm:$0x1]
  %v2400 = vsel %vm2392, %v2381, %v2399
  %2401 = vst [vmem:[#allocation4 + $0x68] sm:$0x1] %v2400
  %v2402 = vld [vmem:[#allocation3] sm:$0x44]
  %v2403 = vld [vmem:[#allocation3 + $0x18] sm:$0x44]
  %v2406 = vunpack.c.l.b16 %v2402
  %v2407 = vunpack.c.h.b16 %v2402
  %v2408 = vunpack.c.l.b16 %v2403
  %v2409 = vunpack.c.h.b16 %v2403
  %v2410 = vpack.c.b16 %v2406, %v2406
  %v2411 = vpack.c.b16 %v2407, %v2407
  %v2412 = vpack.c.b16 %v2408, %v2408
  %v2413 = vpack.c.b16 %v2409, %v2409
  %v2415 = vshll.u32 %v2410, 16
  %v2417 = vrot.slane %v2415, 2
  %v2419 = vshll.u32 %v2411, 16
  %v2421 = vrot.slane %v2419, 2
  %v2423 = vshll.u32 %v2412, 16
  %v2425 = vrot.slane %v2423, 2
  %v2427 = vshll.u32 %v2413, 16
  %v2429 = vrot.slane %v2427, 2
  %v2434 = vld [vmem:[#allocation4] sm:$0x1]
  %v2435 = vsel %vm112, %v2417, %v2434
  %2436 = vst [vmem:[#allocation4] sm:$0x1] %v2435
  %vm2437 = vmand %vm2126, %vm76
  %v2438 = vld [vmem:[#allocation4 + $0x8] sm:$0x1]
  %v2439 = vsel %vm2437, %v2421, %v2438
  %2440 = vst [vmem:[#allocation4 + $0x8] sm:$0x1] %v2439
  %v2441 = vld [vmem:[#allocation4 + $0x38] sm:$0x1]
  %v2442 = vsel %vm112, %v2425, %v2441
  %2443 = vst [vmem:[#allocation4 + $0x38] sm:$0x1] %v2442
  %v2444 = vld [vmem:[#allocation4 + $0x40] sm:$0x1]
  %v2445 = vsel %vm2437, %v2429, %v2444
  %2446 = vst [vmem:[#allocation4 + $0x40] sm:$0x1] %v2445
  %v2447 = vld [vmem:[#allocation3] sm:$0x44]
  %v2448 = vld [vmem:[#allocation3 + $0x18] sm:$0x44]
  %v2451 = vunpack.c.l.b16 %v2447
  %v2452 = vunpack.c.h.b16 %v2447
  %v2453 = vunpack.c.l.b16 %v2448
  %v2454 = vunpack.c.h.b16 %v2448
  %v2455 = vpack.c.b16 %v2451, %v2451
  %v2456 = vpack.c.b16 %v2452, %v2452
  %v2457 = vpack.c.b16 %v2453, %v2453
  %v2458 = vpack.c.b16 %v2454, %v2454
  %v2459 = vrot.slane %v2455, 2
  %v2460 = vrot.slane %v2456, 2
  %v2461 = vrot.slane %v2457, 2
  %v2462 = vrot.slane %v2458, 2
  %2463 = vrot.lane.b32.xlu0 %v2459, 16
  %v2464 = vpop.permute.xlu0 %2463
  %2465 = vrot.lane.b32.xlu0 %v2460, 16
  %v2466 = vpop.permute.xlu0 %2465
  %2467 = vrot.lane.b32.xlu0 %v2461, 16
  %v2468 = vpop.permute.xlu0 %2467
  %2469 = vrot.lane.b32.xlu0 %v2462, 16
  %v2470 = vpop.permute.xlu0 %2469
  %v2471 = vsel %vm1267, %v2464, %v2466
  %v2472 = vsel %vm1267, %v2468, %v2470
  %vm2477 = vmand %vm2175, %vm76
  %v2478 = vld [vmem:[#allocation4 + $0x8] sm:$0x1]
  %v2479 = vsel %vm2477, %v2464, %v2478
  %2480 = vst [vmem:[#allocation4 + $0x8] sm:$0x1] %v2479
  %vm2481 = vmand %vm2180, %vm76
  %v2482 = vld [vmem:[#allocation4 + $0x10] sm:$0x1]
  %v2483 = vsel %vm2481, %v2471, %v2482
  %2484 = vst [vmem:[#allocation4 + $0x10] sm:$0x1] %v2483
  %v2485 = vld [vmem:[#allocation4 + $0x40] sm:$0x1]
  %v2486 = vsel %vm2477, %v2468, %v2485
  %2487 = vst [vmem:[#allocation4 + $0x40] sm:$0x1] %v2486
  %v2488 = vld [vmem:[#allocation4 + $0x48] sm:$0x1]
  %v2489 = vsel %vm2481, %v2472, %v2488
  %2490 = vst [vmem:[#allocation4 + $0x48] sm:$0x1] %v2489
  %v2491 = vld [vmem:[#allocation3] sm:$0x88]
  %v2492 = vld [vmem:[#allocation3 + $0x18] sm:$0x88]
  %v2495 = vunpack.c.l.b16 %v2491
  %v2496 = vunpack.c.h.b16 %v2491
  %v2497 = vunpack.c.l.b16 %v2492
  %v2498 = vunpack.c.h.b16 %v2492
  %v2499 = vpack.c.b16 %v2495, %v2495
  %v2500 = vpack.c.b16 %v2496, %v2496
  %v2501 = vpack.c.b16 %v2497, %v2497
  %v2502 = vpack.c.b16 %v2498, %v2498
  %v2504 = vshll.u32 %v2499, 16
  %v2506 = vrot.slane %v2504, 3
  %v2508 = vshll.u32 %v2500, 16
  %v2510 = vrot.slane %v2508, 3
  %v2512 = vshll.u32 %v2501, 16
  %v2514 = vrot.slane %v2512, 3
  %v2516 = vshll.u32 %v2502, 16
  %v2518 = vrot.slane %v2516, 3
  %2519 = vrot.lane.b32.xlu0 %v2506, 32
  %v2520 = vpop.permute.xlu0 %2519
  %2521 = vrot.lane.b32.xlu0 %v2510, 32
  %v2522 = vpop.permute.xlu0 %2521
  %2523 = vrot.lane.b32.xlu0 %v2514, 32
  %v2524 = vpop.permute.xlu0 %2523
  %2525 = vrot.lane.b32.xlu0 %v2518, 32
  %v2526 = vpop.permute.xlu0 %2525
  %v2527 = vsel %vm1331, %v2520, %v2522
  %v2528 = vsel %vm1331, %v2524, %v2526
  %vm2533 = vmand %vm2221, %vm76
  %v2534 = vld [vmem:[#allocation4 + $0x10] sm:$0x1]
  %v2535 = vsel %vm2533, %v2520, %v2534
  %2536 = vst [vmem:[#allocation4 + $0x10] sm:$0x1] %v2535
  %vm2537 = vmand %vm2226, %vm76
  %v2538 = vld [vmem:[#allocation4 + $0x18] sm:$0x1]
  %v2539 = vsel %vm2537, %v2527, %v2538
  %2540 = vst [vmem:[#allocation4 + $0x18] sm:$0x1] %v2539
  %v2541 = vld [vmem:[#allocation4 + $0x48] sm:$0x1]
  %v2542 = vsel %vm2533, %v2524, %v2541
  %2543 = vst [vmem:[#allocation4 + $0x48] sm:$0x1] %v2542
  %v2544 = vld [vmem:[#allocation4 + $0x50] sm:$0x1]
  %v2545 = vsel %vm2537, %v2528, %v2544
  %2546 = vst [vmem:[#allocation4 + $0x50] sm:$0x1] %v2545
  %v2547 = vld [vmem:[#allocation3] sm:$0x88]
  %v2548 = vld [vmem:[#allocation3 + $0x18] sm:$0x88]
  %v2551 = vunpack.c.l.b16 %v2547
  %v2552 = vunpack.c.h.b16 %v2547
  %v2553 = vunpack.c.l.b16 %v2548
  %v2554 = vunpack.c.h.b16 %v2548
  %v2555 = vpack.c.b16 %v2551, %v2551
  %v2556 = vpack.c.b16 %v2552, %v2552
  %v2557 = vpack.c.b16 %v2553, %v2553
  %v2558 = vpack.c.b16 %v2554, %v2554
  %v2559 = vrot.slane %v2555, 3
  %v2560 = vrot.slane %v2556, 3
  %v2561 = vrot.slane %v2557, 3
  %v2562 = vrot.slane %v2558, 3
  %2563 = vrot.lane.b32.xlu0 %v2559, 48
  %v2564 = vpop.permute.xlu0 %2563
  %2565 = vrot.lane.b32.xlu0 %v2560, 48
  %v2566 = vpop.permute.xlu0 %2565
  %2567 = vrot.lane.b32.xlu0 %v2561, 48
  %v2568 = vpop.permute.xlu0 %2567
  %2569 = vrot.lane.b32.xlu0 %v2562, 48
  %v2570 = vpop.permute.xlu0 %2569
  %v2571 = vsel %vm2273, %v2564, %v2566
  %v2572 = vsel %vm2273, %v2568, %v2570
  %vm2577 = vmand %vm2280, %vm76
  %v2578 = vld [vmem:[#allocation4 + $0x18] sm:$0x1]
  %v2579 = vsel %vm2577, %v2564, %v2578
  %2580 = vst [vmem:[#allocation4 + $0x18] sm:$0x1] %v2579
  %vm2581 = vmand %vm2285, %vm76
  %v2582 = vld [vmem:[#allocation4 + $0x20] sm:$0x1]
  %v2583 = vsel %vm2581, %v2571, %v2582
  %2584 = vst [vmem:[#allocation4 + $0x20] sm:$0x1] %v2583
  %v2585 = vld [vmem:[#allocation4 + $0x50] sm:$0x1]
  %v2586 = vsel %vm2577, %v2568, %v2585
  %2587 = vst [vmem:[#allocation4 + $0x50] sm:$0x1] %v2586
  %v2588 = vld [vmem:[#allocation4 + $0x58] sm:$0x1]
  %v2589 = vsel %vm2581, %v2572, %v2588
  %2590 = vst [vmem:[#allocation4 + $0x58] sm:$0x1] %v2589
  %v2591 = vld [vmem:[#allocation3 + $0x8] sm:$0x11]
  %v2592 = vld [vmem:[#allocation3 + $0x20] sm:$0x11]
  %v2595 = vunpack.c.l.b16 %v2591
  %v2596 = vunpack.c.h.b16 %v2591
  %v2597 = vunpack.c.l.b16 %v2592
  %v2598 = vunpack.c.h.b16 %v2592
  %v2599 = vpack.c.b16 %v2595, %v2595
  %v2600 = vpack.c.b16 %v2596, %v2596
  %v2601 = vpack.c.b16 %v2597, %v2597
  %v2602 = vpack.c.b16 %v2598, %v2598
  %v2604 = vshll.u32 %v2599, 16
  %v2607 = vshll.u32 %v2600, 16
  %v2610 = vshll.u32 %v2601, 16
  %v2613 = vshll.u32 %v2602, 16
  %2615 = vrot.lane.b32.xlu0 %v2604, 64
  %v2616 = vpop.permute.xlu0 %2615
  %2617 = vrot.lane.b32.xlu0 %v2607, 64
  %v2618 = vpop.permute.xlu0 %2617
  %2619 = vrot.lane.b32.xlu0 %v2610, 64
  %v2620 = vpop.permute.xlu0 %2619
  %2621 = vrot.lane.b32.xlu0 %v2613, 64
  %v2622 = vpop.permute.xlu0 %2621
  %v2623 = vsel %vm2320, %v2616, %v2618
  %v2624 = vsel %vm2320, %v2620, %v2622
  %vm2629 = vmand %vm2327, %vm76
  %v2630 = vld [vmem:[#allocation4 + $0x20] sm:$0x1]
  %v2631 = vsel %vm2629, %v2616, %v2630
  %2632 = vst [vmem:[#allocation4 + $0x20] sm:$0x1] %v2631
  %vm2633 = vmand %vm2332, %vm76
  %v2634 = vld [vmem:[#allocation4 + $0x28] sm:$0x1]
  %v2635 = vsel %vm2633, %v2623, %v2634
  %2636 = vst [vmem:[#allocation4 + $0x28] sm:$0x1] %v2635
  %v2637 = vld [vmem:[#allocation4 + $0x58] sm:$0x1]
  %v2638 = vsel %vm2629, %v2620, %v2637
  %2639 = vst [vmem:[#allocation4 + $0x58] sm:$0x1] %v2638
  %v2640 = vld [vmem:[#allocation4 + $0x60] sm:$0x1]
  %v2641 = vsel %vm2633, %v2624, %v2640
  %2642 = vst [vmem:[#allocation4 + $0x60] sm:$0x1] %v2641
  %v2643 = vld [vmem:[#allocation3 + $0x8] sm:$0x11]
  %v2644 = vld [vmem:[#allocation3 + $0x20] sm:$0x11]
  %v2647 = vunpack.c.l.b16 %v2643
  %v2648 = vunpack.c.h.b16 %v2643
  %v2649 = vunpack.c.l.b16 %v2644
  %v2650 = vunpack.c.h.b16 %v2644
  %v2651 = vpack.c.b16 %v2647, %v2647
  %v2652 = vpack.c.b16 %v2648, %v2648
  %v2653 = vpack.c.b16 %v2649, %v2649
  %v2654 = vpack.c.b16 %v2650, %v2650
  %2655 = vrot.lane.b32.xlu0 %v2651, 80
  %v2656 = vpop.permute.xlu0 %2655
  %2657 = vrot.lane.b32.xlu0 %v2652, 80
  %v2658 = vpop.permute.xlu0 %2657
  %2659 = vrot.lane.b32.xlu0 %v2653, 80
  %v2660 = vpop.permute.xlu0 %2659
  %2661 = vrot.lane.b32.xlu0 %v2654, 80
  %v2662 = vpop.permute.xlu0 %2661
  %v2663 = vsel %vm2379, %v2656, %v2658
  %v2664 = vsel %vm2379, %v2660, %v2662
  %vm2669 = vmand %vm2386, %vm76
  %v2670 = vld [vmem:[#allocation4 + $0x28] sm:$0x1]
  %v2671 = vsel %vm2669, %v2656, %v2670
  %2672 = vst [vmem:[#allocation4 + $0x28] sm:$0x1] %v2671
  %vm2673 = vmand %vm2391, %vm76
  %v2674 = vld [vmem:[#allocation4 + $0x30] sm:$0x1]
  %v2675 = vsel %vm2673, %v2663, %v2674
  %2676 = vst [vmem:[#allocation4 + $0x30] sm:$0x1] %v2675
  %v2677 = vld [vmem:[#allocation4 + $0x60] sm:$0x1]
  %v2678 = vsel %vm2669, %v2660, %v2677
  %2679 = vst [vmem:[#allocation4 + $0x60] sm:$0x1] %v2678
  %v2680 = vld [vmem:[#allocation4 + $0x68] sm:$0x1]
  %v2681 = vsel %vm2673, %v2664, %v2680
  %2682 = vst [vmem:[#allocation4 + $0x68] sm:$0x1] %v2681
  %v2683 = vld [vmem:[#allocation3 + $0x8] sm:$0x11]
  %v2684 = vld [vmem:[#allocation3 + $0x20] sm:$0x11]
  %v2687 = vunpack.c.l.b16 %v2683
  %v2688 = vunpack.c.h.b16 %v2683
  %v2689 = vunpack.c.l.b16 %v2684
  %v2690 = vunpack.c.h.b16 %v2684
  %v2691 = vpack.c.b16 %v2687, %v2687
  %v2692 = vpack.c.b16 %v2688, %v2688
  %v2693 = vpack.c.b16 %v2689, %v2689
  %v2694 = vpack.c.b16 %v2690, %v2690
  %v2695 = vrot.slane %v2691, 7
  %v2696 = vrot.slane %v2692, 7
  %v2697 = vrot.slane %v2693, 7
  %v2698 = vrot.slane %v2694, 7
  %vm2703 = vcmask 1041409
  %vm2704 = vsmask.f32 1280
  %vm2705 = vmand %vm2703, %vm2704
  %v2706 = vld [vmem:[#allocation4] sm:$0x2]
  %v2707 = vsel %vm2705, %v2695, %v2706
  %2708 = vst [vmem:[#allocation4] sm:$0x2] %v2707
  %vm2709 = vcmask 123905
  %vm2710 = vmand %vm2709, %vm2704
  %v2711 = vld [vmem:[#allocation4 + $0x8] sm:$0x2]
  %v2712 = vsel %vm2710, %v2696, %v2711
  %2713 = vst [vmem:[#allocation4 + $0x8] sm:$0x2] %v2712
  %v2714 = vld [vmem:[#allocation4 + $0x38] sm:$0x2]
  %v2715 = vsel %vm2705, %v2697, %v2714
  %2716 = vst [vmem:[#allocation4 + $0x38] sm:$0x2] %v2715
  %v2717 = vld [vmem:[#allocation4 + $0x40] sm:$0x2]
  %v2718 = vsel %vm2710, %v2698, %v2717
  %2719 = vst [vmem:[#allocation4 + $0x40] sm:$0x2] %v2718
  %v2720 = vld [vmem:[#allocation3 + $0x8] sm:$0x11]
  %v2721 = vld [vmem:[#allocation3 + $0x20] sm:$0x11]
  %v2724 = vunpack.c.l.b16 %v2720
  %v2725 = vunpack.c.h.b16 %v2720
  %v2726 = vunpack.c.l.b16 %v2721
  %v2727 = vunpack.c.h.b16 %v2721
  %v2728 = vpack.c.b16 %v2724, %v2724
  %v2729 = vpack.c.b16 %v2725, %v2725
  %v2730 = vpack.c.b16 %v2726, %v2726
  %v2731 = vpack.c.b16 %v2727, %v2727
  %v2733 = vshrl.u32 %v2728, 16
  %v2735 = vrot.slane %v2733, 7
  %v2737 = vshrl.u32 %v2729, 16
  %v2739 = vrot.slane %v2737, 7
  %v2741 = vshrl.u32 %v2730, 16
  %v2743 = vrot.slane %v2741, 7
  %v2745 = vshrl.u32 %v2731, 16
  %v2747 = vrot.slane %v2745, 7
  %2748 = vrot.lane.b32.xlu0 %v2735, 16
  %v2749 = vpop.permute.xlu0 %2748
  %2750 = vrot.lane.b32.xlu0 %v2739, 16
  %v2751 = vpop.permute.xlu0 %2750
  %2752 = vrot.lane.b32.xlu0 %v2743, 16
  %v2753 = vpop.permute.xlu0 %2752
  %2754 = vrot.lane.b32.xlu0 %v2747, 16
  %v2755 = vpop.permute.xlu0 %2754
  %v2756 = vsel %vm1267, %v2749, %v2751
  %v2757 = vsel %vm1267, %v2753, %v2755
  %vm2762 = vcmask 1041537
  %vm2763 = vmand %vm2762, %vm2704
  %v2764 = vld [vmem:[#allocation4 + $0x8] sm:$0x2]
  %v2765 = vsel %vm2763, %v2749, %v2764
  %2766 = vst [vmem:[#allocation4 + $0x8] sm:$0x2] %v2765
  %vm2767 = vcmask 254977
  %vm2768 = vmand %vm2767, %vm2704
  %v2769 = vld [vmem:[#allocation4 + $0x10] sm:$0x2]
  %v2770 = vsel %vm2768, %v2756, %v2769
  %2771 = vst [vmem:[#allocation4 + $0x10] sm:$0x2] %v2770
  %v2772 = vld [vmem:[#allocation4 + $0x40] sm:$0x2]
  %v2773 = vsel %vm2763, %v2753, %v2772
  %2774 = vst [vmem:[#allocation4 + $0x40] sm:$0x2] %v2773
  %v2775 = vld [vmem:[#allocation4 + $0x48] sm:$0x2]
  %v2776 = vsel %vm2768, %v2757, %v2775
  %2777 = vst [vmem:[#allocation4 + $0x48] sm:$0x2] %v2776
  %v2778 = vld [vmem:[#allocation3 + $0x8] sm:$0x22]
  %v2779 = vld [vmem:[#allocation3 + $0x20] sm:$0x22]
  %v2782 = vunpack.c.l.b16 %v2778
  %v2783 = vunpack.c.h.b16 %v2778
  %v2784 = vunpack.c.l.b16 %v2779
  %v2785 = vunpack.c.h.b16 %v2779
  %v2786 = vpack.c.b16 %v2782, %v2782
  %v2787 = vpack.c.b16 %v2783, %v2783
  %v2788 = vpack.c.b16 %v2784, %v2784
  %v2789 = vpack.c.b16 %v2785, %v2785
  %2790 = vrot.lane.b32.xlu0 %v2786, 32
  %v2791 = vpop.permute.xlu0 %2790
  %2792 = vrot.lane.b32.xlu0 %v2787, 32
  %v2793 = vpop.permute.xlu0 %2792
  %2794 = vrot.lane.b32.xlu0 %v2788, 32
  %v2795 = vpop.permute.xlu0 %2794
  %2796 = vrot.lane.b32.xlu0 %v2789, 32
  %v2797 = vpop.permute.xlu0 %2796
  %v2798 = vsel %vm1331, %v2791, %v2793
  %v2799 = vsel %vm1331, %v2795, %v2797
  %vm2804 = vcmask 1041665
  %vm2805 = vmand %vm2804, %vm2704
  %v2806 = vld [vmem:[#allocation4 + $0x10] sm:$0x2]
  %v2807 = vsel %vm2805, %v2791, %v2806
  %2808 = vst [vmem:[#allocation4 + $0x10] sm:$0x2] %v2807
  %vm2809 = vcmask 386049
  %vm2810 = vmand %vm2809, %vm2704
  %v2811 = vld [vmem:[#allocation4 + $0x18] sm:$0x2]
  %v2812 = vsel %vm2810, %v2798, %v2811
  %2813 = vst [vmem:[#allocation4 + $0x18] sm:$0x2] %v2812
  %v2814 = vld [vmem:[#allocation4 + $0x48] sm:$0x2]
  %v2815 = vsel %vm2805, %v2795, %v2814
  %2816 = vst [vmem:[#allocation4 + $0x48] sm:$0x2] %v2815
  %v2817 = vld [vmem:[#allocation4 + $0x50] sm:$0x2]
  %v2818 = vsel %vm2810, %v2799, %v2817
  %2819 = vst [vmem:[#allocation4 + $0x50] sm:$0x2] %v2818
  %v2820 = vld [vmem:[#allocation3 + $0x8] sm:$0x22]
  %v2821 = vld [vmem:[#allocation3 + $0x20] sm:$0x22]
  %v2824 = vunpack.c.l.b16 %v2820
  %v2825 = vunpack.c.h.b16 %v2820
  %v2826 = vunpack.c.l.b16 %v2821
  %v2827 = vunpack.c.h.b16 %v2821
  %v2828 = vpack.c.b16 %v2824, %v2824
  %v2829 = vpack.c.b16 %v2825, %v2825
  %v2830 = vpack.c.b16 %v2826, %v2826
  %v2831 = vpack.c.b16 %v2827, %v2827
  %v2833 = vshrl.u32 %v2828, 16
  %v2836 = vshrl.u32 %v2829, 16
  %v2839 = vshrl.u32 %v2830, 16
  %v2842 = vshrl.u32 %v2831, 16
  %2844 = vrot.lane.b32.xlu0 %v2833, 48
  %v2845 = vpop.permute.xlu0 %2844
  %2846 = vrot.lane.b32.xlu0 %v2836, 48
  %v2847 = vpop.permute.xlu0 %2846
  %2848 = vrot.lane.b32.xlu0 %v2839, 48
  %v2849 = vpop.permute.xlu0 %2848
  %2850 = vrot.lane.b32.xlu0 %v2842, 48
  %v2851 = vpop.permute.xlu0 %2850
  %v2852 = vsel %vm2273, %v2845, %v2847
  %v2853 = vsel %vm2273, %v2849, %v2851
  %vm2858 = vcmask 1041793
  %vm2859 = vmand %vm2858, %vm2704
  %v2860 = vld [vmem:[#allocation4 + $0x18] sm:$0x2]
  %v2861 = vsel %vm2859, %v2845, %v2860
  %2862 = vst [vmem:[#allocation4 + $0x18] sm:$0x2] %v2861
  %vm2863 = vcmask 517121
  %vm2864 = vmand %vm2863, %vm2704
  %v2865 = vld [vmem:[#allocation4 + $0x20] sm:$0x2]
  %v2866 = vsel %vm2864, %v2852, %v2865
  %2867 = vst [vmem:[#allocation4 + $0x20] sm:$0x2] %v2866
  %v2868 = vld [vmem:[#allocation4 + $0x50] sm:$0x2]
  %v2869 = vsel %vm2859, %v2849, %v2868
  %2870 = vst [vmem:[#allocation4 + $0x50] sm:$0x2] %v2869
  %v2871 = vld [vmem:[#allocation4 + $0x58] sm:$0x2]
  %v2872 = vsel %vm2864, %v2853, %v2871
  %2873 = vst [vmem:[#allocation4 + $0x58] sm:$0x2] %v2872
  %v2874 = vld [vmem:[#allocation3 + $0x8] sm:$0x44]
  %v2875 = vld [vmem:[#allocation3 + $0x20] sm:$0x44]
  %v2878 = vunpack.c.l.b16 %v2874
  %v2879 = vunpack.c.h.b16 %v2874
  %v2880 = vunpack.c.l.b16 %v2875
  %v2881 = vunpack.c.h.b16 %v2875
  %v2882 = vpack.c.b16 %v2878, %v2878
  %v2883 = vpack.c.b16 %v2879, %v2879
  %v2884 = vpack.c.b16 %v2880, %v2880
  %v2885 = vpack.c.b16 %v2881, %v2881
  %v2886 = vrot.slane %v2882, 1
  %v2887 = vrot.slane %v2883, 1
  %v2888 = vrot.slane %v2884, 1
  %v2889 = vrot.slane %v2885, 1
  %2890 = vrot.lane.b32.xlu0 %v2886, 64
  %v2891 = vpop.permute.xlu0 %2890
  %2892 = vrot.lane.b32.xlu0 %v2887, 64
  %v2893 = vpop.permute.xlu0 %2892
  %2894 = vrot.lane.b32.xlu0 %v2888, 64
  %v2895 = vpop.permute.xlu0 %2894
  %2896 = vrot.lane.b32.xlu0 %v2889, 64
  %v2897 = vpop.permute.xlu0 %2896
  %v2898 = vsel %vm2320, %v2891, %v2893
  %v2899 = vsel %vm2320, %v2895, %v2897
  %vm2904 = vcmask 1041921
  %vm2905 = vmand %vm2904, %vm2704
  %v2906 = vld [vmem:[#allocation4 + $0x20] sm:$0x2]
  %v2907 = vsel %vm2905, %v2891, %v2906
  %2908 = vst [vmem:[#allocation4 + $0x20] sm:$0x2] %v2907
  %vm2909 = vcmask 648193
  %vm2910 = vmand %vm2909, %vm2704
  %v2911 = vld [vmem:[#allocation4 + $0x28] sm:$0x2]
  %v2912 = vsel %vm2910, %v2898, %v2911
  %2913 = vst [vmem:[#allocation4 + $0x28] sm:$0x2] %v2912
  %v2914 = vld [vmem:[#allocation4 + $0x58] sm:$0x2]
  %v2915 = vsel %vm2905, %v2895, %v2914
  %2916 = vst [vmem:[#allocation4 + $0x58] sm:$0x2] %v2915
  %v2917 = vld [vmem:[#allocation4 + $0x60] sm:$0x2]
  %v2918 = vsel %vm2910, %v2899, %v2917
  %2919 = vst [vmem:[#allocation4 + $0x60] sm:$0x2] %v2918
  %v2920 = vld [vmem:[#allocation3 + $0x8] sm:$0x44]
  %v2921 = vld [vmem:[#allocation3 + $0x20] sm:$0x44]
  %v2924 = vunpack.c.l.b16 %v2920
  %v2925 = vunpack.c.h.b16 %v2920
  %v2926 = vunpack.c.l.b16 %v2921
  %v2927 = vunpack.c.h.b16 %v2921
  %v2928 = vpack.c.b16 %v2924, %v2924
  %v2929 = vpack.c.b16 %v2925, %v2925
  %v2930 = vpack.c.b16 %v2926, %v2926
  %v2931 = vpack.c.b16 %v2927, %v2927
  %v2933 = vshrl.u32 %v2928, 16
  %v2935 = vrot.slane %v2933, 1
  %v2937 = vshrl.u32 %v2929, 16
  %v2939 = vrot.slane %v2937, 1
  %v2941 = vshrl.u32 %v2930, 16
  %v2943 = vrot.slane %v2941, 1
  %v2945 = vshrl.u32 %v2931, 16
  %v2947 = vrot.slane %v2945, 1
  %2948 = vrot.lane.b32.xlu0 %v2935, 80
  %v2949 = vpop.permute.xlu0 %2948
  %2950 = vrot.lane.b32.xlu0 %v2939, 80
  %v2951 = vpop.permute.xlu0 %2950
  %2952 = vrot.lane.b32.xlu0 %v2943, 80
  %v2953 = vpop.permute.xlu0 %2952
  %2954 = vrot.lane.b32.xlu0 %v2947, 80
  %v2955 = vpop.permute.xlu0 %2954
  %v2956 = vsel %vm2379, %v2949, %v2951
  %v2957 = vsel %vm2379, %v2953, %v2955
  %vm2962 = vcmask 1042049
  %vm2963 = vmand %vm2962, %vm2704
  %v2964 = vld [vmem:[#allocation4 + $0x28] sm:$0x2]
  %v2965 = vsel %vm2963, %v2949, %v2964
  %2966 = vst [vmem:[#allocation4 + $0x28] sm:$0x2] %v2965
  %vm2967 = vcmask 779265
  %vm2968 = vmand %vm2967, %vm2704
  %v2969 = vld [vmem:[#allocation4 + $0x30] sm:$0x2]
  %v2970 = vsel %vm2968, %v2956, %v2969
  %2971 = vst [vmem:[#allocation4 + $0x30] sm:$0x2] %v2970
  %v2972 = vld [vmem:[#allocation4 + $0x60] sm:$0x2]
  %v2973 = vsel %vm2963, %v2953, %v2972
  %2974 = vst [vmem:[#allocation4 + $0x60] sm:$0x2] %v2973
  %v2975 = vld [vmem:[#allocation4 + $0x68] sm:$0x2]
  %v2976 = vsel %vm2968, %v2957, %v2975
  %2977 = vst [vmem:[#allocation4 + $0x68] sm:$0x2] %v2976
  %v2978 = vld [vmem:[#allocation3 + $0x8] sm:$0x44]
  %v2979 = vld [vmem:[#allocation3 + $0x20] sm:$0x44]
  %v2982 = vunpack.c.l.b16 %v2978
  %v2983 = vunpack.c.h.b16 %v2978
  %v2984 = vunpack.c.l.b16 %v2979
  %v2985 = vunpack.c.h.b16 %v2979
  %v2986 = vpack.c.b16 %v2982, %v2982
  %v2987 = vpack.c.b16 %v2983, %v2983
  %v2988 = vpack.c.b16 %v2984, %v2984
  %v2989 = vpack.c.b16 %v2985, %v2985
  %v2991 = vshll.u32 %v2986, 16
  %v2993 = vrot.slane %v2991, 1
  %v2995 = vshll.u32 %v2987, 16
  %v2997 = vrot.slane %v2995, 1
  %v2999 = vshll.u32 %v2988, 16
  %v3001 = vrot.slane %v2999, 1
  %v3003 = vshll.u32 %v2989, 16
  %v3005 = vrot.slane %v3003, 1
  %vm3010 = vsmask.f32 7942
  %vm3011 = vmand %vm2703, %vm3010
  %v3012 = vld [vmem:[#allocation4] sm:$0x2]
  %v3013 = vsel %vm3011, %v2993, %v3012
  %3014 = vst [vmem:[#allocation4] sm:$0x2] %v3013
  %vm3015 = vmand %vm2709, %vm3010
  %v3016 = vld [vmem:[#allocation4 + $0x8] sm:$0x2]
  %v3017 = vsel %vm3015, %v2997, %v3016
  %3018 = vst [vmem:[#allocation4 + $0x8] sm:$0x2] %v3017
  %v3019 = vld [vmem:[#allocation4 + $0x38] sm:$0x2]
  %v3020 = vsel %vm3011, %v3001, %v3019
  %3021 = vst [vmem:[#allocation4 + $0x38] sm:$0x2] %v3020
  %v3022 = vld [vmem:[#allocation4 + $0x40] sm:$0x2]
  %v3023 = vsel %vm3015, %v3005, %v3022
  %3024 = vst [vmem:[#allocation4 + $0x40] sm:$0x2] %v3023
  %v3025 = vld [vmem:[#allocation3 + $0x8] sm:$0x44]
  %v3026 = vld [vmem:[#allocation3 + $0x20] sm:$0x44]
  %v3029 = vunpack.c.l.b16 %v3025
  %v3030 = vunpack.c.h.b16 %v3025
  %v3031 = vunpack.c.l.b16 %v3026
  %v3032 = vunpack.c.h.b16 %v3026
  %v3033 = vpack.c.b16 %v3029, %v3029
  %v3034 = vpack.c.b16 %v3030, %v3030
  %v3035 = vpack.c.b16 %v3031, %v3031
  %v3036 = vpack.c.b16 %v3032, %v3032
  %v3037 = vrot.slane %v3033, 1
  %v3038 = vrot.slane %v3034, 1
  %v3039 = vrot.slane %v3035, 1
  %v3040 = vrot.slane %v3036, 1
  %3041 = vrot.lane.b32.xlu0 %v3037, 16
  %v3042 = vpop.permute.xlu0 %3041
  %3043 = vrot.lane.b32.xlu0 %v3038, 16
  %v3044 = vpop.permute.xlu0 %3043
  %3045 = vrot.lane.b32.xlu0 %v3039, 16
  %v3046 = vpop.permute.xlu0 %3045
  %3047 = vrot.lane.b32.xlu0 %v3040, 16
  %v3048 = vpop.permute.xlu0 %3047
  %v3049 = vsel %vm1267, %v3042, %v3044
  %v3050 = vsel %vm1267, %v3046, %v3048
  %vm3055 = vmand %vm2762, %vm3010
  %v3056 = vld [vmem:[#allocation4 + $0x8] sm:$0x2]
  %v3057 = vsel %vm3055, %v3042, %v3056
  %3058 = vst [vmem:[#allocation4 + $0x8] sm:$0x2] %v3057
  %vm3059 = vmand %vm2767, %vm3010
  %v3060 = vld [vmem:[#allocation4 + $0x10] sm:$0x2]
  %v3061 = vsel %vm3059, %v3049, %v3060
  %3062 = vst [vmem:[#allocation4 + $0x10] sm:$0x2] %v3061
  %v3063 = vld [vmem:[#allocation4 + $0x40] sm:$0x2]
  %v3064 = vsel %vm3055, %v3046, %v3063
  %3065 = vst [vmem:[#allocation4 + $0x40] sm:$0x2] %v3064
  %v3066 = vld [vmem:[#allocation4 + $0x48] sm:$0x2]
  %v3067 = vsel %vm3059, %v3050, %v3066
  %3068 = vst [vmem:[#allocation4 + $0x48] sm:$0x2] %v3067
  %v3069 = vld [vmem:[#allocation3 + $0x8] sm:$0x88]
  %v3070 = vld [vmem:[#allocation3 + $0x20] sm:$0x88]
  %v3073 = vunpack.c.l.b16 %v3069
  %v3074 = vunpack.c.h.b16 %v3069
  %v3075 = vunpack.c.l.b16 %v3070
  %v3076 = vunpack.c.h.b16 %v3070
  %v3077 = vpack.c.b16 %v3073, %v3073
  %v3078 = vpack.c.b16 %v3074, %v3074
  %v3079 = vpack.c.b16 %v3075, %v3075
  %v3080 = vpack.c.b16 %v3076, %v3076
  %v3082 = vshll.u32 %v3077, 16
  %v3084 = vrot.slane %v3082, 2
  %v3086 = vshll.u32 %v3078, 16
  %v3088 = vrot.slane %v3086, 2
  %v3090 = vshll.u32 %v3079, 16
  %v3092 = vrot.slane %v3090, 2
  %v3094 = vshll.u32 %v3080, 16
  %v3096 = vrot.slane %v3094, 2
  %3097 = vrot.lane.b32.xlu0 %v3084, 32
  %v3098 = vpop.permute.xlu0 %3097
  %3099 = vrot.lane.b32.xlu0 %v3088, 32
  %v3100 = vpop.permute.xlu0 %3099
  %3101 = vrot.lane.b32.xlu0 %v3092, 32
  %v3102 = vpop.permute.xlu0 %3101
  %3103 = vrot.lane.b32.xlu0 %v3096, 32
  %v3104 = vpop.permute.xlu0 %3103
  %v3105 = vsel %vm1331, %v3098, %v3100
  %v3106 = vsel %vm1331, %v3102, %v3104
  %vm3111 = vmand %vm2804, %vm3010
  %v3112 = vld [vmem:[#allocation4 + $0x10] sm:$0x2]
  %v3113 = vsel %vm3111, %v3098, %v3112
  %3114 = vst [vmem:[#allocation4 + $0x10] sm:$0x2] %v3113
  %vm3115 = vmand %vm2809, %vm3010
  %v3116 = vld [vmem:[#allocation4 + $0x18] sm:$0x2]
  %v3117 = vsel %vm3115, %v3105, %v3116
  %3118 = vst [vmem:[#allocation4 + $0x18] sm:$0x2] %v3117
  %v3119 = vld [vmem:[#allocation4 + $0x48] sm:$0x2]
  %v3120 = vsel %vm3111, %v3102, %v3119
  %3121 = vst [vmem:[#allocation4 + $0x48] sm:$0x2] %v3120
  %v3122 = vld [vmem:[#allocation4 + $0x50] sm:$0x2]
  %v3123 = vsel %vm3115, %v3106, %v3122
  %3124 = vst [vmem:[#allocation4 + $0x50] sm:$0x2] %v3123
  %v3125 = vld [vmem:[#allocation3 + $0x8] sm:$0x88]
  %v3126 = vld [vmem:[#allocation3 + $0x20] sm:$0x88]
  %v3129 = vunpack.c.l.b16 %v3125
  %v3130 = vunpack.c.h.b16 %v3125
  %v3131 = vunpack.c.l.b16 %v3126
  %v3132 = vunpack.c.h.b16 %v3126
  %v3133 = vpack.c.b16 %v3129, %v3129
  %v3134 = vpack.c.b16 %v3130, %v3130
  %v3135 = vpack.c.b16 %v3131, %v3131
  %v3136 = vpack.c.b16 %v3132, %v3132
  %v3137 = vrot.slane %v3133, 2
  %v3138 = vrot.slane %v3134, 2
  %v3139 = vrot.slane %v3135, 2
  %v3140 = vrot.slane %v3136, 2
  %3141 = vrot.lane.b32.xlu0 %v3137, 48
  %v3142 = vpop.permute.xlu0 %3141
  %3143 = vrot.lane.b32.xlu0 %v3138, 48
  %v3144 = vpop.permute.xlu0 %3143
  %3145 = vrot.lane.b32.xlu0 %v3139, 48
  %v3146 = vpop.permute.xlu0 %3145
  %3147 = vrot.lane.b32.xlu0 %v3140, 48
  %v3148 = vpop.permute.xlu0 %3147
  %v3149 = vsel %vm2273, %v3142, %v3144
  %v3150 = vsel %vm2273, %v3146, %v3148
  %vm3155 = vmand %vm2858, %vm3010
  %v3156 = vld [vmem:[#allocation4 + $0x18] sm:$0x2]
  %v3157 = vsel %vm3155, %v3142, %v3156
  %3158 = vst [vmem:[#allocation4 + $0x18] sm:$0x2] %v3157
  %vm3159 = vmand %vm2863, %vm3010
  %v3160 = vld [vmem:[#allocation4 + $0x20] sm:$0x2]
  %v3161 = vsel %vm3159, %v3149, %v3160
  %3162 = vst [vmem:[#allocation4 + $0x20] sm:$0x2] %v3161
  %v3163 = vld [vmem:[#allocation4 + $0x50] sm:$0x2]
  %v3164 = vsel %vm3155, %v3146, %v3163
  %3165 = vst [vmem:[#allocation4 + $0x50] sm:$0x2] %v3164
  %v3166 = vld [vmem:[#allocation4 + $0x58] sm:$0x2]
  %v3167 = vsel %vm3159, %v3150, %v3166
  %3168 = vst [vmem:[#allocation4 + $0x58] sm:$0x2] %v3167
  %v3169 = vld [vmem:[#allocation3 + $0x10] sm:$0x11]
  %v3170 = vld [vmem:[#allocation3 + $0x28] sm:$0x11]
  %v3173 = vunpack.c.l.b16 %v3169
  %v3174 = vunpack.c.h.b16 %v3169
  %v3175 = vunpack.c.l.b16 %v3170
  %v3176 = vunpack.c.h.b16 %v3170
  %v3177 = vpack.c.b16 %v3173, %v3173
  %v3178 = vpack.c.b16 %v3174, %v3174
  %v3179 = vpack.c.b16 %v3175, %v3175
  %v3180 = vpack.c.b16 %v3176, %v3176
  %v3182 = vshll.u32 %v3177, 16
  %v3184 = vrot.slane %v3182, 7
  %v3186 = vshll.u32 %v3178, 16
  %v3188 = vrot.slane %v3186, 7
  %v3190 = vshll.u32 %v3179, 16
  %v3192 = vrot.slane %v3190, 7
  %v3194 = vshll.u32 %v3180, 16
  %v3196 = vrot.slane %v3194, 7
  %3197 = vrot.lane.b32.xlu0 %v3184, 64
  %v3198 = vpop.permute.xlu0 %3197
  %3199 = vrot.lane.b32.xlu0 %v3188, 64
  %v3200 = vpop.permute.xlu0 %3199
  %3201 = vrot.lane.b32.xlu0 %v3192, 64
  %v3202 = vpop.permute.xlu0 %3201
  %3203 = vrot.lane.b32.xlu0 %v3196, 64
  %v3204 = vpop.permute.xlu0 %3203
  %v3205 = vsel %vm2320, %v3198, %v3200
  %v3206 = vsel %vm2320, %v3202, %v3204
  %vm3211 = vmand %vm2904, %vm3010
  %v3212 = vld [vmem:[#allocation4 + $0x20] sm:$0x2]
  %v3213 = vsel %vm3211, %v3198, %v3212
  %3214 = vst [vmem:[#allocation4 + $0x20] sm:$0x2] %v3213
  %vm3215 = vmand %vm2909, %vm3010
  %v3216 = vld [vmem:[#allocation4 + $0x28] sm:$0x2]
  %v3217 = vsel %vm3215, %v3205, %v3216
  %3218 = vst [vmem:[#allocation4 + $0x28] sm:$0x2] %v3217
  %v3219 = vld [vmem:[#allocation4 + $0x58] sm:$0x2]
  %v3220 = vsel %vm3211, %v3202, %v3219
  %3221 = vst [vmem:[#allocation4 + $0x58] sm:$0x2] %v3220
  %v3222 = vld [vmem:[#allocation4 + $0x60] sm:$0x2]
  %v3223 = vsel %vm3215, %v3206, %v3222
  %3224 = vst [vmem:[#allocation4 + $0x60] sm:$0x2] %v3223
  %v3225 = vld [vmem:[#allocation3 + $0x10] sm:$0x11]
  %v3226 = vld [vmem:[#allocation3 + $0x28] sm:$0x11]
  %v3229 = vunpack.c.l.b16 %v3225
  %v3230 = vunpack.c.h.b16 %v3225
  %v3231 = vunpack.c.l.b16 %v3226
  %v3232 = vunpack.c.h.b16 %v3226
  %v3233 = vpack.c.b16 %v3229, %v3229
  %v3234 = vpack.c.b16 %v3230, %v3230
  %v3235 = vpack.c.b16 %v3231, %v3231
  %v3236 = vpack.c.b16 %v3232, %v3232
  %v3237 = vrot.slane %v3233, 7
  %v3238 = vrot.slane %v3234, 7
  %v3239 = vrot.slane %v3235, 7
  %v3240 = vrot.slane %v3236, 7
  %3241 = vrot.lane.b32.xlu0 %v3237, 80
  %v3242 = vpop.permute.xlu0 %3241
  %3243 = vrot.lane.b32.xlu0 %v3238, 80
  %v3244 = vpop.permute.xlu0 %3243
  %3245 = vrot.lane.b32.xlu0 %v3239, 80
  %v3246 = vpop.permute.xlu0 %3245
  %3247 = vrot.lane.b32.xlu0 %v3240, 80
  %v3248 = vpop.permute.xlu0 %3247
  %v3249 = vsel %vm2379, %v3242, %v3244
  %v3250 = vsel %vm2379, %v3246, %v3248
  %vm3255 = vmand %vm2962, %vm3010
  %v3256 = vld [vmem:[#allocation4 + $0x28] sm:$0x2]
  %v3257 = vsel %vm3255, %v3242, %v3256
  %3258 = vst [vmem:[#allocation4 + $0x28] sm:$0x2] %v3257
  %vm3259 = vmand %vm2967, %vm3010
  %v3260 = vld [vmem:[#allocation4 + $0x30] sm:$0x2]
  %v3261 = vsel %vm3259, %v3249, %v3260
  %3262 = vst [vmem:[#allocation4 + $0x30] sm:$0x2] %v3261
  %v3263 = vld [vmem:[#allocation4 + $0x60] sm:$0x2]
  %v3264 = vsel %vm3255, %v3246, %v3263
  %3265 = vst [vmem:[#allocation4 + $0x60] sm:$0x2] %v3264
  %v3266 = vld [vmem:[#allocation4 + $0x68] sm:$0x2]
  %v3267 = vsel %vm3259, %v3250, %v3266
  %3268 = vst [vmem:[#allocation4 + $0x68] sm:$0x2] %v3267
  %v3269 = vld [vmem:[#allocation4] sm:$0x3]
  %v3270 = vld [vmem:[#allocation4 + $0x8] sm:$0x3]
  %v3271 = vld [vmem:[#allocation4 + $0x10] sm:$0x3]
  %v3272 = vld [vmem:[#allocation4 + $0x18] sm:$0x3]
  %v3273 = vld [vmem:[#allocation4 + $0x20] sm:$0x3]
  %v3274 = vld [vmem:[#allocation4 + $0x28] sm:$0x3]
  %v3275 = vld [vmem:[#allocation4 + $0x30] sm:$0x3]
  %v3276 = vld [vmem:[#allocation4 + $0x38] sm:$0x3]
  %v3277 = vld [vmem:[#allocation4 + $0x40] sm:$0x3]
  %v3278 = vld [vmem:[#allocation4 + $0x48] sm:$0x3]
  %v3279 = vld [vmem:[#allocation4 + $0x50] sm:$0x3]
  %v3280 = vld [vmem:[#allocation4 + $0x58] sm:$0x3]
  %v3281 = vld [vmem:[#allocation4 + $0x60] sm:$0x3]
  %v3282 = vld [vmem:[#allocation4 + $0x68] sm:$0x3]
  %v3297 = vcombine.low %v3269, %v3270
  %v3298 = vcombine.low %v3271, %v3272
  %v3300 = vunpack.c.l.s4 1983009808
  %v3301 = vunpack.c.0.s8 %v3300
  %v3302 = vlaneseq
  %v3303 = vshrl.u32 %v3302, 7
  %v3304 = vsub.s32 %v3301, %v3303
  %v3305 = vrot.slane %v3297, %v3304
  %v3307 = vunpack.c.l.s4 1983009808
  %v3308 = vunpack.c.0.s8 %v3307
  %v3309 = vlaneseq
  %v3310 = vshrl.u32 %v3309, 7
  %v3311 = vsub.s32 %v3308, %v3310
  %v3312 = vrot.slane %v3298, %v3311
  %v3313 = vcombine.low %v3305, %v3312
  %v3314 = vcombine.low %v3273, %v3274
  %v3316 = vunpack.c.l.s4 1983009808
  %v3317 = vunpack.c.0.s8 %v3316
  %v3318 = vlaneseq
  %v3319 = vshrl.u32 %v3318, 7
  %v3320 = vsub.s32 %v3317, %v3319
  %v3321 = vrot.slane %v3314, %v3320
  %v3323 = vunpack.c.l.s4 1983009808
  %v3324 = vunpack.c.0.s8 %v3323
  %v3325 = vlaneseq
  %v3326 = vshrl.u32 %v3325, 7
  %v3327 = vsub.s32 %v3324, %v3326
  %v3328 = vrot.slane %v3275, %v3327
  %v3329 = vcombine.low %v3321, %v3328
  %v3330 = vcombine.low %v3276, %v3277
  %v3331 = vcombine.low %v3278, %v3279
  %v3333 = vunpack.c.l.s4 1983009808
  %v3334 = vunpack.c.0.s8 %v3333
  %v3335 = vlaneseq
  %v3336 = vshrl.u32 %v3335, 7
  %v3337 = vsub.s32 %v3334, %v3336
  %v3338 = vrot.slane %v3330, %v3337
  %v3340 = vunpack.c.l.s4 1983009808
  %v3341 = vunpack.c.0.s8 %v3340
  %v3342 = vlaneseq
  %v3343 = vshrl.u32 %v3342, 7
  %v3344 = vsub.s32 %v3341, %v3343
  %v3345 = vrot.slane %v3331, %v3344
  %v3346 = vcombine.low %v3338, %v3345
  %v3347 = vcombine.low %v3280, %v3281
  %v3349 = vunpack.c.l.s4 1983009808
  %v3350 = vunpack.c.0.s8 %v3349
  %v3351 = vlaneseq
  %v3352 = vshrl.u32 %v3351, 7
  %v3353 = vsub.s32 %v3350, %v3352
  %v3354 = vrot.slane %v3347, %v3353
  %v3356 = vunpack.c.l.s4 1983009808
  %v3357 = vunpack.c.0.s8 %v3356
  %v3358 = vlaneseq
  %v3359 = vshrl.u32 %v3358, 7
  %v3360 = vsub.s32 %v3357, %v3359
  %v3361 = vrot.slane %v3282, %v3360
  %v3362 = vcombine.low %v3354, %v3361
  %v3363 = vld [vmem:[%s6] sm:$0xf]
  %v3364 = vld [vmem:[%s6 + $0x4] sm:$0xf]
  %v3365 = vld [vmem:[%s6 + $0x8] sm:$0xf]
  %v3366 = vld [vmem:[%s6 + $0xc] sm:$0xf]
  %v3367 = vld [vmem:[%s6 + $0x10] sm:$0xf]
  %v3368 = vld [vmem:[%s6 + $0x14] sm:$0xf]
  %v3369 = vld [vmem:[%s6 + $0x18] sm:$0xf]
  %v3370 = vld [vmem:[%s6 + $0x1c] sm:$0xf]
  %v3371 = vld [vmem:[%s6 + $0x20] sm:$0xf]
  %v3372 = vld [vmem:[%s6 + $0x24] sm:$0xf]
  %v3373 = vld [vmem:[%s6 + $0x28] sm:$0xf]
  %v3374 = vld [vmem:[%s6 + $0x2c] sm:$0xf]
  %v3375 = vld [vmem:[%s6 + $0x30] sm:$0xf]
  %v3376 = vld [vmem:[%s6 + $0x34] sm:$0xf]
  %v3377 = vld [vmem:[%s6 + $0x38] sm:$0xf]
  %v3378 = vld [vmem:[%s6 + $0x3c] sm:$0xf]
  %v3379 = vld [vmem:[%s6 + $0x40] sm:$0xf]
  %v3380 = vld [vmem:[%s6 + $0x44] sm:$0xf]
  %v3381 = vld [vmem:[%s6 + $0x48] sm:$0xf]
  %v3382 = vld [vmem:[%s6 + $0x4c] sm:$0xf]
  %v3383 = vld [vmem:[%s6 + $0x50] sm:$0xf]
  %v3384 = vld [vmem:[%s6 + $0x54] sm:$0xf]
  %v3385 = vld [vmem:[%s6 + $0x58] sm:$0xf]
  %v3386 = vld [vmem:[%s6 + $0x5c] sm:$0xf]
  %v3387 = vld [vmem:[%s6 + $0x60] sm:$0xf]
  %v3388 = vld [vmem:[%s6 + $0x64] sm:$0xf]
  %v3389 = vld [vmem:[%s6 + $0x68] sm:$0xf]
  %v3390 = vld [vmem:[%s6 + $0x6c] sm:$0xf]
  %v3391 = vld [vmem:[%s6 + $0x70] sm:$0xf]
  %v3392 = vld [vmem:[%s6 + $0x74] sm:$0xf]
  %v3393 = vld [vmem:[%s6 + $0x78] sm:$0xf]
  %v3394 = vld [vmem:[%s6 + $0x7c] sm:$0xf]
  %v3395 = vld [vmem:[%s6 + $0x80] sm:$0xf]
  %v3396 = vld [vmem:[%s6 + $0x84] sm:$0xf]
  %v3397 = vld [vmem:[%s6 + $0x88] sm:$0xf]
  %v3398 = vld [vmem:[%s6 + $0x8c] sm:$0xf]
  %v3399 = vld [vmem:[%s6 + $0x90] sm:$0xf]
  %v3400 = vld [vmem:[%s6 + $0x94] sm:$0xf]
  %v3401 = vld [vmem:[%s6 + $0x98] sm:$0xf]
  %v3402 = vld [vmem:[%s6 + $0x9c] sm:$0xf]
  %v3403 = vld [vmem:[%s6 + $0xa0] sm:$0xf]
  %v3404 = vld [vmem:[%s6 + $0xa4] sm:$0xf]
  %v3405 = vld [vmem:[%s6 + $0xa8] sm:$0xf]
  %v3406 = vld [vmem:[%s6 + $0xac] sm:$0xf]
  %v3407 = vld [vmem:[%s6 + $0xb0] sm:$0xf]
  %v3408 = vld [vmem:[%s6 + $0xb4] sm:$0xf]
  %v3409 = vld [vmem:[%s6 + $0xb8] sm:$0xf]
  %v3410 = vld [vmem:[%s6 + $0xbc] sm:$0xf]
  %v3411 = vld [vmem:[%s6 + $0xc0] sm:$0xf]
  %v3412 = vld [vmem:[%s6 + $0xc4] sm:$0xf]
  %v3413 = vld [vmem:[%s6 + $0xc8] sm:$0xf]
  %v3414 = vld [vmem:[%s6 + $0xcc] sm:$0xf]
  %v3415 = vld [vmem:[%s6 + $0xd0] sm:$0xf]
  %v3416 = vld [vmem:[%s6 + $0xd4] sm:$0xf]
  %v3417 = vld [vmem:[%s6 + $0xd8] sm:$0xf]
  %v3418 = vld [vmem:[%s6 + $0xdc] sm:$0xf]
  %v3419 = vld [vmem:[%s6 + $0xe0] sm:$0xf]
  %v3420 = vld [vmem:[%s6 + $0xe4] sm:$0xf]
  %v3421 = vld [vmem:[%s6 + $0xe8] sm:$0xf]
  %v3422 = vld [vmem:[%s6 + $0xec] sm:$0xf]
  %v3423 = vld [vmem:[%s6 + $0xf0] sm:$0xf]
  %v3424 = vld [vmem:[%s6 + $0xf4] sm:$0xf]
  %v3425 = vld [vmem:[%s6 + $0xf8] sm:$0xf]
  %v3426 = vld [vmem:[%s6 + $0xfc] sm:$0xf]
  %v3427 = vld [vmem:[%s6 + $0x100] sm:$0xf]
  %v3428 = vld [vmem:[%s6 + $0x104] sm:$0xf]
  %v3429 = vld [vmem:[%s6 + $0x108] sm:$0xf]
  %v3430 = vld [vmem:[%s6 + $0x10c] sm:$0xf]
  %v3431 = vld [vmem:[%s6 + $0x110] sm:$0xf]
  %v3432 = vld [vmem:[%s6 + $0x114] sm:$0xf]
  %v3433 = vld [vmem:[%s6 + $0x118] sm:$0xf]
  %v3434 = vld [vmem:[%s6 + $0x11c] sm:$0xf]
  %v3435 = vld [vmem:[%s6 + $0x120] sm:$0xf]
  %v3436 = vld [vmem:[%s6 + $0x124] sm:$0xf]
  %v3437 = vld [vmem:[%s6 + $0x128] sm:$0xf]
  %v3438 = vld [vmem:[%s6 + $0x12c] sm:$0xf]
  %v3439 = vld [vmem:[%s6 + $0x130] sm:$0xf]
  %v3440 = vld [vmem:[%s6 + $0x134] sm:$0xf]
  %v3441 = vld [vmem:[%s6 + $0x138] sm:$0xf]
  %v3442 = vld [vmem:[%s6 + $0x13c] sm:$0xf]
  %v3443 = vld [vmem:[%s6 + $0x140] sm:$0xf]
  %v3444 = vld [vmem:[%s6 + $0x144] sm:$0xf]
  %v3445 = vld [vmem:[%s6 + $0x148] sm:$0xf]
  %v3446 = vld [vmem:[%s6 + $0x14c] sm:$0xf]
  %v3447 = vld [vmem:[%s6 + $0x150] sm:$0xf]
  %v3448 = vld [vmem:[%s6 + $0x154] sm:$0xf]
  %v3449 = vld [vmem:[%s6 + $0x158] sm:$0xf]
  %v3450 = vld [vmem:[%s6 + $0x15c] sm:$0xf]
  %v3451 = vld [vmem:[%s6 + $0x160] sm:$0xf]
  %v3452 = vld [vmem:[%s6 + $0x164] sm:$0xf]
  %v3453 = vld [vmem:[%s6 + $0x168] sm:$0xf]
  %v3454 = vld [vmem:[%s6 + $0x16c] sm:$0xf]
  %v3455 = vld [vmem:[%s6 + $0x170] sm:$0xf]
  %v3456 = vld [vmem:[%s6 + $0x174] sm:$0xf]
  %v3457 = vld [vmem:[%s6 + $0x178] sm:$0xf]
  %v3458 = vld [vmem:[%s6 + $0x17c] sm:$0xf]
  %v3459 = vld [vmem:[%s6 + $0x180] sm:$0xf]
  %v3460 = vld [vmem:[%s6 + $0x184] sm:$0xf]
  %v3461 = vld [vmem:[%s6 + $0x188] sm:$0xf]
  %v3462 = vld [vmem:[%s6 + $0x18c] sm:$0xf]
  %v3463 = vld [vmem:[%s6 + $0x190] sm:$0xf]
  %v3464 = vld [vmem:[%s6 + $0x194] sm:$0xf]
  %v3465 = vld [vmem:[%s6 + $0x198] sm:$0xf]
  %v3466 = vld [vmem:[%s6 + $0x19c] sm:$0xf]
  %v3467 = vld [vmem:[%s6 + $0x1a0] sm:$0xf]
  %v3468 = vld [vmem:[%s6 + $0x1a4] sm:$0xf]
  %v3469 = vld [vmem:[%s6 + $0x1a8] sm:$0xf]
  %v3470 = vld [vmem:[%s6 + $0x1ac] sm:$0xf]
  %v3471 = vld [vmem:[%s7] sm:$0x1]
  %v3473 = vlaneseq
  %v3474 = vshrl.u32 %v3473, 7
  %v3475 = vsub.s32 0, %v3474
  %v3476 = vrot.slane %v3471, %v3475
  %v3478 = vcombine.low %v3313, %v3346
  %v3479 = vcombine.high %v3313, %v3346
  %v3481 = vunpack.c.l.s4 1983009808
  %v3482 = vunpack.c.0.s8 %v3481
  %v3483 = vlaneseq
  %v3484 = vshrl.u32 %v3483, 7
  %v3485 = vsub.s32 %v3482, %v3484
  %v3486 = vrot.slane %v3478, %v3485
  %v3488 = vunpack.c.l.s4 1983009808
  %v3489 = vunpack.c.0.s8 %v3488
  %v3490 = vlaneseq
  %v3491 = vshrl.u32 %v3490, 7
  %v3492 = vsub.s32 %v3489, %v3491
  %v3493 = vrot.slane %v3479, %v3492
  %v3494 = vcombine.high %v3486, %v3486
  %v3495 = vcombine.high %v3493, %v3493
  %v3496 = vcombine.low %v3329, %v3362
  %v3497 = vcombine.high %v3329, %v3362
  %v3499 = vunpack.c.l.s4 1983009808
  %v3500 = vunpack.c.0.s8 %v3499
  %v3501 = vlaneseq
  %v3502 = vshrl.u32 %v3501, 7
  %v3503 = vsub.s32 %v3500, %v3502
  %v3504 = vrot.slane %v3496, %v3503
  %v3506 = vunpack.c.l.s4 1983009808
  %v3507 = vunpack.c.0.s8 %v3506
  %v3508 = vlaneseq
  %v3509 = vshrl.u32 %v3508, 7
  %v3510 = vsub.s32 %v3507, %v3509
  %v3511 = vrot.slane %v3497, %v3510
  %v3512 = vcombine.high %v3504, %v3504
  %v3627 = vunpack.c.l.b16 %v3363
  %v3628 = vunpack.c.l.b16 %v3364
  %v3629 = vunpack.c.l.b16 %v3365
  %v3630 = vunpack.c.l.b16 %v3366
  %v3631 = vunpack.c.l.b16 %v3367
  %v3632 = vunpack.c.l.b16 %v3368
  %v3633 = vunpack.c.l.b16 %v3369
  %v3634 = vunpack.c.l.b16 %v3370
  %v3635 = vunpack.c.l.b16 %v3371
  %v3636 = vunpack.c.l.b16 %v3372
  %v3637 = vunpack.c.l.b16 %v3373
  %v3638 = vunpack.c.l.b16 %v3374
  %v3639 = vunpack.c.l.b16 %v3375
  %v3640 = vunpack.c.l.b16 %v3376
  %v3641 = vunpack.c.l.b16 %v3377
  %v3642 = vunpack.c.l.b16 %v3378
  %v3643 = vunpack.c.l.b16 %v3379
  %v3644 = vunpack.c.l.b16 %v3380
  %v3645 = vunpack.c.l.b16 %v3381
  %v3646 = vunpack.c.l.b16 %v3382
  %v3647 = vunpack.c.l.b16 %v3383
  %v3648 = vunpack.c.l.b16 %v3384
  %v3649 = vunpack.c.l.b16 %v3385
  %v3650 = vunpack.c.l.b16 %v3386
  %v3651 = vunpack.c.l.b16 %v3387
  %v3652 = vunpack.c.l.b16 %v3388
  %v3653 = vunpack.c.l.b16 %v3389
  %v3654 = vunpack.c.l.b16 %v3390
  %v3655 = vunpack.c.l.b16 %v3391
  %v3656 = vunpack.c.l.b16 %v3392
  %v3657 = vunpack.c.l.b16 %v3393
  %v3658 = vunpack.c.l.b16 %v3394
  %v3659 = vunpack.c.l.b16 %v3395
  %v3660 = vunpack.c.l.b16 %v3396
  %v3661 = vunpack.c.l.b16 %v3397
  %v3662 = vunpack.c.l.b16 %v3398
  %v3663 = vunpack.c.l.b16 %v3399
  %v3664 = vunpack.c.l.b16 %v3400
  %v3665 = vunpack.c.l.b16 %v3401
  %v3666 = vunpack.c.l.b16 %v3402
  %v3667 = vunpack.c.l.b16 %v3403
  %v3668 = vunpack.c.l.b16 %v3404
  %v3669 = vunpack.c.l.b16 %v3405
  %v3670 = vunpack.c.l.b16 %v3406
  %v3671 = vunpack.c.l.b16 %v3407
  %v3672 = vunpack.c.l.b16 %v3408
  %v3673 = vunpack.c.l.b16 %v3409
  %v3674 = vunpack.c.l.b16 %v3410
  %v3675 = vunpack.c.l.b16 %v3411
  %v3676 = vunpack.c.l.b16 %v3412
  %v3677 = vunpack.c.l.b16 %v3413
  %v3678 = vunpack.c.l.b16 %v3414
  %v3679 = vunpack.c.l.b16 %v3415
  %v3680 = vunpack.c.l.b16 %v3416
  %v3681 = vunpack.c.l.b16 %v3417
  %v3682 = vunpack.c.l.b16 %v3418
  %v3683 = vunpack.c.l.b16 %v3419
  %v3684 = vunpack.c.l.b16 %v3420
  %v3685 = vunpack.c.l.b16 %v3421
  %v3686 = vunpack.c.l.b16 %v3422
  %v3687 = vunpack.c.l.b16 %v3423
  %v3688 = vunpack.c.l.b16 %v3424
  %v3689 = vunpack.c.l.b16 %v3425
  %v3690 = vunpack.c.l.b16 %v3426
  %v3691 = vunpack.c.l.b16 %v3427
  %v3692 = vunpack.c.l.b16 %v3428
  %v3693 = vunpack.c.l.b16 %v3429
  %v3694 = vunpack.c.l.b16 %v3430
  %v3695 = vunpack.c.l.b16 %v3431
  %v3696 = vunpack.c.l.b16 %v3432
  %v3697 = vunpack.c.l.b16 %v3433
  %v3698 = vunpack.c.l.b16 %v3434
  %v3699 = vunpack.c.l.b16 %v3435
  %v3700 = vunpack.c.l.b16 %v3436
  %v3701 = vunpack.c.l.b16 %v3437
  %v3702 = vunpack.c.l.b16 %v3438
  %v3703 = vunpack.c.l.b16 %v3439
  %v3704 = vunpack.c.l.b16 %v3440
  %v3705 = vunpack.c.l.b16 %v3441
  %v3706 = vunpack.c.l.b16 %v3442
  %v3707 = vunpack.c.l.b16 %v3443
  %v3708 = vunpack.c.l.b16 %v3444
  %v3709 = vunpack.c.l.b16 %v3445
  %v3710 = vunpack.c.l.b16 %v3446
  %v3711 = vunpack.c.l.b16 %v3447
  %v3712 = vunpack.c.l.b16 %v3448
  %v3713 = vunpack.c.l.b16 %v3449
  %v3714 = vunpack.c.l.b16 %v3450
  %v3715 = vunpack.c.l.b16 %v3451
  %v3716 = vunpack.c.l.b16 %v3452
  %v3717 = vunpack.c.l.b16 %v3453
  %v3718 = vunpack.c.l.b16 %v3454
  %v3719 = vunpack.c.l.b16 %v3455
  %v3720 = vunpack.c.l.b16 %v3456
  %v3721 = vunpack.c.l.b16 %v3457
  %v3722 = vunpack.c.l.b16 %v3458
  %v3723 = vunpack.c.l.b16 %v3459
  %v3724 = vunpack.c.l.b16 %v3460
  %v3725 = vunpack.c.l.b16 %v3461
  %v3726 = vunpack.c.l.b16 %v3462
  %v3727 = vunpack.c.l.b16 %v3463
  %v3728 = vunpack.c.l.b16 %v3464
  %v3729 = vunpack.c.l.b16 %v3465
  %v3730 = vunpack.c.l.b16 %v3466
  %v3731 = vunpack.c.l.b16 %v3467
  %v3732 = vunpack.c.l.b16 %v3468
  %v3733 = vunpack.c.l.b16 %v3469
  %v3734 = vunpack.c.l.b16 %v3470
  %v3735 = vpack.c.b16 %v3628, %v3627
  %v3736 = vpack.c.b16 %v3630, %v3629
  %v3737 = vpack.c.b16 %v3632, %v3631
  %v3738 = vpack.c.b16 %v3634, %v3633
  %v3739 = vpack.c.b16 %v3636, %v3635
  %v3740 = vpack.c.b16 %v3638, %v3637
  %v3741 = vpack.c.b16 %v3640, %v3639
  %v3742 = vpack.c.b16 %v3642, %v3641
  %v3743 = vpack.c.b16 %v3644, %v3643
  %v3744 = vpack.c.b16 %v3646, %v3645
  %v3745 = vpack.c.b16 %v3648, %v3647
  %v3746 = vpack.c.b16 %v3650, %v3649
  %v3747 = vpack.c.b16 %v3652, %v3651
  %v3748 = vpack.c.b16 %v3654, %v3653
  %v3749 = vpack.c.b16 %v3656, %v3655
  %v3750 = vpack.c.b16 %v3658, %v3657
  %v3751 = vpack.c.b16 %v3660, %v3659
  %v3752 = vpack.c.b16 %v3662, %v3661
  %v3753 = vpack.c.b16 %v3664, %v3663
  %v3754 = vpack.c.b16 %v3666, %v3665
  %v3755 = vpack.c.b16 %v3668, %v3667
  %v3756 = vpack.c.b16 %v3670, %v3669
  %v3757 = vpack.c.b16 %v3672, %v3671
  %v3758 = vpack.c.b16 %v3674, %v3673
  %v3759 = vpack.c.b16 %v3676, %v3675
  %v3760 = vpack.c.b16 %v3678, %v3677
  %v3761 = vpack.c.b16 %v3680, %v3679
  %v3762 = vpack.c.b16 %v3682, %v3681
  %v3763 = vpack.c.b16 %v3684, %v3683
  %v3764 = vpack.c.b16 %v3686, %v3685
  %v3765 = vpack.c.b16 %v3688, %v3687
  %v3766 = vpack.c.b16 %v3690, %v3689
  %v3767 = vpack.c.b16 %v3692, %v3691
  %v3768 = vpack.c.b16 %v3694, %v3693
  %v3769 = vpack.c.b16 %v3696, %v3695
  %v3770 = vpack.c.b16 %v3698, %v3697
  %v3771 = vpack.c.b16 %v3700, %v3699
  %v3772 = vpack.c.b16 %v3702, %v3701
  %v3773 = vpack.c.b16 %v3704, %v3703
  %v3774 = vpack.c.b16 %v3706, %v3705
  %v3775 = vpack.c.b16 %v3708, %v3707
  %v3776 = vpack.c.b16 %v3710, %v3709
  %v3777 = vpack.c.b16 %v3712, %v3711
  %v3778 = vpack.c.b16 %v3714, %v3713
  %v3779 = vpack.c.b16 %v3716, %v3715
  %v3780 = vpack.c.b16 %v3718, %v3717
  %v3781 = vpack.c.b16 %v3720, %v3719
  %v3782 = vpack.c.b16 %v3722, %v3721
  %v3783 = vpack.c.b16 %v3724, %v3723
  %v3784 = vpack.c.b16 %v3726, %v3725
  %v3785 = vpack.c.b16 %v3728, %v3727
  %v3786 = vpack.c.b16 %v3730, %v3729
  %v3787 = vpack.c.b16 %v3732, %v3731
  %v3788 = vpack.c.b16 %v3734, %v3733
  %vm3843 = vcmask 785408
  %v3845 = vsel %vm3843, %v3511, 0
  %3847 = vmatprep.subr.bf16.mxu0 0
  %3848 = vmatpush1.bf16.msra.mxu0 %v3735
  %3849 = vmatprep.subr.bf16.mxu0 0
  %3850 = vmatpush1.bf16.msra.mxu0 %v3736
  %3851 = vmatprep.subr.bf16.mxu0 0
  %3852 = vmatpush1.bf16.msra.mxu0 %v3737
  %3853 = vmatprep.subr.bf16.mxu0 0
  %3854 = vmatpush1.bf16.msra.mxu0 %v3738
  %3855 = vmatprep.subr.bf16.mxu0 0
  %3856 = vmatpush1.bf16.msra.mxu0 %v3739
  %3857 = vmatprep.subr.bf16.mxu0 0
  %3858 = vmatpush1.bf16.msra.mxu0 %v3740
  %3859 = vmatprep.subr.bf16.mxu0 0
  %3860 = vmatpush1.bf16.msra.mxu0 %v3741
  %3861 = vmatprep.subr.bf16.mxu0 0
  %3862 = vmatpush1.bf16.msra.mxu0 %v3742
  %3863 = vmatprep.subr.bf16.mxu0 0
  %3864 = vmatpush1.bf16.msra.mxu0 %v3743
  %3865 = vmatprep.subr.bf16.mxu0 0
  %3866 = vmatpush1.bf16.msra.mxu0 %v3744
  %3867 = vmatprep.subr.bf16.mxu0 0
  %3868 = vmatpush1.bf16.msra.mxu0 %v3745
  %3869 = vmatprep.subr.bf16.mxu0 0
  %3870 = vmatpush1.bf16.msra.mxu0 %v3746
  %3871 = vmatprep.subr.bf16.mxu0 0
  %3872 = vmatpush1.bf16.msra.mxu0 %v3747
  %3873 = vmatprep.subr.bf16.mxu0 0
  %3874 = vmatpush1.bf16.msra.mxu0 %v3748
  %3875 = vmatprep.subr.bf16.mxu0 0
  %3876 = vmatpush1.bf16.msra.mxu0 %v3749
  %3877 = vmatprep.subr.bf16.mxu0 0
  %3878 = vmatpush1.bf16.msra.mxu0 %v3750
  %3879 = vmatprep.mubr.bf16.mxu0 %v3494
  %3880 = vmatmul.mubr.bf16.gmra.mrb[0].mxu0 %v3486
  %v3881 = vpop.f32.mrb[0].mxu0
  %v3882 = vadd.f32 %v3476, %v3881
  %v3883 = vpop.f32.mrb[0].mxu0
  %v3884 = vpop.f32.mrb[0].mxu0
  %v3885 = vpop.f32.mrb[0].mxu0
  %3886 = vdwg.mxu0
  %3887 = vmatprep.subr.bf16.mxu0 0
  %3888 = vmatpush1.bf16.msra.mxu0 %v3751
  %3889 = vmatprep.subr.bf16.mxu0 0
  %3890 = vmatpush1.bf16.msra.mxu0 %v3752
  %3891 = vmatprep.subr.bf16.mxu0 0
  %3892 = vmatpush1.bf16.msra.mxu0 %v3753
  %3893 = vmatprep.subr.bf16.mxu0 0
  %3894 = vmatpush1.bf16.msra.mxu0 %v3754
  %3895 = vmatprep.subr.bf16.mxu0 0
  %3896 = vmatpush1.bf16.msra.mxu0 %v3755
  %3897 = vmatprep.subr.bf16.mxu0 0
  %3898 = vmatpush1.bf16.msra.mxu0 %v3756
  %3899 = vmatprep.subr.bf16.mxu0 0
  %3900 = vmatpush1.bf16.msra.mxu0 %v3757
  %3901 = vmatprep.subr.bf16.mxu0 0
  %3902 = vmatpush1.bf16.msra.mxu0 %v3758
  %3903 = vmatprep.subr.bf16.mxu0 0
  %3904 = vmatpush1.bf16.msra.mxu0 %v3759
  %3905 = vmatprep.subr.bf16.mxu0 0
  %3906 = vmatpush1.bf16.msra.mxu0 %v3760
  %3907 = vmatprep.subr.bf16.mxu0 0
  %3908 = vmatpush1.bf16.msra.mxu0 %v3761
  %3909 = vmatprep.subr.bf16.mxu0 0
  %3910 = vmatpush1.bf16.msra.mxu0 %v3762
  %3911 = vmatprep.subr.bf16.mxu0 0
  %3912 = vmatpush1.bf16.msra.mxu0 %v3763
  %3913 = vmatprep.subr.bf16.mxu0 0
  %3914 = vmatpush1.bf16.msra.mxu0 %v3764
  %3915 = vmatprep.subr.bf16.mxu0 0
  %3916 = vmatpush1.bf16.msra.mxu0 %v3765
  %3917 = vmatprep.subr.bf16.mxu0 0
  %3918 = vmatpush1.bf16.msra.mxu0 %v3766
  %3919 = vmatprep.mubr.bf16.mxu0 %v3495
  %3920 = vmatmul.mubr.bf16.gmra.mrb[0].mxu0 %v3493
  %v3921 = vpop.f32.mrb[0].mxu0
  %v3922 = vadd.f32 %v3882, %v3921
  %v3923 = vpop.f32.mrb[0].mxu0
  %v3924 = vpop.f32.mrb[0].mxu0
  %v3925 = vpop.f32.mrb[0].mxu0
  %3926 = vdwg.mxu0
  %3927 = vmatprep.subr.bf16.mxu0 0
  %3928 = vmatpush1.bf16.msra.mxu0 %v3767
  %3929 = vmatprep.subr.bf16.mxu0 0
  %3930 = vmatpush1.bf16.msra.mxu0 %v3768
  %3931 = vmatprep.subr.bf16.mxu0 0
  %3932 = vmatpush1.bf16.msra.mxu0 %v3769
  %3933 = vmatprep.subr.bf16.mxu0 0
  %3934 = vmatpush1.bf16.msra.mxu0 %v3770
  %3935 = vmatprep.subr.bf16.mxu0 0
  %3936 = vmatpush1.bf16.msra.mxu0 %v3771
  %3937 = vmatprep.subr.bf16.mxu0 0
  %3938 = vmatpush1.bf16.msra.mxu0 %v3772
  %3939 = vmatprep.subr.bf16.mxu0 0
  %3940 = vmatpush1.bf16.msra.mxu0 %v3773
  %3941 = vmatprep.subr.bf16.mxu0 0
  %3942 = vmatpush1.bf16.msra.mxu0 %v3774
  %3943 = vmatprep.subr.bf16.mxu0 0
  %3944 = vmatpush1.bf16.msra.mxu0 %v3775
  %3945 = vmatprep.subr.bf16.mxu0 0
  %3946 = vmatpush1.bf16.msra.mxu0 %v3776
  %3947 = vmatprep.subr.bf16.mxu0 0
  %3948 = vmatpush1.bf16.msra.mxu0 %v3777
  %3949 = vmatprep.subr.bf16.mxu0 0
  %3950 = vmatpush1.bf16.msra.mxu0 %v3778
  %3951 = vmatprep.subr.bf16.mxu0 0
  %3952 = vmatpush1.bf16.msra.mxu0 %v3779
  %3953 = vmatprep.subr.bf16.mxu0 0
  %3954 = vmatpush1.bf16.msra.mxu0 %v3780
  %3955 = vmatprep.subr.bf16.mxu0 0
  %3956 = vmatpush1.bf16.msra.mxu0 %v3781
  %3957 = vmatprep.subr.bf16.mxu0 0
  %3958 = vmatpush1.bf16.msra.mxu0 %v3782
  %3959 = vmatprep.mubr.bf16.mxu0 %v3512
  %3960 = vmatmul.mubr.bf16.gmra.mrb[0].mxu0 %v3504
  %v3961 = vpop.f32.mrb[0].mxu0
  %v3962 = vadd.f32 %v3922, %v3961
  %v3963 = vpop.f32.mrb[0].mxu0
  %v3964 = vpop.f32.mrb[0].mxu0
  %v3965 = vpop.f32.mrb[0].mxu0
  %3966 = vdwg.mxu0
  %3967 = vmatprep.subr.bf16.mxu0 0
  %3968 = vmatpush1.bf16.msra.mxu0 %v3783
  %3969 = vmatprep.subr.bf16.mxu0 0
  %3970 = vmatpush1.bf16.msra.mxu0 %v3784
  %3971 = vmatprep.subr.bf16.mxu0 0
  %3972 = vmatpush1.bf16.msra.mxu0 %v3785
  %3973 = vmatprep.subr.bf16.mxu0 0
  %3974 = vmatpush1.bf16.msra.mxu0 %v3786
  %3975 = vmatprep.subr.bf16.mxu0 0
  %3976 = vmatpush1.bf16.msra.mxu0 %v3787
  %3977 = vmatprep.subr.bf16.mxu0 0
  %3978 = vmatpush1.bf16.msra.mxu0 %v3788
  %3979 = vmatprep.subr.bf16.mxu0 0
  %3980 = vmatpush1.bf16.msra.mxu0 0
  %3981 = vmatprep.subr.bf16.mxu0 0
  %3982 = vmatpush1.bf16.msra.mxu0 0
  %3983 = vmatprep.subr.bf16.mxu0 0
  %3984 = vmatpush1.bf16.msra.mxu0 0
  %3985 = vmatprep.subr.bf16.mxu0 0
  %3986 = vmatpush1.bf16.msra.mxu0 0
  %3987 = vmatprep.subr.bf16.mxu0 0
  %3988 = vmatpush1.bf16.msra.mxu0 0
  %3989 = vmatprep.subr.bf16.mxu0 0
  %3990 = vmatpush1.bf16.msra.mxu0 0
  %3991 = vmatprep.subr.bf16.mxu0 0
  %3992 = vmatpush1.bf16.msra.mxu0 0
  %3993 = vmatprep.subr.bf16.mxu0 0
  %3994 = vmatpush1.bf16.msra.mxu0 0
  %3995 = vmatprep.subr.bf16.mxu0 0
  %3996 = vmatpush1.bf16.msra.mxu0 0
  %3997 = vmatprep.subr.bf16.mxu0 0
  %3998 = vmatpush1.bf16.msra.mxu0 0
  %3999 = vmatprep.mubr.bf16.mxu0 0
  %4000 = vmatmul.mubr.bf16.gmra.mrb[0].mxu0 %v3845
  %v4001 = vpop.f32.mrb[0].mxu0
  %v4002 = vadd.f32 %v3962, %v4001
  %v4003 = vpop.f32.mrb[0].mxu0
  %v4004 = vpop.f32.mrb[0].mxu0
  %v4005 = vpop.f32.mrb[0].mxu0
  %4006 = vdwg.mxu0
  %v4008 = vcombine.high %v4002, %v4002
  %4010 = vst [vmem:[%s14] sm:$0xf] %v4002
  %4011 = vst [vmem:[%s14 + $0x4] sm:$0xf] %v4008
  // Predicated region
  $region58: #{block_forward.1} parent=0 // pred_check
    _
  $region59: #{block_forward.1} parent=0 // pred_check_branch
    %4013 = sbr.rel (0) target = $region61
  $region60: #{block_forward.1} parent=0 // pred_region
    _
  $region61: #{block_forward.1} parent=0 // pred_fallthru
    _
  // Predicated region
  $region62: #{block_forward.1} parent=0 // pred_check
    _
  $region63: #{block_forward.1} parent=0 // pred_check_branch
    %4015 = sbr.rel (0) target = $region65
  $region64: #{block_forward.1} parent=0 // pred_region
    _
  $region65: #{block_forward.1} parent=0 // pred_fallthru
    _

</llo_original>
